<compile_context>
chip_gen: v6e
topology: v6e:2x2x1
jax: 0.10.0
libtpu: 0.0.40
codegen_flags: <defaults>
</compile_context>

<pallas_src>
import functools

import jax
import jax.numpy as jnp
from jax.experimental import pallas as pl
from jax.experimental.pallas import tpu as pltpu

_LN_EPS = 1e-5  # PyTorch nn.LayerNorm default


# ---------------------------------------------------------------------------
# Fused kernel: one batch element of low_catvit.forward in [C, T] layout
# ---------------------------------------------------------------------------
def _low_catvit_kernel(
    x1_ref, x2_ref, pe_ref,
    ln1g_ref, ln1b_ref,
    wqkv_ref, bqkv_ref,
    wao_ref, bao_ref,
    ln2g_ref, ln2b_ref,
    wfc1_ref, bfc1_ref,
    wfc2_ref, bfc2_ref,
    lnfg_ref, lnfb_ref,
    wpr_ref, bpr_ref,
    o_ref,
    *, num_heads,
):
    C, T = pe_ref.shape
    head_dim = C // num_heads

    def layernorm(z, g_ref, b_ref):
        # Per-token LayerNorm over the channel axis (axis 0 of the [C, T] slab).
        mean = jnp.mean(z, axis=0, keepdims=True)
        var = jnp.mean(jnp.square(z - mean), axis=0, keepdims=True)
        return (z - mean) * jax.lax.rsqrt(var + _LN_EPS) * g_ref[...] + b_ref[...]

    def linear(w_ref, b_ref, z):
        # PyTorch Linear is y = x @ W^T + b; in [C, T] layout that is W @ z + b.
        return jnp.dot(w_ref[...], z, preferred_element_type=jnp.float32) + b_ref[...]

    # tokens + positional embedding, lane-dense [C, T]
    tok = x1_ref[0].astype(jnp.float32) + pe_ref[...]

    # ---------------- Vit block: pre-norm multi-head self-attention ----------
    h = layernorm(tok, ln1g_ref, ln1b_ref)
    qkv = linear(wqkv_ref, bqkv_ref, h)                       # [3C, T]
    q = qkv[0 * C:1 * C].reshape(num_heads, head_dim, T)      # [NH, HD, T]
    k = qkv[1 * C:2 * C].reshape(num_heads, head_dim, T)
    v = qkv[2 * C:3 * C].reshape(num_heads, head_dim, T)

    scores = jnp.einsum("hdt,hds->hts", q, k,
                        preferred_element_type=jnp.float32)   # [NH, T, T]
    scores = scores * (1.0 / float(head_dim) ** 0.5)
    scores = scores - jnp.max(scores, axis=-1, keepdims=True)
    p = jnp.exp(scores)
    p = p / jnp.sum(p, axis=-1, keepdims=True)

    attn = jnp.einsum("hts,hds->hdt", p, v,
                      preferred_element_type=jnp.float32)     # [NH, HD, T]
    attn = attn.reshape(C, T)
    tok = tok + linear(wao_ref, bao_ref, attn)

    # ---------------- Vit block: pre-norm MLP (4x hidden, GELU) --------------
    h = layernorm(tok, ln2g_ref, ln2b_ref)
    h = jax.nn.gelu(linear(wfc1_ref, bfc1_ref, h), approximate=True)   # [4C, T]
    tok = tok + linear(wfc2_ref, bfc2_ref, h)

    # ---------------- Low_vit tail: LayerNorm + Linear proj ------------------
    y = layernorm(tok, lnfg_ref, lnfb_ref)
    y = linear(wpr_ref, bpr_ref, y)                           # [C, T]

    # ---------------- low_catvit: out = Low_vit(x1) + x2 ---------------------
    o_ref[0] = (y + x2_ref[0].astype(jnp.float32)).astype(o_ref.dtype)


# ---------------------------------------------------------------------------
# Wrapper: one fused pallas_call over the whole forward, grid = (batch,)
# ---------------------------------------------------------------------------
def low_catvit_forward(x1, x2, params, *, num_heads):
    B, C, H, W = x1.shape
    T = H * W
    assert C % num_heads == 0

    (pos_embed, ln1_g, ln1_b, w_qkv, b_qkv, w_ao, b_ao, ln2_g, ln2_b,
     w_fc1, b_fc1, w_fc2, b_fc2, lnf_g, lnf_b, w_pr, b_pr) = params

    # Flatten H*W -> T (cheap metadata-level reshapes; all heavy work in-kernel).
    x1_t = x1.reshape(B, C, T)
    x2_t = x2.reshape(B, C, T)
    pe_ct = jnp.transpose(pos_embed.reshape(T, C))            # [C, T]

    def col(v):                                               # [n] -> [n, 1]
        return v.reshape(-1, 1)

    weight_args = (
        pe_ct,
        col(ln1_g), col(ln1_b),
        w_qkv, col(b_qkv),
        w_ao, col(b_ao),
        col(ln2_g), col(ln2_b),
        w_fc1, col(b_fc1),
        w_fc2, col(b_fc2),
        col(lnf_g), col(lnf_b),
        w_pr, col(b_pr),
    )

    per_batch = pl.BlockSpec((1, C, T), lambda b: (b, 0, 0))

    def full_spec(shape):
        nd = len(shape)
        return pl.BlockSpec(shape, lambda b: (0,) * nd)       # resident, fetched once

    out = pl.pallas_call(
        functools.partial(_low_catvit_kernel, num_heads=num_heads),
        out_shape=jax.ShapeDtypeStruct((B, C, T), jnp.float32),
        grid=(B,),
        in_specs=[per_batch, per_batch] + [full_spec(a.shape) for a in weight_args],
        out_specs=per_batch,
        compiler_params=pltpu.CompilerParams(
            dimension_semantics=("parallel",)),               # 2 TCs on v7x split batch
    )(x1_t, x2_t, *weight_args)

    return out.reshape(B, C, H, W)


# ---------------------------------------------------------------------------
# Pure-JAX reference (token-major, mirrors the PyTorch code) for validation
# ---------------------------------------------------------------------------
def _reference(x1, x2, params, num_heads):
    B, C, H, W = x1.shape
    T = H * W
    (pos_embed, ln1_g, ln1_b, w_qkv, b_qkv, w_ao, b_ao, ln2_g, ln2_b,
     w_fc1, b_fc1, w_fc2, b_fc2, lnf_g, lnf_b, w_pr, b_pr) = params
    hd = C // num_heads

    def ln(z, g, b):
        m = jnp.mean(z, -1, keepdims=True)
        v = jnp.mean(jnp.square(z - m), -1, keepdims=True)
        return (z - m) * jax.lax.rsqrt(v + _LN_EPS) * g + b

    x = x1.reshape(B, C, T).transpose(0, 2, 1) + pos_embed    # [B, T, C]
    h = ln(x, ln1_g, ln1_b)
    qkv = h @ w_qkv.T + b_qkv
    q, k, v = jnp.split(qkv, 3, axis=-1)
    sh = lambda z: z.reshape(B, T, num_heads, hd).transpose(0, 2, 1, 3)
    q, k, v = sh(q), sh(k), sh(v)
    s = jnp.einsum("bhtd,bhsd->bhts", q, k) / (hd ** 0.5)
    p = jax.nn.softmax(s, axis=-1)
    a = jnp.einsum("bhts,bhsd->bhtd", p, v).transpose(0, 2, 1, 3).reshape(B, T, C)
    x = x + a @ w_ao.T + b_ao
    h = ln(x, ln2_g, ln2_b)
    h = jax.nn.gelu(h @ w_fc1.T + b_fc1, approximate=True)
    x = x + h @ w_fc2.T + b_fc2
    y = ln(x, lnf_g, lnf_b)
    y = y @ w_pr.T + b_pr
    return y.transpose(0, 2, 1).reshape(B, C, H, W) + x2


# ---------------------------------------------------------------------------
# Main
# ---------------------------------------------------------------------------
if __name__ == "__main__":
    B, C, H, W = 2, 32, 16, 16      # feat_size=16 -> num_patches=256, dim=32
    NUM_HEADS = 4                   # head_dim = 8
    # drop_path = 0.0 -> pos_drop is nn.Identity per the module definition.

    key = jax.random.PRNGKey(0)
    ks = jax.random.split(key, 9)
    T = H * W

    def lin_init(k, out_f, in_f):
        kw, kb = jax.random.split(k)
        s = 1.0 / (in_f ** 0.5)
        w = jax.random.uniform(kw, (out_f, in_f), jnp.float32, -s, s)
        b = jax.random.uniform(kb, (out_f,), jnp.float32, -s, s)
        return w, b

    x1 = jax.random.normal(ks[0], (B, C, H, W), jnp.float32)
    x2 = jax.random.normal(ks[1], (B, C, H, W), jnp.float32)

    pos_embed = 0.02 * jax.random.normal(ks[2], (1, T, C), jnp.float32)
    ln1_g = jnp.ones((C,), jnp.float32); ln1_b = jnp.zeros((C,), jnp.float32)
    w_qkv, b_qkv = lin_init(ks[3], 3 * C, C)
    w_ao, b_ao = lin_init(ks[4], C, C)
    ln2_g = jnp.ones((C,), jnp.float32); ln2_b = jnp.zeros((C,), jnp.float32)
    w_fc1, b_fc1 = lin_init(ks[5], 4 * C, C)
    w_fc2, b_fc2 = lin_init(ks[6], C, 4 * C)
    lnf_g = jnp.ones((C,), jnp.float32); lnf_b = jnp.zeros((C,), jnp.float32)
    w_pr, b_pr = lin_init(ks[7], C, C)

    params = (pos_embed, ln1_g, ln1_b, w_qkv, b_qkv, w_ao, b_ao,
              ln2_g, ln2_b, w_fc1, b_fc1, w_fc2, b_fc2,
              lnf_g, lnf_b, w_pr, b_pr)

    fwd = jax.jit(functools.partial(low_catvit_forward, num_heads=NUM_HEADS))
    out = fwd(x1, x2, params)
    out = jax.block_until_ready(out)

    assert out.shape == (B, C, H, W), out.shape
    assert bool(jnp.all(jnp.isfinite(out)))

    ref = _reference(x1, x2, params, NUM_HEADS)
    err = float(jnp.max(jnp.abs(out - ref)))
    assert err < 1e-3, f"max abs err vs reference: {err}"

    print("KERNEL_OK")
</pallas_src>

<mosaic_0001>
module attributes {stable_mosaic.version = 11 : i64} {
  func.func @_low_catvit_kernel(%arg0: i32, %arg1: memref<1x32x256xf32, #tpu.memory_space<vmem>>, %arg2: memref<1x32x256xf32, #tpu.memory_space<vmem>>, %arg3: memref<32x256xf32, #tpu.memory_space<vmem>>, %arg4: memref<32x1xf32, #tpu.memory_space<vmem>>, %arg5: memref<32x1xf32, #tpu.memory_space<vmem>>, %arg6: memref<96x32xf32, #tpu.memory_space<vmem>>, %arg7: memref<96x1xf32, #tpu.memory_space<vmem>>, %arg8: memref<32x32xf32, #tpu.memory_space<vmem>>, %arg9: memref<32x1xf32, #tpu.memory_space<vmem>>, %arg10: memref<32x1xf32, #tpu.memory_space<vmem>>, %arg11: memref<32x1xf32, #tpu.memory_space<vmem>>, %arg12: memref<128x32xf32, #tpu.memory_space<vmem>>, %arg13: memref<128x1xf32, #tpu.memory_space<vmem>>, %arg14: memref<32x128xf32, #tpu.memory_space<vmem>>, %arg15: memref<32x1xf32, #tpu.memory_space<vmem>>, %arg16: memref<32x1xf32, #tpu.memory_space<vmem>>, %arg17: memref<32x1xf32, #tpu.memory_space<vmem>>, %arg18: memref<32x32xf32, #tpu.memory_space<vmem>>, %arg19: memref<32x1xf32, #tpu.memory_space<vmem>>, %arg20: memref<1x32x256xf32, #tpu.memory_space<vmem>>) attributes {dimension_semantics = [#tpu.dimension_semantics<parallel>], iteration_bounds = array<i64: 2>, scalar_prefetch = 0 : i64, scratch_operands = 0 : i64, tpu.core_type = #tpu.core_type<tc>, window_params = [{transform_indices = @transform_0, window_bounds = array<i64: 1, 32, 256>}, {transform_indices = @transform_1, window_bounds = array<i64: 1, 32, 256>}, {pipeline_mode = #tpu.pipeline_mode<synchronous>, transform_indices = @transform_2, window_bounds = array<i64: 32, 256>}, {pipeline_mode = #tpu.pipeline_mode<synchronous>, transform_indices = @transform_3, window_bounds = array<i64: 32, 1>}, {pipeline_mode = #tpu.pipeline_mode<synchronous>, transform_indices = @transform_4, window_bounds = array<i64: 32, 1>}, {pipeline_mode = #tpu.pipeline_mode<synchronous>, transform_indices = @transform_5, window_bounds = array<i64: 96, 32>}, {pipeline_mode = #tpu.pipeline_mode<synchronous>, transform_indices = @transform_6, window_bounds = array<i64: 96, 1>}, {pipeline_mode = #tpu.pipeline_mode<synchronous>, transform_indices = @transform_7, window_bounds = array<i64: 32, 32>}, {pipeline_mode = #tpu.pipeline_mode<synchronous>, transform_indices = @transform_8, window_bounds = array<i64: 32, 1>}, {pipeline_mode = #tpu.pipeline_mode<synchronous>, transform_indices = @transform_9, window_bounds = array<i64: 32, 1>}, {pipeline_mode = #tpu.pipeline_mode<synchronous>, transform_indices = @transform_10, window_bounds = array<i64: 32, 1>}, {pipeline_mode = #tpu.pipeline_mode<synchronous>, transform_indices = @transform_11, window_bounds = array<i64: 128, 32>}, {pipeline_mode = #tpu.pipeline_mode<synchronous>, transform_indices = @transform_12, window_bounds = array<i64: 128, 1>}, {pipeline_mode = #tpu.pipeline_mode<synchronous>, transform_indices = @transform_13, window_bounds = array<i64: 32, 128>}, {pipeline_mode = #tpu.pipeline_mode<synchronous>, transform_indices = @transform_14, window_bounds = array<i64: 32, 1>}, {pipeline_mode = #tpu.pipeline_mode<synchronous>, transform_indices = @transform_15, window_bounds = array<i64: 32, 1>}, {pipeline_mode = #tpu.pipeline_mode<synchronous>, transform_indices = @transform_16, window_bounds = array<i64: 32, 1>}, {pipeline_mode = #tpu.pipeline_mode<synchronous>, transform_indices = @transform_17, window_bounds = array<i64: 32, 32>}, {pipeline_mode = #tpu.pipeline_mode<synchronous>, transform_indices = @transform_18, window_bounds = array<i64: 32, 1>}, {transform_indices = @transform_19, window_bounds = array<i64: 1, 32, 256>}]} {
    %c0 = arith.constant 0 : index
    %c0_0 = arith.constant 0 : index
    %c0_1 = arith.constant 0 : index
    %0 = vector.load %arg1[%c0, %c0_0, %c0_1] : memref<1x32x256xf32, #tpu.memory_space<vmem>>, vector<1x32x256xf32>
    %1 = vector.shape_cast %0 : vector<1x32x256xf32> to vector<32x256xf32>
    %c0_2 = arith.constant 0 : index
    %c0_3 = arith.constant 0 : index
    %2 = vector.load %arg3[%c0_2, %c0_3] : memref<32x256xf32, #tpu.memory_space<vmem>>, vector<32x256xf32>
    %3 = arith.addf %1, %2 : vector<32x256xf32>
    %cst = arith.constant dense<0.000000e+00> : vector<256xf32>
    %4 = vector.multi_reduction <add>, %3, %cst [0] : vector<32x256xf32> to vector<256xf32>
    %5 = vector.shape_cast %4 : vector<256xf32> to vector<1x256xf32>
    %cst_4 = arith.constant 3.200000e+01 : f32
    %6 = vector.broadcast %cst_4 : f32 to vector<1x256xf32>
    %7 = arith.divf %5, %6 : vector<1x256xf32>
    %8 = vector.broadcast %7 : vector<1x256xf32> to vector<32x256xf32>
    %9 = arith.subf %3, %8 : vector<32x256xf32>
    %10 = arith.mulf %9, %9 : vector<32x256xf32>
    %cst_5 = arith.constant dense<0.000000e+00> : vector<256xf32>
    %11 = vector.multi_reduction <add>, %10, %cst_5 [0] : vector<32x256xf32> to vector<256xf32>
    %12 = vector.shape_cast %11 : vector<256xf32> to vector<1x256xf32>
    %cst_6 = arith.constant 3.200000e+01 : f32
    %13 = vector.broadcast %cst_6 : f32 to vector<1x256xf32>
    %14 = arith.divf %12, %13 : vector<1x256xf32>
    %15 = vector.broadcast %7 : vector<1x256xf32> to vector<32x256xf32>
    %16 = arith.subf %3, %15 : vector<32x256xf32>
    %cst_7 = arith.constant 9.99999974E-6 : f32
    %17 = vector.broadcast %cst_7 : f32 to vector<1x256xf32>
    %18 = arith.addf %14, %17 : vector<1x256xf32>
    %19 = math.rsqrt %18 : vector<1x256xf32>
    %20 = vector.broadcast %19 : vector<1x256xf32> to vector<32x256xf32>
    %21 = arith.mulf %16, %20 : vector<32x256xf32>
    %c0_8 = arith.constant 0 : index
    %c0_9 = arith.constant 0 : index
    %22 = vector.load %arg4[%c0_8, %c0_9] : memref<32x1xf32, #tpu.memory_space<vmem>>, vector<32x1xf32>
    %23 = vector.broadcast %22 : vector<32x1xf32> to vector<32x256xf32>
    %24 = arith.mulf %21, %23 : vector<32x256xf32>
    %c0_10 = arith.constant 0 : index
    %c0_11 = arith.constant 0 : index
    %25 = vector.load %arg5[%c0_10, %c0_11] : memref<32x1xf32, #tpu.memory_space<vmem>>, vector<32x1xf32>
    %26 = vector.broadcast %25 : vector<32x1xf32> to vector<32x256xf32>
    %27 = arith.addf %24, %26 : vector<32x256xf32>
    %c0_12 = arith.constant 0 : index
    %c0_13 = arith.constant 0 : index
    %28 = vector.load %arg6[%c0_12, %c0_13] : memref<96x32xf32, #tpu.memory_space<vmem>>, vector<96x32xf32>
    %cst_14 = arith.constant dense<0.000000e+00> : vector<96x256xf32>
    %29 = tpu.matmul %28, %27, %cst_14 {dimension_numbers = #tpu.dot_dimension_numbers<[1], [0], [0], [1], [0, 0, 1, 1], [], []>} : vector<96x32xf32>, vector<32x256xf32>, vector<96x256xf32> -> vector<96x256xf32>
    %c0_15 = arith.constant 0 : index
    %c0_16 = arith.constant 0 : index
    %30 = vector.load %arg7[%c0_15, %c0_16] : memref<96x1xf32, #tpu.memory_space<vmem>>, vector<96x1xf32>
    %31 = vector.broadcast %30 : vector<96x1xf32> to vector<96x256xf32>
    %32 = arith.addf %29, %31 : vector<96x256xf32>
    %33 = vector.extract_strided_slice %32 {offsets = [0, 0], sizes = [32, 256], strides = [1, 1]} : vector<96x256xf32> to vector<32x256xf32>
    %34 = vector.shape_cast %33 : vector<32x256xf32> to vector<4x8x256xf32>
    %35 = vector.extract_strided_slice %32 {offsets = [32, 0], sizes = [32, 256], strides = [1, 1]} : vector<96x256xf32> to vector<32x256xf32>
    %36 = vector.shape_cast %35 : vector<32x256xf32> to vector<4x8x256xf32>
    %37 = vector.extract_strided_slice %32 {offsets = [64, 0], sizes = [32, 256], strides = [1, 1]} : vector<96x256xf32> to vector<32x256xf32>
    %38 = vector.shape_cast %37 : vector<32x256xf32> to vector<4x8x256xf32>
    "tpu.trace_start"() <{level = 10 : i32, message = "hdt,hds->hts"}> : () -> ()
    %cst_17 = arith.constant dense<0.000000e+00> : vector<4x256x256xf32>
    %39 = tpu.matmul %34, %36, %cst_17 {dimension_numbers = #tpu.dot_dimension_numbers<[1], [1], [2], [2], [0, 0, 0, 2, 1, 2], [0], [0]>} : vector<4x8x256xf32>, vector<4x8x256xf32>, vector<4x256x256xf32> -> vector<4x256x256xf32>
    "tpu.trace_stop"() : () -> ()
    %cst_18 = arith.constant 0.353553385 : f32
    %40 = vector.broadcast %cst_18 : f32 to vector<4x256x256xf32>
    %41 = arith.mulf %39, %40 : vector<4x256x256xf32>
    %cst_19 = arith.constant dense<0xFF800000> : vector<4x256xf32>
    %42 = vector.multi_reduction <maximumf>, %41, %cst_19 [2] : vector<4x256x256xf32> to vector<4x256xf32>
    %43 = vector.shape_cast %42 : vector<4x256xf32> to vector<4x256x1xf32>
    %44 = vector.broadcast %43 : vector<4x256x1xf32> to vector<4x256x256xf32>
    %45 = arith.subf %41, %44 : vector<4x256x256xf32>
    %46 = math.exp %45 : vector<4x256x256xf32>
    %cst_20 = arith.constant dense<0.000000e+00> : vector<4x256xf32>
    %47 = vector.multi_reduction <add>, %46, %cst_20 [2] : vector<4x256x256xf32> to vector<4x256xf32>
    %48 = vector.shape_cast %47 : vector<4x256xf32> to vector<4x256x1xf32>
    %49 = vector.broadcast %48 : vector<4x256x1xf32> to vector<4x256x256xf32>
    %50 = arith.divf %46, %49 : vector<4x256x256xf32>
    "tpu.trace_start"() <{level = 10 : i32, message = "hts,hds->hdt"}> : () -> ()
    %cst_21 = arith.constant dense<0.000000e+00> : vector<4x8x256xf32>
    %51 = tpu.matmul %38, %50, %cst_21 {dimension_numbers = #tpu.dot_dimension_numbers<[2], [2], [1], [1], [0, 0, 0, 1, 1, 1], [0], [0]>} : vector<4x8x256xf32>, vector<4x256x256xf32>, vector<4x8x256xf32> -> vector<4x8x256xf32>
    "tpu.trace_stop"() : () -> ()
    %52 = vector.shape_cast %51 : vector<4x8x256xf32> to vector<32x256xf32>
    %c0_22 = arith.constant 0 : index
    %c0_23 = arith.constant 0 : index
    %53 = vector.load %arg8[%c0_22, %c0_23] : memref<32x32xf32, #tpu.memory_space<vmem>>, vector<32x32xf32>
    %cst_24 = arith.constant dense<0.000000e+00> : vector<32x256xf32>
    %54 = tpu.matmul %53, %52, %cst_24 {dimension_numbers = #tpu.dot_dimension_numbers<[1], [0], [0], [1], [0, 0, 1, 1], [], []>} : vector<32x32xf32>, vector<32x256xf32>, vector<32x256xf32> -> vector<32x256xf32>
    %c0_25 = arith.constant 0 : index
    %c0_26 = arith.constant 0 : index
    %55 = vector.load %arg9[%c0_25, %c0_26] : memref<32x1xf32, #tpu.memory_space<vmem>>, vector<32x1xf32>
    %56 = vector.broadcast %55 : vector<32x1xf32> to vector<32x256xf32>
    %57 = arith.addf %54, %56 : vector<32x256xf32>
    %58 = arith.addf %3, %57 : vector<32x256xf32>
    %cst_27 = arith.constant dense<0.000000e+00> : vector<256xf32>
    %59 = vector.multi_reduction <add>, %58, %cst_27 [0] : vector<32x256xf32> to vector<256xf32>
    %60 = vector.shape_cast %59 : vector<256xf32> to vector<1x256xf32>
    %cst_28 = arith.constant 3.200000e+01 : f32
    %61 = vector.broadcast %cst_28 : f32 to vector<1x256xf32>
    %62 = arith.divf %60, %61 : vector<1x256xf32>
    %63 = vector.broadcast %62 : vector<1x256xf32> to vector<32x256xf32>
    %64 = arith.subf %58, %63 : vector<32x256xf32>
    %65 = arith.mulf %64, %64 : vector<32x256xf32>
    %cst_29 = arith.constant dense<0.000000e+00> : vector<256xf32>
    %66 = vector.multi_reduction <add>, %65, %cst_29 [0] : vector<32x256xf32> to vector<256xf32>
    %67 = vector.shape_cast %66 : vector<256xf32> to vector<1x256xf32>
    %cst_30 = arith.constant 3.200000e+01 : f32
    %68 = vector.broadcast %cst_30 : f32 to vector<1x256xf32>
    %69 = arith.divf %67, %68 : vector<1x256xf32>
    %70 = vector.broadcast %62 : vector<1x256xf32> to vector<32x256xf32>
    %71 = arith.subf %58, %70 : vector<32x256xf32>
    %cst_31 = arith.constant 9.99999974E-6 : f32
    %72 = vector.broadcast %cst_31 : f32 to vector<1x256xf32>
    %73 = arith.addf %69, %72 : vector<1x256xf32>
    %74 = math.rsqrt %73 : vector<1x256xf32>
    %75 = vector.broadcast %74 : vector<1x256xf32> to vector<32x256xf32>
    %76 = arith.mulf %71, %75 : vector<32x256xf32>
    %c0_32 = arith.constant 0 : index
    %c0_33 = arith.constant 0 : index
    %77 = vector.load %arg10[%c0_32, %c0_33] : memref<32x1xf32, #tpu.memory_space<vmem>>, vector<32x1xf32>
    %78 = vector.broadcast %77 : vector<32x1xf32> to vector<32x256xf32>
    %79 = arith.mulf %76, %78 : vector<32x256xf32>
    %c0_34 = arith.constant 0 : index
    %c0_35 = arith.constant 0 : index
    %80 = vector.load %arg11[%c0_34, %c0_35] : memref<32x1xf32, #tpu.memory_space<vmem>>, vector<32x1xf32>
    %81 = vector.broadcast %80 : vector<32x1xf32> to vector<32x256xf32>
    %82 = arith.addf %79, %81 : vector<32x256xf32>
    %c0_36 = arith.constant 0 : index
    %c0_37 = arith.constant 0 : index
    %83 = vector.load %arg12[%c0_36, %c0_37] : memref<128x32xf32, #tpu.memory_space<vmem>>, vector<128x32xf32>
    %cst_38 = arith.constant dense<0.000000e+00> : vector<128x256xf32>
    %84 = tpu.matmul %83, %82, %cst_38 {dimension_numbers = #tpu.dot_dimension_numbers<[1], [0], [0], [1], [0, 0, 1, 1], [], []>} : vector<128x32xf32>, vector<32x256xf32>, vector<128x256xf32> -> vector<128x256xf32>
    %c0_39 = arith.constant 0 : index
    %c0_40 = arith.constant 0 : index
    %85 = vector.load %arg13[%c0_39, %c0_40] : memref<128x1xf32, #tpu.memory_space<vmem>>, vector<128x1xf32>
    %86 = vector.broadcast %85 : vector<128x1xf32> to vector<128x256xf32>
    %87 = arith.addf %84, %86 : vector<128x256xf32>
    %88 = arith.mulf %87, %87 : vector<128x256xf32>
    %89 = arith.mulf %87, %88 : vector<128x256xf32>
    %cst_41 = arith.constant 4.471500e-02 : f32
    %90 = vector.broadcast %cst_41 : f32 to vector<128x256xf32>
    %91 = arith.mulf %90, %89 : vector<128x256xf32>
    %92 = arith.addf %87, %91 : vector<128x256xf32>
    %cst_42 = arith.constant 0.797884583 : f32
    %93 = vector.broadcast %cst_42 : f32 to vector<128x256xf32>
    %94 = arith.mulf %93, %92 : vector<128x256xf32>
    %95 = math.tanh %94 : vector<128x256xf32>
    %cst_43 = arith.constant 1.000000e+00 : f32
    %96 = vector.broadcast %cst_43 : f32 to vector<128x256xf32>
    %97 = arith.addf %96, %95 : vector<128x256xf32>
    %cst_44 = arith.constant 5.000000e-01 : f32
    %98 = vector.broadcast %cst_44 : f32 to vector<128x256xf32>
    %99 = arith.mulf %98, %97 : vector<128x256xf32>
    %100 = arith.mulf %87, %99 : vector<128x256xf32>
    %c0_45 = arith.constant 0 : index
    %c0_46 = arith.constant 0 : index
    %101 = vector.load %arg14[%c0_45, %c0_46] : memref<32x128xf32, #tpu.memory_space<vmem>>, vector<32x128xf32>
    %cst_47 = arith.constant dense<0.000000e+00> : vector<32x256xf32>
    %102 = tpu.matmul %101, %100, %cst_47 {dimension_numbers = #tpu.dot_dimension_numbers<[1], [0], [0], [1], [0, 0, 1, 1], [], []>} : vector<32x128xf32>, vector<128x256xf32>, vector<32x256xf32> -> vector<32x256xf32>
    %c0_48 = arith.constant 0 : index
    %c0_49 = arith.constant 0 : index
    %103 = vector.load %arg15[%c0_48, %c0_49] : memref<32x1xf32, #tpu.memory_space<vmem>>, vector<32x1xf32>
    %104 = vector.broadcast %103 : vector<32x1xf32> to vector<32x256xf32>
    %105 = arith.addf %102, %104 : vector<32x256xf32>
    %106 = arith.addf %58, %105 : vector<32x256xf32>
    %cst_50 = arith.constant dense<0.000000e+00> : vector<256xf32>
    %107 = vector.multi_reduction <add>, %106, %cst_50 [0] : vector<32x256xf32> to vector<256xf32>
    %108 = vector.shape_cast %107 : vector<256xf32> to vector<1x256xf32>
    %cst_51 = arith.constant 3.200000e+01 : f32
    %109 = vector.broadcast %cst_51 : f32 to vector<1x256xf32>
    %110 = arith.divf %108, %109 : vector<1x256xf32>
    %111 = vector.broadcast %110 : vector<1x256xf32> to vector<32x256xf32>
    %112 = arith.subf %106, %111 : vector<32x256xf32>
    %113 = arith.mulf %112, %112 : vector<32x256xf32>
    %cst_52 = arith.constant dense<0.000000e+00> : vector<256xf32>
    %114 = vector.multi_reduction <add>, %113, %cst_52 [0] : vector<32x256xf32> to vector<256xf32>
    %115 = vector.shape_cast %114 : vector<256xf32> to vector<1x256xf32>
    %cst_53 = arith.constant 3.200000e+01 : f32
    %116 = vector.broadcast %cst_53 : f32 to vector<1x256xf32>
    %117 = arith.divf %115, %116 : vector<1x256xf32>
    %118 = vector.broadcast %110 : vector<1x256xf32> to vector<32x256xf32>
    %119 = arith.subf %106, %118 : vector<32x256xf32>
    %cst_54 = arith.constant 9.99999974E-6 : f32
    %120 = vector.broadcast %cst_54 : f32 to vector<1x256xf32>
    %121 = arith.addf %117, %120 : vector<1x256xf32>
    %122 = math.rsqrt %121 : vector<1x256xf32>
    %123 = vector.broadcast %122 : vector<1x256xf32> to vector<32x256xf32>
    %124 = arith.mulf %119, %123 : vector<32x256xf32>
    %c0_55 = arith.constant 0 : index
    %c0_56 = arith.constant 0 : index
    %125 = vector.load %arg16[%c0_55, %c0_56] : memref<32x1xf32, #tpu.memory_space<vmem>>, vector<32x1xf32>
    %126 = vector.broadcast %125 : vector<32x1xf32> to vector<32x256xf32>
    %127 = arith.mulf %124, %126 : vector<32x256xf32>
    %c0_57 = arith.constant 0 : index
    %c0_58 = arith.constant 0 : index
    %128 = vector.load %arg17[%c0_57, %c0_58] : memref<32x1xf32, #tpu.memory_space<vmem>>, vector<32x1xf32>
    %129 = vector.broadcast %128 : vector<32x1xf32> to vector<32x256xf32>
    %130 = arith.addf %127, %129 : vector<32x256xf32>
    %c0_59 = arith.constant 0 : index
    %c0_60 = arith.constant 0 : index
    %131 = vector.load %arg18[%c0_59, %c0_60] : memref<32x32xf32, #tpu.memory_space<vmem>>, vector<32x32xf32>
    %cst_61 = arith.constant dense<0.000000e+00> : vector<32x256xf32>
    %132 = tpu.matmul %131, %130, %cst_61 {dimension_numbers = #tpu.dot_dimension_numbers<[1], [0], [0], [1], [0, 0, 1, 1], [], []>} : vector<32x32xf32>, vector<32x256xf32>, vector<32x256xf32> -> vector<32x256xf32>
    %c0_62 = arith.constant 0 : index
    %c0_63 = arith.constant 0 : index
    %133 = vector.load %arg19[%c0_62, %c0_63] : memref<32x1xf32, #tpu.memory_space<vmem>>, vector<32x1xf32>
    %134 = vector.broadcast %133 : vector<32x1xf32> to vector<32x256xf32>
    %135 = arith.addf %132, %134 : vector<32x256xf32>
    %c0_64 = arith.constant 0 : index
    %c0_65 = arith.constant 0 : index
    %c0_66 = arith.constant 0 : index
    %136 = vector.load %arg2[%c0_64, %c0_65, %c0_66] : memref<1x32x256xf32, #tpu.memory_space<vmem>>, vector<1x32x256xf32>
    %137 = vector.shape_cast %136 : vector<1x32x256xf32> to vector<32x256xf32>
    %138 = arith.addf %135, %137 : vector<32x256xf32>
    %c0_67 = arith.constant 0 : index
    %c0_68 = arith.constant 0 : index
    %c0_69 = arith.constant 0 : index
    %139 = vector.load %arg20[%c0_67, %c0_68, %c0_69] : memref<1x32x256xf32, #tpu.memory_space<vmem>>, vector<1x32x256xf32>
    %140 = vector.shape_cast %139 : vector<1x32x256xf32> to vector<32x256xf32>
    %141 = vector.shape_cast %138 : vector<32x256xf32> to vector<1x32x256xf32>
    tpu.vector_store %arg20[%c0_67, %c0_68, %c0_69], %141 {strides = array<i32>} : memref<1x32x256xf32, #tpu.memory_space<vmem>>, vector<1x32x256xf32>,
    return
  }
  func.func @transform_0(%arg0: i32) -> (i32, i32, i32) {
    %c0_i32 = arith.constant 0 : i32
    %c0_i32_0 = arith.constant 0 : i32
    %c0_i32_1 = arith.constant 0 : i32
    return %arg0, %c0_i32, %c0_i32_0 : i32, i32, i32
  }
  func.func @transform_1(%arg0: i32) -> (i32, i32, i32) {
    %c0_i32 = arith.constant 0 : i32
    %c0_i32_0 = arith.constant 0 : i32
    %c0_i32_1 = arith.constant 0 : i32
    return %arg0, %c0_i32, %c0_i32_0 : i32, i32, i32
  }
  func.func @transform_2(%arg0: i32) -> (i32, i32) {
    %c0_i32 = arith.constant 0 : i32
    %c0_i32_0 = arith.constant 0 : i32
    %c0_i32_1 = arith.constant 0 : i32
    return %c0_i32, %c0_i32_0 : i32, i32
  }
  func.func @transform_3(%arg0: i32) -> (i32, i32) {
    %c0_i32 = arith.constant 0 : i32
    %c0_i32_0 = arith.constant 0 : i32
    %c0_i32_1 = arith.constant 0 : i32
    return %c0_i32, %c0_i32_0 : i32, i32
  }
  func.func @transform_4(%arg0: i32) -> (i32, i32) {
    %c0_i32 = arith.constant 0 : i32
    %c0_i32_0 = arith.constant 0 : i32
    %c0_i32_1 = arith.constant 0 : i32
    return %c0_i32, %c0_i32_0 : i32, i32
  }
  func.func @transform_5(%arg0: i32) -> (i32, i32) {
    %c0_i32 = arith.constant 0 : i32
    %c0_i32_0 = arith.constant 0 : i32
    %c0_i32_1 = arith.constant 0 : i32
    return %c0_i32, %c0_i32_0 : i32, i32
  }
  func.func @transform_6(%arg0: i32) -> (i32, i32) {
    %c0_i32 = arith.constant 0 : i32
    %c0_i32_0 = arith.constant 0 : i32
    %c0_i32_1 = arith.constant 0 : i32
    return %c0_i32, %c0_i32_0 : i32, i32
  }
  func.func @transform_7(%arg0: i32) -> (i32, i32) {
    %c0_i32 = arith.constant 0 : i32
    %c0_i32_0 = arith.constant 0 : i32
    %c0_i32_1 = arith.constant 0 : i32
    return %c0_i32, %c0_i32_0 : i32, i32
  }
  func.func @transform_8(%arg0: i32) -> (i32, i32) {
    %c0_i32 = arith.constant 0 : i32
    %c0_i32_0 = arith.constant 0 : i32
    %c0_i32_1 = arith.constant 0 : i32
    return %c0_i32, %c0_i32_0 : i32, i32
  }
  func.func @transform_9(%arg0: i32) -> (i32, i32) {
    %c0_i32 = arith.constant 0 : i32
    %c0_i32_0 = arith.constant 0 : i32
    %c0_i32_1 = arith.constant 0 : i32
    return %c0_i32, %c0_i32_0 : i32, i32
  }
  func.func @transform_10(%arg0: i32) -> (i32, i32) {
    %c0_i32 = arith.constant 0 : i32
    %c0_i32_0 = arith.constant 0 : i32
    %c0_i32_1 = arith.constant 0 : i32
    return %c0_i32, %c0_i32_0 : i32, i32
  }
  func.func @transform_11(%arg0: i32) -> (i32, i32) {
    %c0_i32 = arith.constant 0 : i32
    %c0_i32_0 = arith.constant 0 : i32
    %c0_i32_1 = arith.constant 0 : i32
    return %c0_i32, %c0_i32_0 : i32, i32
  }
  func.func @transform_12(%arg0: i32) -> (i32, i32) {
    %c0_i32 = arith.constant 0 : i32
    %c0_i32_0 = arith.constant 0 : i32
    %c0_i32_1 = arith.constant 0 : i32
    return %c0_i32, %c0_i32_0 : i32, i32
  }
  func.func @transform_13(%arg0: i32) -> (i32, i32) {
    %c0_i32 = arith.constant 0 : i32
    %c0_i32_0 = arith.constant 0 : i32
    %c0_i32_1 = arith.constant 0 : i32
    return %c0_i32, %c0_i32_0 : i32, i32
  }
  func.func @transform_14(%arg0: i32) -> (i32, i32) {
    %c0_i32 = arith.constant 0 : i32
    %c0_i32_0 = arith.constant 0 : i32
    %c0_i32_1 = arith.constant 0 : i32
    return %c0_i32, %c0_i32_0 : i32, i32
  }
  func.func @transform_15(%arg0: i32) -> (i32, i32) {
    %c0_i32 = arith.constant 0 : i32
    %c0_i32_0 = arith.constant 0 : i32
    %c0_i32_1 = arith.constant 0 : i32
    return %c0_i32, %c0_i32_0 : i32, i32
  }
  func.func @transform_16(%arg0: i32) -> (i32, i32) {
    %c0_i32 = arith.constant 0 : i32
    %c0_i32_0 = arith.constant 0 : i32
    %c0_i32_1 = arith.constant 0 : i32
    return %c0_i32, %c0_i32_0 : i32, i32
  }
  func.func @transform_17(%arg0: i32) -> (i32, i32) {
    %c0_i32 = arith.constant 0 : i32
    %c0_i32_0 = arith.constant 0 : i32
    %c0_i32_1 = arith.constant 0 : i32
    return %c0_i32, %c0_i32_0 : i32, i32
  }
  func.func @transform_18(%arg0: i32) -> (i32, i32) {
    %c0_i32 = arith.constant 0 : i32
    %c0_i32_0 = arith.constant 0 : i32
    %c0_i32_1 = arith.constant 0 : i32
    return %c0_i32, %c0_i32_0 : i32, i32
  }
  func.func @transform_19(%arg0: i32) -> (i32, i32, i32) {
    %c0_i32 = arith.constant 0 : i32
    %c0_i32_0 = arith.constant 0 : i32
    %c0_i32_1 = arith.constant 0 : i32
    return %arg0, %c0_i32, %c0_i32_0 : i32, i32, i32
  }
}

</mosaic_0001>

<llo_original>
// kernel: low_catvit_forward.1
$region0: #{low_catvit_forward.1}
  #allocation0 [shape = 'u32[]', space=smem, size = 0x4, offset = 0x4, fixed_abs, tag = 'smem constant byte address 0x4 - core index']
  #allocation1 [shape = 'u32[144,128]{1,0:T(1,128)}', space=vmem, size = 0x12000, scoped, tag = 'internal scratch']
  %s0 = inlined_call_operand.vmem [shape: f32[2,32,256], index: 0, kind: input, shape index: {}]
  %s1 = inlined_call_operand.vmem [shape: f32[2,32,256], index: 1, kind: input, shape index: {}]
  %s2 = inlined_call_operand.vmem [shape: f32[32,256], index: 2, kind: input, shape index: {}]
  %s3 = inlined_call_operand.vmem [shape: f32[32,1], index: 3, kind: input, shape index: {}]
  %s4 = inlined_call_operand.vmem [shape: f32[32,1], index: 4, kind: input, shape index: {}]
  %s5 = inlined_call_operand.vmem [shape: f32[96,32], index: 5, kind: input, shape index: {}]
  %s6 = inlined_call_operand.vmem [shape: f32[96,1], index: 6, kind: input, shape index: {}]
  %s7 = inlined_call_operand.vmem [shape: f32[32,32], index: 7, kind: input, shape index: {}]
  %s8 = inlined_call_operand.vmem [shape: f32[32,1], index: 8, kind: input, shape index: {}]
  %s9 = inlined_call_operand.vmem [shape: f32[32,1], index: 9, kind: input, shape index: {}]
  %s10 = inlined_call_operand.vmem [shape: f32[32,1], index: 10, kind: input, shape index: {}]
  %s11 = inlined_call_operand.vmem [shape: f32[128,32], index: 11, kind: input, shape index: {}]
  %s12 = inlined_call_operand.vmem [shape: f32[128,1], index: 12, kind: input, shape index: {}]
  %s13 = inlined_call_operand.vmem [shape: f32[32,128], index: 13, kind: input, shape index: {}]
  %s14 = inlined_call_operand.vmem [shape: f32[32,1], index: 14, kind: input, shape index: {}]
  %s15 = inlined_call_operand.vmem [shape: f32[32,1], index: 15, kind: input, shape index: {}]
  %s16 = inlined_call_operand.vmem [shape: f32[32,1], index: 16, kind: input, shape index: {}]
  %s17 = inlined_call_operand.vmem [shape: f32[32,32], index: 17, kind: input, shape index: {}]
  %s18 = inlined_call_operand.vmem [shape: f32[32,1], index: 18, kind: input, shape index: {}]
  %s19 = inlined_call_operand.vmem [shape: f32[2,32,256], index: 19, kind: output, shape index: {}]
  %s20 = sld [smem:[#allocation0]]
  $region109: #{low_catvit_forward.1} parent=0
    _
  %s22 = ssub.s32 1, %s20
  %s23 = scalar_select 0, %s22, %s20
  loop: start=0, step=1, limit=4
  $region2: #{low_catvit_forward.1} parent=0 // loop_pre_header
    _
  $region3: #{low_catvit_forward.1} parent=0 // loop_header
    %s25 = sphi 0, %s29
    %p26 = scmp.ge.s32.totalorder %s25, 4
    %s35 = sphi 0, %s37
    %s38 = sphi 0, %s35
    %s39 = sphi 0, %s38
    %s55 = sphi 0, %s39
    %s61 = sphi 0, %s63
    %s64 = sphi 0, %s61
    %s65 = sphi 0, %s64
    %s81 = sphi 0, %s65
    %s85 = sphi 0, %s85
    %s87 = sphi 0, %s85
    %s88 = sphi 0, %s87
    %s102 = sphi 0, %s88
    %s106 = sphi 0, %s106
    %s108 = sphi 0, %s106
    %s109 = sphi 0, %s108
    %s123 = sphi 0, %s109
    %s127 = sphi 0, %s127
    %s129 = sphi 0, %s127
    %s130 = sphi 0, %s129
    %s144 = sphi 0, %s130
    %s148 = sphi 0, %s148
    %s150 = sphi 0, %s148
    %s151 = sphi 0, %s150
    %s165 = sphi 0, %s151
    %s169 = sphi 0, %s169
    %s171 = sphi 0, %s169
    %s172 = sphi 0, %s171
    %s186 = sphi 0, %s172
    %s190 = sphi 0, %s190
    %s192 = sphi 0, %s190
    %s193 = sphi 0, %s192
    %s207 = sphi 0, %s193
    %s211 = sphi 0, %s211
    %s213 = sphi 0, %s211
    %s214 = sphi 0, %s213
    %s228 = sphi 0, %s214
    %s232 = sphi 0, %s232
    %s234 = sphi 0, %s232
    %s235 = sphi 0, %s234
    %s249 = sphi 0, %s235
    %s253 = sphi 0, %s253
    %s255 = sphi 0, %s253
    %s256 = sphi 0, %s255
    %s270 = sphi 0, %s256
    %s274 = sphi 0, %s274
    %s276 = sphi 0, %s274
    %s277 = sphi 0, %s276
    %s291 = sphi 0, %s277
    %s295 = sphi 0, %s295
    %s297 = sphi 0, %s295
    %s298 = sphi 0, %s297
    %s312 = sphi 0, %s298
    %s316 = sphi 0, %s316
    %s318 = sphi 0, %s316
    %s319 = sphi 0, %s318
    %s333 = sphi 0, %s319
    %s337 = sphi 0, %s337
    %s339 = sphi 0, %s337
    %s340 = sphi 0, %s339
    %s354 = sphi 0, %s340
    %s358 = sphi 0, %s358
    %s360 = sphi 0, %s358
    %s361 = sphi 0, %s360
    %s375 = sphi 0, %s361
    %s379 = sphi 0, %s379
    %s381 = sphi 0, %s379
    %s382 = sphi 0, %s381
    %s396 = sphi 0, %s382
    %s400 = sphi 0, %s400
    %s402 = sphi 0, %s400
    %s403 = sphi 0, %s402
    %s417 = sphi 0, %s403
    %s421 = sphi 0, %s421
    %s423 = sphi 0, %s421
    %s424 = sphi 0, %s423
    %s438 = sphi 0, %s424
    %s444 = sphi 0, %s446
    %s447 = sphi 0, %s444
    %s448 = sphi 0, %s447
    %s464 = sphi 0, %s448
  $region4: #{low_catvit_forward.1} parent=0 // loop_header_branch
    %28 = sbr.rel (%p26) target = $region8
  $region5: #{low_catvit_forward.1} parent=0 // loop_body
    %s30 = ssub.s32 %s25, 1
    %s31 = ssub.s32 %s25, 2
    %s32 = sadd.s32 %s25, 1
    %s33 = ssub.s32 %s25, %s32
    %p34 = scmp.eq.s32.totalorder %s33, 0
    %s36 = sadd.s32 %s35, 1
    %s37 = scalar_select %p34, %s35, %s36
    %p40 = pneg %p34
    %p41 = scmp.eq.s32.totalorder %s25, 1
    %p42 = por %p40, %p41
    %p43 = scmp.ne.s32.totalorder %s35, %s38
    %p44 = scmp.eq.s32.totalorder %s25, 0
    %p45 = por %p43, %p44
    %p46 = scmp.ne.s32.totalorder %s35, %s38
    %p47 = scmp.eq.s32.totalorder %s30, 1
    %p48 = por %p46, %p47
    %p49 = scmp.ne.s32.totalorder %s38, %s39
    %p50 = scmp.eq.s32.totalorder %s30, 0
    %p51 = por %p49, %p50
    %p52 = scmp.ne.s32.totalorder %s38, %s39
    %p53 = scmp.eq.s32.totalorder %s31, 1
    %p54 = por %p52, %p53
    %p56 = scmp.ne.s32.totalorder %s39, %s55
    %p57 = scmp.eq.s32.totalorder %s31, 0
    %p58 = por %p56, %p57
    %s59 = ssub.s32 %s25, %s32
    %p60 = scmp.eq.s32.totalorder %s59, 0
    %s62 = sadd.s32 %s61, 1
    %s63 = scalar_select %p60, %s61, %s62
    %p66 = pneg %p60
    %p67 = scmp.eq.s32.totalorder %s25, 1
    %p68 = por %p66, %p67
    %p69 = scmp.ne.s32.totalorder %s61, %s64
    %p70 = scmp.eq.s32.totalorder %s25, 0
    %p71 = por %p69, %p70
    %p72 = scmp.ne.s32.totalorder %s61, %s64
    %p73 = scmp.eq.s32.totalorder %s30, 1
    %p74 = por %p72, %p73
    %p75 = scmp.ne.s32.totalorder %s64, %s65
    %p76 = scmp.eq.s32.totalorder %s30, 0
    %p77 = por %p75, %p76
    %p78 = scmp.ne.s32.totalorder %s64, %s65
    %p79 = scmp.eq.s32.totalorder %s31, 1
    %p80 = por %p78, %p79
    %p82 = scmp.ne.s32.totalorder %s65, %s81
    %p83 = scmp.eq.s32.totalorder %s31, 0
    %p84 = por %p82, %p83
    %s86 = sadd.s32 %s85, 1
    %p89 = scmp.eq.s32.totalorder %s25, 1
    %p90 = scmp.ne.s32.totalorder %s85, %s87
    %p91 = scmp.eq.s32.totalorder %s25, 0
    %p92 = por %p90, %p91
    %p93 = scmp.ne.s32.totalorder %s85, %s87
    %p94 = scmp.eq.s32.totalorder %s30, 1
    %p95 = por %p93, %p94
    %p96 = scmp.ne.s32.totalorder %s87, %s88
    %p97 = scmp.eq.s32.totalorder %s30, 0
    %p98 = por %p96, %p97
    %p99 = scmp.ne.s32.totalorder %s87, %s88
    %p100 = scmp.eq.s32.totalorder %s31, 1
    %p101 = por %p99, %p100
    %p103 = scmp.ne.s32.totalorder %s88, %s102
    %p104 = scmp.eq.s32.totalorder %s31, 0
    %p105 = por %p103, %p104
    %s107 = sadd.s32 %s106, 1
    %p110 = scmp.eq.s32.totalorder %s25, 1
    %p111 = scmp.ne.s32.totalorder %s106, %s108
    %p112 = scmp.eq.s32.totalorder %s25, 0
    %p113 = por %p111, %p112
    %p114 = scmp.ne.s32.totalorder %s106, %s108
    %p115 = scmp.eq.s32.totalorder %s30, 1
    %p116 = por %p114, %p115
    %p117 = scmp.ne.s32.totalorder %s108, %s109
    %p118 = scmp.eq.s32.totalorder %s30, 0
    %p119 = por %p117, %p118
    %p120 = scmp.ne.s32.totalorder %s108, %s109
    %p121 = scmp.eq.s32.totalorder %s31, 1
    %p122 = por %p120, %p121
    %p124 = scmp.ne.s32.totalorder %s109, %s123
    %p125 = scmp.eq.s32.totalorder %s31, 0
    %p126 = por %p124, %p125
    %s128 = sadd.s32 %s127, 1
    %p131 = scmp.eq.s32.totalorder %s25, 1
    %p132 = scmp.ne.s32.totalorder %s127, %s129
    %p133 = scmp.eq.s32.totalorder %s25, 0
    %p134 = por %p132, %p133
    %p135 = scmp.ne.s32.totalorder %s127, %s129
    %p136 = scmp.eq.s32.totalorder %s30, 1
    %p137 = por %p135, %p136
    %p138 = scmp.ne.s32.totalorder %s129, %s130
    %p139 = scmp.eq.s32.totalorder %s30, 0
    %p140 = por %p138, %p139
    %p141 = scmp.ne.s32.totalorder %s129, %s130
    %p142 = scmp.eq.s32.totalorder %s31, 1
    %p143 = por %p141, %p142
    %p145 = scmp.ne.s32.totalorder %s130, %s144
    %p146 = scmp.eq.s32.totalorder %s31, 0
    %p147 = por %p145, %p146
    %s149 = sadd.s32 %s148, 1
    %p152 = scmp.eq.s32.totalorder %s25, 1
    %p153 = scmp.ne.s32.totalorder %s148, %s150
    %p154 = scmp.eq.s32.totalorder %s25, 0
    %p155 = por %p153, %p154
    %p156 = scmp.ne.s32.totalorder %s148, %s150
    %p157 = scmp.eq.s32.totalorder %s30, 1
    %p158 = por %p156, %p157
    %p159 = scmp.ne.s32.totalorder %s150, %s151
    %p160 = scmp.eq.s32.totalorder %s30, 0
    %p161 = por %p159, %p160
    %p162 = scmp.ne.s32.totalorder %s150, %s151
    %p163 = scmp.eq.s32.totalorder %s31, 1
    %p164 = por %p162, %p163
    %p166 = scmp.ne.s32.totalorder %s151, %s165
    %p167 = scmp.eq.s32.totalorder %s31, 0
    %p168 = por %p166, %p167
    %s170 = sadd.s32 %s169, 1
    %p173 = scmp.eq.s32.totalorder %s25, 1
    %p174 = scmp.ne.s32.totalorder %s169, %s171
    %p175 = scmp.eq.s32.totalorder %s25, 0
    %p176 = por %p174, %p175
    %p177 = scmp.ne.s32.totalorder %s169, %s171
    %p178 = scmp.eq.s32.totalorder %s30, 1
    %p179 = por %p177, %p178
    %p180 = scmp.ne.s32.totalorder %s171, %s172
    %p181 = scmp.eq.s32.totalorder %s30, 0
    %p182 = por %p180, %p181
    %p183 = scmp.ne.s32.totalorder %s171, %s172
    %p184 = scmp.eq.s32.totalorder %s31, 1
    %p185 = por %p183, %p184
    %p187 = scmp.ne.s32.totalorder %s172, %s186
    %p188 = scmp.eq.s32.totalorder %s31, 0
    %p189 = por %p187, %p188
    %s191 = sadd.s32 %s190, 1
    %p194 = scmp.eq.s32.totalorder %s25, 1
    %p195 = scmp.ne.s32.totalorder %s190, %s192
    %p196 = scmp.eq.s32.totalorder %s25, 0
    %p197 = por %p195, %p196
    %p198 = scmp.ne.s32.totalorder %s190, %s192
    %p199 = scmp.eq.s32.totalorder %s30, 1
    %p200 = por %p198, %p199
    %p201 = scmp.ne.s32.totalorder %s192, %s193
    %p202 = scmp.eq.s32.totalorder %s30, 0
    %p203 = por %p201, %p202
    %p204 = scmp.ne.s32.totalorder %s192, %s193
    %p205 = scmp.eq.s32.totalorder %s31, 1
    %p206 = por %p204, %p205
    %p208 = scmp.ne.s32.totalorder %s193, %s207
    %p209 = scmp.eq.s32.totalorder %s31, 0
    %p210 = por %p208, %p209
    %s212 = sadd.s32 %s211, 1
    %p215 = scmp.eq.s32.totalorder %s25, 1
    %p216 = scmp.ne.s32.totalorder %s211, %s213
    %p217 = scmp.eq.s32.totalorder %s25, 0
    %p218 = por %p216, %p217
    %p219 = scmp.ne.s32.totalorder %s211, %s213
    %p220 = scmp.eq.s32.totalorder %s30, 1
    %p221 = por %p219, %p220
    %p222 = scmp.ne.s32.totalorder %s213, %s214
    %p223 = scmp.eq.s32.totalorder %s30, 0
    %p224 = por %p222, %p223
    %p225 = scmp.ne.s32.totalorder %s213, %s214
    %p226 = scmp.eq.s32.totalorder %s31, 1
    %p227 = por %p225, %p226
    %p229 = scmp.ne.s32.totalorder %s214, %s228
    %p230 = scmp.eq.s32.totalorder %s31, 0
    %p231 = por %p229, %p230
    %s233 = sadd.s32 %s232, 1
    %p236 = scmp.eq.s32.totalorder %s25, 1
    %p237 = scmp.ne.s32.totalorder %s232, %s234
    %p238 = scmp.eq.s32.totalorder %s25, 0
    %p239 = por %p237, %p238
    %p240 = scmp.ne.s32.totalorder %s232, %s234
    %p241 = scmp.eq.s32.totalorder %s30, 1
    %p242 = por %p240, %p241
    %p243 = scmp.ne.s32.totalorder %s234, %s235
    %p244 = scmp.eq.s32.totalorder %s30, 0
    %p245 = por %p243, %p244
    %p246 = scmp.ne.s32.totalorder %s234, %s235
    %p247 = scmp.eq.s32.totalorder %s31, 1
    %p248 = por %p246, %p247
    %p250 = scmp.ne.s32.totalorder %s235, %s249
    %p251 = scmp.eq.s32.totalorder %s31, 0
    %p252 = por %p250, %p251
    %s254 = sadd.s32 %s253, 1
    %p257 = scmp.eq.s32.totalorder %s25, 1
    %p258 = scmp.ne.s32.totalorder %s253, %s255
    %p259 = scmp.eq.s32.totalorder %s25, 0
    %p260 = por %p258, %p259
    %p261 = scmp.ne.s32.totalorder %s253, %s255
    %p262 = scmp.eq.s32.totalorder %s30, 1
    %p263 = por %p261, %p262
    %p264 = scmp.ne.s32.totalorder %s255, %s256
    %p265 = scmp.eq.s32.totalorder %s30, 0
    %p266 = por %p264, %p265
    %p267 = scmp.ne.s32.totalorder %s255, %s256
    %p268 = scmp.eq.s32.totalorder %s31, 1
    %p269 = por %p267, %p268
    %p271 = scmp.ne.s32.totalorder %s256, %s270
    %p272 = scmp.eq.s32.totalorder %s31, 0
    %p273 = por %p271, %p272
    %s275 = sadd.s32 %s274, 1
    %p278 = scmp.eq.s32.totalorder %s25, 1
    %p279 = scmp.ne.s32.totalorder %s274, %s276
    %p280 = scmp.eq.s32.totalorder %s25, 0
    %p281 = por %p279, %p280
    %p282 = scmp.ne.s32.totalorder %s274, %s276
    %p283 = scmp.eq.s32.totalorder %s30, 1
    %p284 = por %p282, %p283
    %p285 = scmp.ne.s32.totalorder %s276, %s277
    %p286 = scmp.eq.s32.totalorder %s30, 0
    %p287 = por %p285, %p286
    %p288 = scmp.ne.s32.totalorder %s276, %s277
    %p289 = scmp.eq.s32.totalorder %s31, 1
    %p290 = por %p288, %p289
    %p292 = scmp.ne.s32.totalorder %s277, %s291
    %p293 = scmp.eq.s32.totalorder %s31, 0
    %p294 = por %p292, %p293
    %s296 = sadd.s32 %s295, 1
    %p299 = scmp.eq.s32.totalorder %s25, 1
    %p300 = scmp.ne.s32.totalorder %s295, %s297
    %p301 = scmp.eq.s32.totalorder %s25, 0
    %p302 = por %p300, %p301
    %p303 = scmp.ne.s32.totalorder %s295, %s297
    %p304 = scmp.eq.s32.totalorder %s30, 1
    %p305 = por %p303, %p304
    %p306 = scmp.ne.s32.totalorder %s297, %s298
    %p307 = scmp.eq.s32.totalorder %s30, 0
    %p308 = por %p306, %p307
    %p309 = scmp.ne.s32.totalorder %s297, %s298
    %p310 = scmp.eq.s32.totalorder %s31, 1
    %p311 = por %p309, %p310
    %p313 = scmp.ne.s32.totalorder %s298, %s312
    %p314 = scmp.eq.s32.totalorder %s31, 0
    %p315 = por %p313, %p314
    %s317 = sadd.s32 %s316, 1
    %p320 = scmp.eq.s32.totalorder %s25, 1
    %p321 = scmp.ne.s32.totalorder %s316, %s318
    %p322 = scmp.eq.s32.totalorder %s25, 0
    %p323 = por %p321, %p322
    %p324 = scmp.ne.s32.totalorder %s316, %s318
    %p325 = scmp.eq.s32.totalorder %s30, 1
    %p326 = por %p324, %p325
    %p327 = scmp.ne.s32.totalorder %s318, %s319
    %p328 = scmp.eq.s32.totalorder %s30, 0
    %p329 = por %p327, %p328
    %p330 = scmp.ne.s32.totalorder %s318, %s319
    %p331 = scmp.eq.s32.totalorder %s31, 1
    %p332 = por %p330, %p331
    %p334 = scmp.ne.s32.totalorder %s319, %s333
    %p335 = scmp.eq.s32.totalorder %s31, 0
    %p336 = por %p334, %p335
    %s338 = sadd.s32 %s337, 1
    %p341 = scmp.eq.s32.totalorder %s25, 1
    %p342 = scmp.ne.s32.totalorder %s337, %s339
    %p343 = scmp.eq.s32.totalorder %s25, 0
    %p344 = por %p342, %p343
    %p345 = scmp.ne.s32.totalorder %s337, %s339
    %p346 = scmp.eq.s32.totalorder %s30, 1
    %p347 = por %p345, %p346
    %p348 = scmp.ne.s32.totalorder %s339, %s340
    %p349 = scmp.eq.s32.totalorder %s30, 0
    %p350 = por %p348, %p349
    %p351 = scmp.ne.s32.totalorder %s339, %s340
    %p352 = scmp.eq.s32.totalorder %s31, 1
    %p353 = por %p351, %p352
    %p355 = scmp.ne.s32.totalorder %s340, %s354
    %p356 = scmp.eq.s32.totalorder %s31, 0
    %p357 = por %p355, %p356
    %s359 = sadd.s32 %s358, 1
    %p362 = scmp.eq.s32.totalorder %s25, 1
    %p363 = scmp.ne.s32.totalorder %s358, %s360
    %p364 = scmp.eq.s32.totalorder %s25, 0
    %p365 = por %p363, %p364
    %p366 = scmp.ne.s32.totalorder %s358, %s360
    %p367 = scmp.eq.s32.totalorder %s30, 1
    %p368 = por %p366, %p367
    %p369 = scmp.ne.s32.totalorder %s360, %s361
    %p370 = scmp.eq.s32.totalorder %s30, 0
    %p371 = por %p369, %p370
    %p372 = scmp.ne.s32.totalorder %s360, %s361
    %p373 = scmp.eq.s32.totalorder %s31, 1
    %p374 = por %p372, %p373
    %p376 = scmp.ne.s32.totalorder %s361, %s375
    %p377 = scmp.eq.s32.totalorder %s31, 0
    %p378 = por %p376, %p377
    %s380 = sadd.s32 %s379, 1
    %p383 = scmp.eq.s32.totalorder %s25, 1
    %p384 = scmp.ne.s32.totalorder %s379, %s381
    %p385 = scmp.eq.s32.totalorder %s25, 0
    %p386 = por %p384, %p385
    %p387 = scmp.ne.s32.totalorder %s379, %s381
    %p388 = scmp.eq.s32.totalorder %s30, 1
    %p389 = por %p387, %p388
    %p390 = scmp.ne.s32.totalorder %s381, %s382
    %p391 = scmp.eq.s32.totalorder %s30, 0
    %p392 = por %p390, %p391
    %p393 = scmp.ne.s32.totalorder %s381, %s382
    %p394 = scmp.eq.s32.totalorder %s31, 1
    %p395 = por %p393, %p394
    %p397 = scmp.ne.s32.totalorder %s382, %s396
    %p398 = scmp.eq.s32.totalorder %s31, 0
    %p399 = por %p397, %p398
    %s401 = sadd.s32 %s400, 1
    %p404 = scmp.eq.s32.totalorder %s25, 1
    %p405 = scmp.ne.s32.totalorder %s400, %s402
    %p406 = scmp.eq.s32.totalorder %s25, 0
    %p407 = por %p405, %p406
    %p408 = scmp.ne.s32.totalorder %s400, %s402
    %p409 = scmp.eq.s32.totalorder %s30, 1
    %p410 = por %p408, %p409
    %p411 = scmp.ne.s32.totalorder %s402, %s403
    %p412 = scmp.eq.s32.totalorder %s30, 0
    %p413 = por %p411, %p412
    %p414 = scmp.ne.s32.totalorder %s402, %s403
    %p415 = scmp.eq.s32.totalorder %s31, 1
    %p416 = por %p414, %p415
    %p418 = scmp.ne.s32.totalorder %s403, %s417
    %p419 = scmp.eq.s32.totalorder %s31, 0
    %p420 = por %p418, %p419
    %s422 = sadd.s32 %s421, 1
    %p425 = scmp.eq.s32.totalorder %s25, 1
    %p426 = scmp.ne.s32.totalorder %s421, %s423
    %p427 = scmp.eq.s32.totalorder %s25, 0
    %p428 = por %p426, %p427
    %p429 = scmp.ne.s32.totalorder %s421, %s423
    %p430 = scmp.eq.s32.totalorder %s30, 1
    %p431 = por %p429, %p430
    %p432 = scmp.ne.s32.totalorder %s423, %s424
    %p433 = scmp.eq.s32.totalorder %s30, 0
    %p434 = por %p432, %p433
    %p435 = scmp.ne.s32.totalorder %s423, %s424
    %p436 = scmp.eq.s32.totalorder %s31, 1
    %p437 = por %p435, %p436
    %p439 = scmp.ne.s32.totalorder %s424, %s438
    %p440 = scmp.eq.s32.totalorder %s31, 0
    %p441 = por %p439, %p440
    %s442 = ssub.s32 %s25, %s32
    %p443 = scmp.eq.s32.totalorder %s442, 0
    %s445 = sadd.s32 %s444, 1
    %s446 = scalar_select %p443, %s444, %s445
    %p449 = pneg %p443
    %p450 = scmp.eq.s32.totalorder %s25, 1
    %p451 = por %p449, %p450
    %p452 = scmp.ne.s32.totalorder %s444, %s447
    %p453 = scmp.eq.s32.totalorder %s25, 0
    %p454 = por %p452, %p453
    %p455 = scmp.ne.s32.totalorder %s444, %s447
    %p456 = scmp.eq.s32.totalorder %s30, 1
    %p457 = por %p455, %p456
    %p458 = scmp.ne.s32.totalorder %s447, %s448
    %p459 = scmp.eq.s32.totalorder %s30, 0
    %p460 = por %p458, %p459
    %p461 = scmp.ne.s32.totalorder %s447, %s448
    %p462 = scmp.eq.s32.totalorder %s31, 1
    %p463 = por %p461, %p462
    %p465 = scmp.ne.s32.totalorder %s448, %s464
    %p466 = scmp.eq.s32.totalorder %s31, 0
    %p467 = por %p465, %p466
    %p468 = scmp.le.s32.totalorder 1, %s25
    %p469 = scmp.lt.s32.totalorder %s25, 3
    %p470 = pnand %p468, %p469
    %p471 = pneg %p470
    // Predicated region
    $region9: #{low_catvit_forward.1} parent=5 // pred_check
      _
    $region10: #{low_catvit_forward.1} parent=5 // pred_check_branch
      %473 = sbr.rel (%p470) target = $region12
    $region11: #{low_catvit_forward.1} parent=5 // pred_region
      %s474 = ssub.s32 %s25, 1
      // Predicated region
      $region13: #{low_catvit_forward.1} parent=11 // pred_check
        %p475 = pneg %p98
      $region14: #{low_catvit_forward.1} parent=11 // pred_check_branch
        %477 = sbr.rel (%p475) target = $region16
      $region15: #{low_catvit_forward.1} parent=11 // pred_region
        _
      $region16: #{low_catvit_forward.1} parent=11 // pred_fallthru
        _
      // Predicated region
      $region17: #{low_catvit_forward.1} parent=11 // pred_check
        %p478 = pneg %p119
      $region18: #{low_catvit_forward.1} parent=11 // pred_check_branch
        %480 = sbr.rel (%p478) target = $region20
      $region19: #{low_catvit_forward.1} parent=11 // pred_region
        _
      $region20: #{low_catvit_forward.1} parent=11 // pred_fallthru
        _
      // Predicated region
      $region21: #{low_catvit_forward.1} parent=11 // pred_check
        %p481 = pneg %p140
      $region22: #{low_catvit_forward.1} parent=11 // pred_check_branch
        %483 = sbr.rel (%p481) target = $region24
      $region23: #{low_catvit_forward.1} parent=11 // pred_region
        _
      $region24: #{low_catvit_forward.1} parent=11 // pred_fallthru
        _
      // Predicated region
      $region25: #{low_catvit_forward.1} parent=11 // pred_check
        %p484 = pneg %p161
      $region26: #{low_catvit_forward.1} parent=11 // pred_check_branch
        %486 = sbr.rel (%p484) target = $region28
      $region27: #{low_catvit_forward.1} parent=11 // pred_region
        _
      $region28: #{low_catvit_forward.1} parent=11 // pred_fallthru
        _
      // Predicated region
      $region29: #{low_catvit_forward.1} parent=11 // pred_check
        %p487 = pneg %p182
      $region30: #{low_catvit_forward.1} parent=11 // pred_check_branch
        %489 = sbr.rel (%p487) target = $region32
      $region31: #{low_catvit_forward.1} parent=11 // pred_region
        _
      $region32: #{low_catvit_forward.1} parent=11 // pred_fallthru
        _
      // Predicated region
      $region33: #{low_catvit_forward.1} parent=11 // pred_check
        %p490 = pneg %p203
      $region34: #{low_catvit_forward.1} parent=11 // pred_check_branch
        %492 = sbr.rel (%p490) target = $region36
      $region35: #{low_catvit_forward.1} parent=11 // pred_region
        _
      $region36: #{low_catvit_forward.1} parent=11 // pred_fallthru
        _
      // Predicated region
      $region37: #{low_catvit_forward.1} parent=11 // pred_check
        %p493 = pneg %p224
      $region38: #{low_catvit_forward.1} parent=11 // pred_check_branch
        %495 = sbr.rel (%p493) target = $region40
      $region39: #{low_catvit_forward.1} parent=11 // pred_region
        _
      $region40: #{low_catvit_forward.1} parent=11 // pred_fallthru
        _
      // Predicated region
      $region41: #{low_catvit_forward.1} parent=11 // pred_check
        %p496 = pneg %p245
      $region42: #{low_catvit_forward.1} parent=11 // pred_check_branch
        %498 = sbr.rel (%p496) target = $region44
      $region43: #{low_catvit_forward.1} parent=11 // pred_region
        _
      $region44: #{low_catvit_forward.1} parent=11 // pred_fallthru
        _
      // Predicated region
      $region45: #{low_catvit_forward.1} parent=11 // pred_check
        %p499 = pneg %p266
      $region46: #{low_catvit_forward.1} parent=11 // pred_check_branch
        %501 = sbr.rel (%p499) target = $region48
      $region47: #{low_catvit_forward.1} parent=11 // pred_region
        _
      $region48: #{low_catvit_forward.1} parent=11 // pred_fallthru
        _
      // Predicated region
      $region49: #{low_catvit_forward.1} parent=11 // pred_check
        %p502 = pneg %p287
      $region50: #{low_catvit_forward.1} parent=11 // pred_check_branch
        %504 = sbr.rel (%p502) target = $region52
      $region51: #{low_catvit_forward.1} parent=11 // pred_region
        _
      $region52: #{low_catvit_forward.1} parent=11 // pred_fallthru
        _
      // Predicated region
      $region53: #{low_catvit_forward.1} parent=11 // pred_check
        %p505 = pneg %p308
      $region54: #{low_catvit_forward.1} parent=11 // pred_check_branch
        %507 = sbr.rel (%p505) target = $region56
      $region55: #{low_catvit_forward.1} parent=11 // pred_region
        _
      $region56: #{low_catvit_forward.1} parent=11 // pred_fallthru
        _
      // Predicated region
      $region57: #{low_catvit_forward.1} parent=11 // pred_check
        %p508 = pneg %p329
      $region58: #{low_catvit_forward.1} parent=11 // pred_check_branch
        %510 = sbr.rel (%p508) target = $region60
      $region59: #{low_catvit_forward.1} parent=11 // pred_region
        _
      $region60: #{low_catvit_forward.1} parent=11 // pred_fallthru
        _
      // Predicated region
      $region61: #{low_catvit_forward.1} parent=11 // pred_check
        %p511 = pneg %p350
      $region62: #{low_catvit_forward.1} parent=11 // pred_check_branch
        %513 = sbr.rel (%p511) target = $region64
      $region63: #{low_catvit_forward.1} parent=11 // pred_region
        _
      $region64: #{low_catvit_forward.1} parent=11 // pred_fallthru
        _
      // Predicated region
      $region65: #{low_catvit_forward.1} parent=11 // pred_check
        %p514 = pneg %p371
      $region66: #{low_catvit_forward.1} parent=11 // pred_check_branch
        %516 = sbr.rel (%p514) target = $region68
      $region67: #{low_catvit_forward.1} parent=11 // pred_region
        _
      $region68: #{low_catvit_forward.1} parent=11 // pred_fallthru
        _
      // Predicated region
      $region69: #{low_catvit_forward.1} parent=11 // pred_check
        %p517 = pneg %p392
      $region70: #{low_catvit_forward.1} parent=11 // pred_check_branch
        %519 = sbr.rel (%p517) target = $region72
      $region71: #{low_catvit_forward.1} parent=11 // pred_region
        _
      $region72: #{low_catvit_forward.1} parent=11 // pred_fallthru
        _
      // Predicated region
      $region73: #{low_catvit_forward.1} parent=11 // pred_check
        %p520 = pneg %p413
      $region74: #{low_catvit_forward.1} parent=11 // pred_check_branch
        %522 = sbr.rel (%p520) target = $region76
      $region75: #{low_catvit_forward.1} parent=11 // pred_region
        _
      $region76: #{low_catvit_forward.1} parent=11 // pred_fallthru
        _
      // Predicated region
      $region77: #{low_catvit_forward.1} parent=11 // pred_check
        %p523 = pneg %p434
      $region78: #{low_catvit_forward.1} parent=11 // pred_check_branch
        %525 = sbr.rel (%p523) target = $region80
      $region79: #{low_catvit_forward.1} parent=11 // pred_region
        _
      $region80: #{low_catvit_forward.1} parent=11 // pred_fallthru
        _
    $region12: #{low_catvit_forward.1} parent=5 // pred_fallthru
      _
    %p526 = scmp.lt.s32.totalorder %s25, 2
    // Predicated region
    $region81: #{low_catvit_forward.1} parent=5 // pred_check
      %p527 = pneg %p526
    $region82: #{low_catvit_forward.1} parent=5 // pred_check_branch
      %529 = sbr.rel (%p527) target = $region84
    $region83: #{low_catvit_forward.1} parent=5 // pred_region
      // Predicated region
      $region85: #{low_catvit_forward.1} parent=83 // pred_check
        %p530 = pneg %p45
      $region86: #{low_catvit_forward.1} parent=83 // pred_check_branch
        %532 = sbr.rel (%p530) target = $region88
      $region87: #{low_catvit_forward.1} parent=83 // pred_region
        %p533 = scmp.lt.s32.totalorder %s25, 1
        %s534 = scalar_select %p533, %s25, 1
        %s535 = smul.addr %s534, 8
        %s536 = smul.addr %s535, 8
        %s537 = scalar_lea.vmem %s0, %s536
      $region88: #{low_catvit_forward.1} parent=83 // pred_fallthru
        _
      // Predicated region
      $region89: #{low_catvit_forward.1} parent=83 // pred_check
        %p538 = pneg %p71
      $region90: #{low_catvit_forward.1} parent=83 // pred_check_branch
        %540 = sbr.rel (%p538) target = $region92
      $region91: #{low_catvit_forward.1} parent=83 // pred_region
        %p541 = scmp.lt.s32.totalorder %s25, 1
        %s542 = scalar_select %p541, %s25, 1
        %s543 = smul.addr %s542, 8
        %s544 = smul.addr %s543, 8
        %s545 = scalar_lea.vmem %s1, %s544
      $region92: #{low_catvit_forward.1} parent=83 // pred_fallthru
        _
    $region84: #{low_catvit_forward.1} parent=5 // pred_fallthru
      _
    %p546 = scmp.le.s32.totalorder 1, %s25
    %p547 = scmp.lt.s32.totalorder %s25, 3
    %p548 = pnand %p546, %p547
    %p549 = pneg %p548
    // Predicated region
    $region93: #{low_catvit_forward.1} parent=5 // pred_check
      _
    $region94: #{low_catvit_forward.1} parent=5 // pred_check_branch
      %551 = sbr.rel (%p548) target = $region96
    $region95: #{low_catvit_forward.1} parent=5 // pred_region
      %s552 = ssub.s32 %s25, 1
      %p553 = scmp.lt.s32.totalorder %s30, 1
      %s554 = scalar_select %p553, %s30, 1
      %s555 = smul.addr %s554, 8
      %s556 = smul.addr %s555, 8
      %s557 = scalar_lea.vmem %s0, %s556
      %p558 = pneg %p51
      %p559 = pneg %p48
      %p560 = scmp.lt.s32.totalorder %s30, 1
      %s561 = scalar_select %p560, %s30, 1
      %s562 = smul.addr %s561, 8
      %s563 = smul.addr %s562, 8
      %s564 = scalar_lea.vmem %s1, %s563
      %p565 = pneg %p77
      %p566 = pneg %p74
      %p567 = pneg %p98
      %p568 = pneg %p95
      %p569 = pneg %p119
      %p570 = pneg %p116
      %p571 = pneg %p140
      %p572 = pneg %p137
      %p573 = pneg %p161
      %p574 = pneg %p158
      %p575 = pneg %p182
      %p576 = pneg %p179
      %p577 = pneg %p203
      %p578 = pneg %p200
      %p579 = pneg %p224
      %p580 = pneg %p221
      %p581 = pneg %p245
      %p582 = pneg %p242
      %p583 = pneg %p266
      %p584 = pneg %p263
      %p585 = pneg %p287
      %p586 = pneg %p284
      %p587 = pneg %p308
      %p588 = pneg %p305
      %p589 = pneg %p329
      %p590 = pneg %p326
      %p591 = pneg %p350
      %p592 = pneg %p347
      %p593 = pneg %p371
      %p594 = pneg %p368
      %p595 = pneg %p392
      %p596 = pneg %p389
      %p597 = pneg %p413
      %p598 = pneg %p410
      %p599 = pneg %p434
      %p600 = pneg %p431
      %p601 = pneg %p460
      %p602 = pneg %p457
      %p603 = scmp.lt.s32.totalorder %s30, 1
      %s604 = scalar_select %p603, %s30, 1
      %s605 = smul.addr %s604, 8
      %s606 = smul.addr %s605, 8
      %s607 = scalar_lea.vmem %s19, %s606
      %p608 = scmp.lt.s32.totalorder %s30, 1
      %s609 = scalar_select %p608, %s30, 1
      %s610 = smul.addr %s609, 8
      %s611 = smul.addr %s610, 8
      %s612 = scalar_lea.vmem %s0, %s611
      %p613 = scmp.lt.s32.totalorder %s30, 1
      %s614 = scalar_select %p613, %s30, 1
      %s615 = smul.addr %s614, 8
      %s616 = smul.addr %s615, 8
      %s617 = scalar_lea.vmem %s1, %s616
      %p618 = scmp.lt.s32.totalorder %s30, 1
      %s619 = scalar_select %p618, %s30, 1
      %s620 = smul.addr %s619, 8
      %s621 = smul.addr %s620, 8
      %s622 = scalar_lea.vmem %s19, %s621
      %v623 = vld [vmem:[%s612] sm:$0xff]
      %v624 = vld [vmem:[%s612 + $0x8] sm:$0xff]
      %v625 = vld [vmem:[%s612 + $0x10] sm:$0xff]
      %v626 = vld [vmem:[%s612 + $0x18] sm:$0xff]
      %v627 = vld [vmem:[%s612 + $0x20] sm:$0xff]
      %v628 = vld [vmem:[%s612 + $0x28] sm:$0xff]
      %v629 = vld [vmem:[%s612 + $0x30] sm:$0xff]
      %v630 = vld [vmem:[%s612 + $0x38] sm:$0xff]
      %v631 = vld [vmem:[%s2] sm:$0xff]
      %v632 = vld [vmem:[%s2 + $0x8] sm:$0xff]
      %v633 = vld [vmem:[%s2 + $0x10] sm:$0xff]
      %v634 = vld [vmem:[%s2 + $0x18] sm:$0xff]
      %v635 = vld [vmem:[%s2 + $0x20] sm:$0xff]
      %v636 = vld [vmem:[%s2 + $0x28] sm:$0xff]
      %v637 = vld [vmem:[%s2 + $0x30] sm:$0xff]
      %v638 = vld [vmem:[%s2 + $0x38] sm:$0xff]
      %v639 = vadd.f32 %v623, %v631
      %v640 = vadd.f32 %v624, %v632
      %v641 = vadd.f32 %v625, %v633
      %v642 = vadd.f32 %v626, %v634
      %v643 = vadd.f32 %v627, %v635
      %v644 = vadd.f32 %v628, %v636
      %v645 = vadd.f32 %v629, %v637
      %v646 = vadd.f32 %v630, %v638
      %v647 = vadd.f32 %v639, %v641
      %v648 = vadd.f32 %v647, %v643
      %v649 = vadd.f32 %v648, %v645
      %v650 = vrot.slane %v649, 4
      %v651 = vadd.f32 %v649, %v650
      %v652 = vrot.slane %v651, 2
      %v653 = vadd.f32 %v651, %v652
      %v654 = vrot.slane %v653, 1
      %v655 = vadd.f32 %v653, %v654
      %v656 = vadd.f32 %v640, %v642
      %v657 = vadd.f32 %v656, %v644
      %v658 = vadd.f32 %v657, %v646
      %v659 = vrot.slane %v658, 4
      %v660 = vadd.f32 %v658, %v659
      %v661 = vrot.slane %v660, 2
      %v662 = vadd.f32 %v660, %v661
      %v663 = vrot.slane %v662, 1
      %v664 = vadd.f32 %v662, %v663
      %v665 = vrcp.pop 32.0
      %v666 = vmul.f32 %v655, %v665
      %v667 = vmul.f32 %v664, %v665
      %v668 = vsub.f32 %v639, %v666
      %v669 = vsub.f32 %v640, %v667
      %v670 = vsub.f32 %v641, %v666
      %v671 = vsub.f32 %v642, %v667
      %v672 = vsub.f32 %v643, %v666
      %v673 = vsub.f32 %v644, %v667
      %v674 = vsub.f32 %v645, %v666
      %v675 = vsub.f32 %v646, %v667
      %v676 = vmul.f32 %v668, %v668
      %v677 = vmul.f32 %v669, %v669
      %v678 = vmul.f32 %v670, %v670
      %v679 = vmul.f32 %v671, %v671
      %v680 = vmul.f32 %v672, %v672
      %v681 = vmul.f32 %v673, %v673
      %v682 = vmul.f32 %v674, %v674
      %v683 = vmul.f32 %v675, %v675
      %v684 = vadd.f32 %v676, %v678
      %v685 = vadd.f32 %v684, %v680
      %v686 = vadd.f32 %v685, %v682
      %v687 = vrot.slane %v686, 4
      %v688 = vadd.f32 %v686, %v687
      %v689 = vrot.slane %v688, 2
      %v690 = vadd.f32 %v688, %v689
      %v691 = vrot.slane %v690, 1
      %v692 = vadd.f32 %v690, %v691
      %v693 = vadd.f32 %v677, %v679
      %v694 = vadd.f32 %v693, %v681
      %v695 = vadd.f32 %v694, %v683
      %v696 = vrot.slane %v695, 4
      %v697 = vadd.f32 %v695, %v696
      %v698 = vrot.slane %v697, 2
      %v699 = vadd.f32 %v697, %v698
      %v700 = vrot.slane %v699, 1
      %v701 = vadd.f32 %v699, %v700
      %v702 = vmul.f32 %v692, %v665
      %v703 = vmul.f32 %v701, %v665
      %v704 = vadd.f32 %v702, 1e-05
      %v705 = vadd.f32 %v703, 1e-05
      %v706 = vrsqrt.pop %v704
      %v707 = vrsqrt.pop %v705
      %v708 = vmul.f32 %v668, %v706
      %v709 = vmul.f32 %v669, %v707
      %v710 = vmul.f32 %v670, %v706
      %v711 = vmul.f32 %v671, %v707
      %v712 = vmul.f32 %v672, %v706
      %v713 = vmul.f32 %v673, %v707
      %v714 = vmul.f32 %v674, %v706
      %v715 = vmul.f32 %v675, %v707
      %v716 = vld [vmem:[%s3] sm:$0xff]
      %v717 = vld [vmem:[%s3 + $0x8] sm:$0xff]
      %v718 = vld [vmem:[%s3 + $0x10] sm:$0xff]
      %v719 = vld [vmem:[%s3 + $0x18] sm:$0xff]
      %721 = vset.pattern.permute.xlu0 0
      %722 = vperm.xlu0 %721, %v716
      %v723 = vpop.permute.xlu0 %722
      %726 = vset.pattern.permute.xlu0 0
      %727 = vperm.xlu0 %726, %v717
      %v728 = vpop.permute.xlu0 %727
      %731 = vset.pattern.permute.xlu0 0
      %732 = vperm.xlu0 %731, %v718
      %v733 = vpop.permute.xlu0 %732
      %736 = vset.pattern.permute.xlu0 0
      %737 = vperm.xlu0 %736, %v719
      %v738 = vpop.permute.xlu0 %737
      %v740 = vmul.f32 %v708, %v723
      %v741 = vmul.f32 %v709, %v723
      %v742 = vmul.f32 %v710, %v728
      %v743 = vmul.f32 %v711, %v728
      %v744 = vmul.f32 %v712, %v733
      %v745 = vmul.f32 %v713, %v733
      %v746 = vmul.f32 %v714, %v738
      %v747 = vmul.f32 %v715, %v738
      %v748 = vld [vmem:[%s4] sm:$0xff]
      %v749 = vld [vmem:[%s4 + $0x8] sm:$0xff]
      %v750 = vld [vmem:[%s4 + $0x10] sm:$0xff]
      %v751 = vld [vmem:[%s4 + $0x18] sm:$0xff]
      %753 = vset.pattern.permute.xlu0 0
      %754 = vperm.xlu0 %753, %v748
      %v755 = vpop.permute.xlu0 %754
      %758 = vset.pattern.permute.xlu0 0
      %759 = vperm.xlu0 %758, %v749
      %v760 = vpop.permute.xlu0 %759
      %763 = vset.pattern.permute.xlu0 0
      %764 = vperm.xlu0 %763, %v750
      %v765 = vpop.permute.xlu0 %764
      %768 = vset.pattern.permute.xlu0 0
      %769 = vperm.xlu0 %768, %v751
      %v770 = vpop.permute.xlu0 %769
      %v772 = vadd.f32 %v740, %v755
      %v773 = vadd.f32 %v741, %v755
      %v774 = vadd.f32 %v742, %v760
      %v775 = vadd.f32 %v743, %v760
      %v776 = vadd.f32 %v744, %v765
      %v777 = vadd.f32 %v745, %v765
      %v778 = vadd.f32 %v746, %v770
      %v779 = vadd.f32 %v747, %v770
      %v780 = vld [vmem:[%s5] sm:$0xff]
      %v781 = vld [vmem:[%s5 + $0x8] sm:$0xff]
      %v782 = vld [vmem:[%s5 + $0x10] sm:$0xff]
      %v783 = vld [vmem:[%s5 + $0x18] sm:$0xff]
      %v784 = vld [vmem:[%s5 + $0x20] sm:$0xff]
      %v785 = vld [vmem:[%s5 + $0x28] sm:$0xff]
      %v786 = vld [vmem:[%s5 + $0x30] sm:$0xff]
      %v787 = vld [vmem:[%s5 + $0x38] sm:$0xff]
      %v788 = vld [vmem:[%s5 + $0x40] sm:$0xff]
      %v789 = vld [vmem:[%s5 + $0x48] sm:$0xff]
      %v790 = vld [vmem:[%s5 + $0x50] sm:$0xff]
      %v791 = vld [vmem:[%s5 + $0x58] sm:$0xff]
      %v792 = vld [vmem:[%s6] sm:$0xff]
      %v793 = vld [vmem:[%s6 + $0x8] sm:$0xff]
      %v794 = vld [vmem:[%s6 + $0x10] sm:$0xff]
      %v795 = vld [vmem:[%s6 + $0x18] sm:$0xff]
      %v796 = vld [vmem:[%s6 + $0x20] sm:$0xff]
      %v797 = vld [vmem:[%s6 + $0x28] sm:$0xff]
      %v798 = vld [vmem:[%s6 + $0x30] sm:$0xff]
      %v799 = vld [vmem:[%s6 + $0x38] sm:$0xff]
      %v800 = vld [vmem:[%s6 + $0x40] sm:$0xff]
      %v801 = vld [vmem:[%s6 + $0x48] sm:$0xff]
      %v802 = vld [vmem:[%s6 + $0x50] sm:$0xff]
      %v803 = vld [vmem:[%s6 + $0x58] sm:$0xff]
      %805 = vset.pattern.permute.xlu0 0
      %806 = vperm.xlu0 %805, %v792
      %v807 = vpop.permute.xlu0 %806
      %810 = vset.pattern.permute.xlu0 0
      %811 = vperm.xlu0 %810, %v793
      %v812 = vpop.permute.xlu0 %811
      %815 = vset.pattern.permute.xlu0 0
      %816 = vperm.xlu0 %815, %v794
      %v817 = vpop.permute.xlu0 %816
      %820 = vset.pattern.permute.xlu0 0
      %821 = vperm.xlu0 %820, %v795
      %v822 = vpop.permute.xlu0 %821
      %825 = vset.pattern.permute.xlu0 0
      %826 = vperm.xlu0 %825, %v796
      %v827 = vpop.permute.xlu0 %826
      %830 = vset.pattern.permute.xlu0 0
      %831 = vperm.xlu0 %830, %v797
      %v832 = vpop.permute.xlu0 %831
      %835 = vset.pattern.permute.xlu0 0
      %836 = vperm.xlu0 %835, %v798
      %v837 = vpop.permute.xlu0 %836
      %840 = vset.pattern.permute.xlu0 0
      %841 = vperm.xlu0 %840, %v799
      %v842 = vpop.permute.xlu0 %841
      %845 = vset.pattern.permute.xlu0 0
      %846 = vperm.xlu0 %845, %v800
      %v847 = vpop.permute.xlu0 %846
      %850 = vset.pattern.permute.xlu0 0
      %851 = vperm.xlu0 %850, %v801
      %v852 = vpop.permute.xlu0 %851
      %855 = vset.pattern.permute.xlu0 0
      %856 = vperm.xlu0 %855, %v802
      %v857 = vpop.permute.xlu0 %856
      %860 = vset.pattern.permute.xlu0 0
      %861 = vperm.xlu0 %860, %v803
      %v862 = vpop.permute.xlu0 %861
      %vm864 = vcmask 261120
      %v866 = vsel %vm864, %v780, 0
      %v869 = vsel %vm864, %v781, 0
      %v872 = vsel %vm864, %v782, 0
      %v875 = vsel %vm864, %v783, 0
      %v878 = vsel %vm864, %v784, 0
      %v881 = vsel %vm864, %v785, 0
      %v884 = vsel %vm864, %v786, 0
      %v887 = vsel %vm864, %v787, 0
      %v890 = vsel %vm864, %v788, 0
      %v893 = vsel %vm864, %v789, 0
      %v896 = vsel %vm864, %v790, 0
      %v899 = vsel %vm864, %v791, 0
      %901 = vmatprep.subr.mxu0 0.0
      %902 = vmatpush1.msra.mxu0 0.0
      %903 = vmatprep.subr.mxu0 0.0
      %904 = vmatpush1.msra.mxu0 0.0
      %905 = vmatprep.subr.mxu0 0.0
      %906 = vmatpush1.msra.mxu0 0.0
      %907 = vmatprep.subr.mxu0 0.0
      %908 = vmatpush1.msra.mxu0 0.0
      %909 = vmatprep.subr.mxu0 0.0
      %910 = vmatpush1.msra.mxu0 0.0
      %911 = vmatprep.subr.mxu0 0.0
      %912 = vmatpush1.msra.mxu0 0.0
      %913 = vmatprep.subr.mxu0 0.0
      %914 = vmatpush1.msra.mxu0 0.0
      %915 = vmatprep.subr.mxu0 0.0
      %916 = vmatpush1.msra.mxu0 0.0
      %917 = vmatprep.subr.mxu0 0.0
      %918 = vmatpush1.msra.mxu0 0.0
      %919 = vmatprep.subr.mxu0 0.0
      %920 = vmatpush1.msra.mxu0 0.0
      %921 = vmatprep.subr.mxu0 0.0
      %922 = vmatpush1.msra.mxu0 0.0
      %923 = vmatprep.subr.mxu0 0.0
      %924 = vmatpush1.msra.mxu0 0.0
      %925 = vmatprep.subr.mxu0 %v779
      %926 = vmatpush1.msra.mxu0 %v778
      %927 = vmatprep.subr.mxu0 %v777
      %928 = vmatpush1.msra.mxu0 %v776
      %929 = vmatprep.subr.mxu0 %v775
      %930 = vmatpush1.msra.mxu0 %v774
      %931 = vmatprep.subr.mxu0 %v773
      %932 = vmatpush1.msra.mxu0 %v772
      %933 = vmatprep.subr.mxu0 0.0
      %934 = vmatpush2.msra.mxu0 0.0
      %935 = vmatprep.subr.mxu0 0.0
      %936 = vmatpush2.msra.mxu0 0.0
      %937 = vmatprep.subr.mxu0 0.0
      %938 = vmatpush2.msra.mxu0 0.0
      %939 = vmatprep.subr.mxu0 0.0
      %940 = vmatpush2.msra.mxu0 0.0
      %941 = vmatprep.subr.mxu0 0.0
      %942 = vmatpush2.msra.mxu0 0.0
      %943 = vmatprep.subr.mxu0 0.0
      %944 = vmatpush2.msra.mxu0 0.0
      %945 = vmatprep.subr.mxu0 0.0
      %946 = vmatpush2.msra.mxu0 0.0
      %947 = vmatprep.subr.mxu0 0.0
      %948 = vmatpush2.msra.mxu0 0.0
      %949 = vmatprep.subr.mxu0 0.0
      %950 = vmatpush2.msra.mxu0 0.0
      %951 = vmatprep.subr.mxu0 0.0
      %952 = vmatpush2.msra.mxu0 0.0
      %953 = vmatprep.subr.mxu0 0.0
      %954 = vmatpush2.msra.mxu0 0.0
      %955 = vmatprep.subr.mxu0 0.0
      %956 = vmatpush2.msra.mxu0 0.0
      %957 = vmatprep.subr.mxu0 0.0
      %958 = vmatpush2.msra.mxu0 0.0
      %959 = vmatprep.subr.mxu0 0.0
      %960 = vmatpush2.msra.mxu0 0.0
      %961 = vmatprep.subr.mxu0 0.0
      %962 = vmatpush2.msra.mxu0 0.0
      %963 = vmatprep.subr.mxu0 0.0
      %964 = vmatpush2.msra.mxu0 0.0
      %965 = vmatprep.mubr.f32.mxu0 0.0
      %966 = vmatmul.mubr.f32.gmra.mxu0 %v866
      %v967 = vpop.f32.mrf.mxu0
      %v968 = vadd.f32 %v807, %v967
      %v969 = vpop.f32.mrf.mxu0
      %v970 = vadd.f32 %v807, %v969
      %971 = vmatprep.mubr.f32.mxu0 0.0
      %972 = vmatmul.mubr.f32.gmra.mxu0 %v869
      %v973 = vpop.f32.mrf.mxu0
      %v974 = vadd.f32 %v812, %v973
      %v975 = vpop.f32.mrf.mxu0
      %v976 = vadd.f32 %v812, %v975
      %977 = vmatprep.mubr.f32.mxu0 0.0
      %978 = vmatmul.mubr.f32.gmra.mxu0 %v872
      %v979 = vpop.f32.mrf.mxu0
      %v980 = vadd.f32 %v817, %v979
      %v981 = vpop.f32.mrf.mxu0
      %v982 = vadd.f32 %v817, %v981
      %983 = vmatprep.mubr.f32.mxu0 0.0
      %984 = vmatmul.mubr.f32.gmra.mxu0 %v875
      %v985 = vpop.f32.mrf.mxu0
      %v986 = vadd.f32 %v822, %v985
      %v987 = vpop.f32.mrf.mxu0
      %v988 = vadd.f32 %v822, %v987
      %989 = vmatprep.mubr.f32.mxu0 0.0
      %990 = vmatmul.mubr.f32.gmra.mxu0 %v878
      %v991 = vpop.f32.mrf.mxu0
      %v992 = vadd.f32 %v827, %v991
      %v993 = vpop.f32.mrf.mxu0
      %v994 = vadd.f32 %v827, %v993
      %995 = vmatprep.mubr.f32.mxu0 0.0
      %996 = vmatmul.mubr.f32.gmra.mxu0 %v881
      %v997 = vpop.f32.mrf.mxu0
      %v998 = vadd.f32 %v832, %v997
      %v999 = vpop.f32.mrf.mxu0
      %v1000 = vadd.f32 %v832, %v999
      %1001 = vmatprep.mubr.f32.mxu0 0.0
      %1002 = vmatmul.mubr.f32.gmra.mxu0 %v884
      %v1003 = vpop.f32.mrf.mxu0
      %v1004 = vadd.f32 %v837, %v1003
      %v1005 = vpop.f32.mrf.mxu0
      %v1006 = vadd.f32 %v837, %v1005
      %1007 = vmatprep.mubr.f32.mxu0 0.0
      %1008 = vmatmul.mubr.f32.gmra.mxu0 %v887
      %v1009 = vpop.f32.mrf.mxu0
      %v1010 = vadd.f32 %v842, %v1009
      %v1011 = vpop.f32.mrf.mxu0
      %v1012 = vadd.f32 %v842, %v1011
      %1013 = vmatprep.mubr.f32.mxu0 0.0
      %1014 = vmatmul.mubr.f32.gmra.mxu0 %v890
      %v1015 = vpop.f32.mrf.mxu0
      %v1016 = vadd.f32 %v847, %v1015
      %v1017 = vpop.f32.mrf.mxu0
      %v1018 = vadd.f32 %v847, %v1017
      %1019 = vmatprep.mubr.f32.mxu0 0.0
      %1020 = vmatmul.mubr.f32.gmra.mxu0 %v893
      %v1021 = vpop.f32.mrf.mxu0
      %v1022 = vadd.f32 %v852, %v1021
      %v1023 = vpop.f32.mrf.mxu0
      %v1024 = vadd.f32 %v852, %v1023
      %1025 = vmatprep.mubr.f32.mxu0 0.0
      %1026 = vmatmul.mubr.f32.gmra.mxu0 %v896
      %v1027 = vpop.f32.mrf.mxu0
      %v1028 = vadd.f32 %v857, %v1027
      %v1029 = vpop.f32.mrf.mxu0
      %v1030 = vadd.f32 %v857, %v1029
      %1031 = vmatprep.mubr.f32.mxu0 0.0
      %1032 = vmatmul.mubr.f32.gmra.mxu0 %v899
      %v1033 = vpop.f32.mrf.mxu0
      %v1034 = vadd.f32 %v862, %v1033
      %v1035 = vpop.f32.mrf.mxu0
      %v1036 = vadd.f32 %v862, %v1035
      %1037 = vdwg.mxu0
      %1038 = vxpose.xlu0.b32.start [1/16] %v968, 128
      %1039 = vxpose.xlu0.b32.cont [2/16] 0.0, 128
      %1040 = vxpose.xlu0.b32.cont [3/16] 0.0, 128
      %1041 = vxpose.xlu0.b32.cont [4/16] 0.0, 128
      %1042 = vxpose.xlu0.b32.cont [5/16] 0.0, 128
      %1043 = vxpose.xlu0.b32.cont [6/16] 0.0, 128
      %1044 = vxpose.xlu0.b32.cont [7/16] 0.0, 128
      %1045 = vxpose.xlu0.b32.cont [8/16] 0.0, 128
      %1046 = vxpose.xlu0.b32.cont [9/16] 0.0, 128
      %1047 = vxpose.xlu0.b32.cont [10/16] 0.0, 128
      %1048 = vxpose.xlu0.b32.cont [11/16] 0.0, 128
      %1049 = vxpose.xlu0.b32.cont [12/16] 0.0, 128
      %1050 = vxpose.xlu0.b32.cont [13/16] 0.0, 128
      %1051 = vxpose.xlu0.b32.cont [14/16] 0.0, 128
      %1052 = vxpose.xlu0.b32.cont [15/16] 0.0, 128
      %1053 = vxpose.xlu0.b32.end [16/16] 0.0, 128
      %v1054 = vpop.trf.xlu0
      %v1055 = vpop.trf.xlu0
      %v1056 = vpop.trf.xlu0
      %v1057 = vpop.trf.xlu0
      %v1058 = vpop.trf.xlu0
      %v1059 = vpop.trf.xlu0
      %v1060 = vpop.trf.xlu0
      %v1061 = vpop.trf.xlu0
      %v1062 = vpop.trf.xlu0
      %v1063 = vpop.trf.xlu0
      %v1064 = vpop.trf.xlu0
      %v1065 = vpop.trf.xlu0
      %v1066 = vpop.trf.xlu0
      %v1067 = vpop.trf.xlu0
      %v1068 = vpop.trf.xlu0
      %v1069 = vpop.trf.xlu0
      %1070 = vxpose.xlu0.b32.start [1/16] %v970, 128
      %1071 = vxpose.xlu0.b32.cont [2/16] 0.0, 128
      %1072 = vxpose.xlu0.b32.cont [3/16] 0.0, 128
      %1073 = vxpose.xlu0.b32.cont [4/16] 0.0, 128
      %1074 = vxpose.xlu0.b32.cont [5/16] 0.0, 128
      %1075 = vxpose.xlu0.b32.cont [6/16] 0.0, 128
      %1076 = vxpose.xlu0.b32.cont [7/16] 0.0, 128
      %1077 = vxpose.xlu0.b32.cont [8/16] 0.0, 128
      %1078 = vxpose.xlu0.b32.cont [9/16] 0.0, 128
      %1079 = vxpose.xlu0.b32.cont [10/16] 0.0, 128
      %1080 = vxpose.xlu0.b32.cont [11/16] 0.0, 128
      %1081 = vxpose.xlu0.b32.cont [12/16] 0.0, 128
      %1082 = vxpose.xlu0.b32.cont [13/16] 0.0, 128
      %1083 = vxpose.xlu0.b32.cont [14/16] 0.0, 128
      %1084 = vxpose.xlu0.b32.cont [15/16] 0.0, 128
      %1085 = vxpose.xlu0.b32.end [16/16] 0.0, 128
      %v1086 = vpop.trf.xlu0
      %v1087 = vpop.trf.xlu0
      %v1088 = vpop.trf.xlu0
      %v1089 = vpop.trf.xlu0
      %v1090 = vpop.trf.xlu0
      %v1091 = vpop.trf.xlu0
      %v1092 = vpop.trf.xlu0
      %v1093 = vpop.trf.xlu0
      %v1094 = vpop.trf.xlu0
      %v1095 = vpop.trf.xlu0
      %v1096 = vpop.trf.xlu0
      %v1097 = vpop.trf.xlu0
      %v1098 = vpop.trf.xlu0
      %v1099 = vpop.trf.xlu0
      %v1100 = vpop.trf.xlu0
      %v1101 = vpop.trf.xlu0
      %vm1102 = vcmask 64512
      %v1104 = vsel %vm1102, %v1054, 0
      %v1107 = vsel %vm1102, %v1055, 0
      %v1110 = vsel %vm1102, %v1056, 0
      %v1113 = vsel %vm1102, %v1057, 0
      %v1116 = vsel %vm1102, %v1058, 0
      %v1119 = vsel %vm1102, %v1059, 0
      %v1122 = vsel %vm1102, %v1060, 0
      %v1125 = vsel %vm1102, %v1061, 0
      %v1128 = vsel %vm1102, %v1062, 0
      %v1131 = vsel %vm1102, %v1063, 0
      %v1134 = vsel %vm1102, %v1064, 0
      %v1137 = vsel %vm1102, %v1065, 0
      %v1140 = vsel %vm1102, %v1066, 0
      %v1143 = vsel %vm1102, %v1067, 0
      %v1146 = vsel %vm1102, %v1068, 0
      %v1149 = vsel %vm1102, %v1069, 0
      %v1152 = vsel %vm1102, %v1086, 0
      %v1155 = vsel %vm1102, %v1087, 0
      %v1158 = vsel %vm1102, %v1088, 0
      %v1161 = vsel %vm1102, %v1089, 0
      %v1164 = vsel %vm1102, %v1090, 0
      %v1167 = vsel %vm1102, %v1091, 0
      %v1170 = vsel %vm1102, %v1092, 0
      %v1173 = vsel %vm1102, %v1093, 0
      %v1176 = vsel %vm1102, %v1094, 0
      %v1179 = vsel %vm1102, %v1095, 0
      %v1182 = vsel %vm1102, %v1096, 0
      %v1185 = vsel %vm1102, %v1097, 0
      %v1188 = vsel %vm1102, %v1098, 0
      %v1191 = vsel %vm1102, %v1099, 0
      %v1194 = vsel %vm1102, %v1100, 0
      %v1197 = vsel %vm1102, %v1101, 0
      %1199 = vmatprep.subr.mxu0 0.0
      %1200 = vmatpush1.msra.mxu0 0.0
      %1201 = vmatprep.subr.mxu0 0.0
      %1202 = vmatpush1.msra.mxu0 0.0
      %1203 = vmatprep.subr.mxu0 0.0
      %1204 = vmatpush1.msra.mxu0 0.0
      %1205 = vmatprep.subr.mxu0 0.0
      %1206 = vmatpush1.msra.mxu0 0.0
      %1207 = vmatprep.subr.mxu0 0.0
      %1208 = vmatpush1.msra.mxu0 0.0
      %1209 = vmatprep.subr.mxu0 0.0
      %1210 = vmatpush1.msra.mxu0 0.0
      %1211 = vmatprep.subr.mxu0 0.0
      %1212 = vmatpush1.msra.mxu0 0.0
      %1213 = vmatprep.subr.mxu0 0.0
      %1214 = vmatpush1.msra.mxu0 0.0
      %1215 = vmatprep.subr.mxu0 0.0
      %1216 = vmatpush1.msra.mxu0 0.0
      %1217 = vmatprep.subr.mxu0 0.0
      %1218 = vmatpush1.msra.mxu0 0.0
      %1219 = vmatprep.subr.mxu0 0.0
      %1220 = vmatpush1.msra.mxu0 0.0
      %1221 = vmatprep.subr.mxu0 0.0
      %1222 = vmatpush1.msra.mxu0 0.0
      %1223 = vmatprep.subr.mxu0 0.0
      %1224 = vmatpush1.msra.mxu0 0.0
      %1225 = vmatprep.subr.mxu0 0.0
      %1226 = vmatpush1.msra.mxu0 0.0
      %1227 = vmatprep.subr.mxu0 0.0
      %1228 = vmatpush1.msra.mxu0 0.0
      %1229 = vmatprep.subr.mxu0 %v994
      %1230 = vmatpush1.msra.mxu0 %v992
      %1231 = vmatprep.subr.mxu0 0.0
      %1232 = vmatpush2.msra.mxu0 0.0
      %1233 = vmatprep.subr.mxu0 0.0
      %1234 = vmatpush2.msra.mxu0 0.0
      %1235 = vmatprep.subr.mxu0 0.0
      %1236 = vmatpush2.msra.mxu0 0.0
      %1237 = vmatprep.subr.mxu0 0.0
      %1238 = vmatpush2.msra.mxu0 0.0
      %1239 = vmatprep.subr.mxu0 0.0
      %1240 = vmatpush2.msra.mxu0 0.0
      %1241 = vmatprep.subr.mxu0 0.0
      %1242 = vmatpush2.msra.mxu0 0.0
      %1243 = vmatprep.subr.mxu0 0.0
      %1244 = vmatpush2.msra.mxu0 0.0
      %1245 = vmatprep.subr.mxu0 0.0
      %1246 = vmatpush2.msra.mxu0 0.0
      %1247 = vmatprep.subr.mxu0 0.0
      %1248 = vmatpush2.msra.mxu0 0.0
      %1249 = vmatprep.subr.mxu0 0.0
      %1250 = vmatpush2.msra.mxu0 0.0
      %1251 = vmatprep.subr.mxu0 0.0
      %1252 = vmatpush2.msra.mxu0 0.0
      %1253 = vmatprep.subr.mxu0 0.0
      %1254 = vmatpush2.msra.mxu0 0.0
      %1255 = vmatprep.subr.mxu0 0.0
      %1256 = vmatpush2.msra.mxu0 0.0
      %1257 = vmatprep.subr.mxu0 0.0
      %1258 = vmatpush2.msra.mxu0 0.0
      %1259 = vmatprep.subr.mxu0 0.0
      %1260 = vmatpush2.msra.mxu0 0.0
      %1261 = vmatprep.subr.mxu0 0.0
      %1262 = vmatpush2.msra.mxu0 0.0
      %1263 = vmatprep.mubr.f32.mxu0 0.0
      %1264 = vmatmul.mubr.f32.gmra.mxu0 %v1104
      %v1265 = vpop.f32.mrf.mxu0
      %v1266 = vadd.f32 0.0, %v1265
      %v1267 = vpop.f32.mrf.mxu0
      %v1268 = vadd.f32 0.0, %v1267
      %1269 = vmatprep.mubr.f32.mxu0 0.0
      %1270 = vmatmul.mubr.f32.gmra.mxu0 %v1107
      %v1271 = vpop.f32.mrf.mxu0
      %v1272 = vadd.f32 0.0, %v1271
      %v1273 = vpop.f32.mrf.mxu0
      %v1274 = vadd.f32 0.0, %v1273
      %1275 = vmatprep.mubr.f32.mxu0 0.0
      %1276 = vmatmul.mubr.f32.gmra.mxu0 %v1110
      %v1277 = vpop.f32.mrf.mxu0
      %v1278 = vadd.f32 0.0, %v1277
      %v1279 = vpop.f32.mrf.mxu0
      %v1280 = vadd.f32 0.0, %v1279
      %1281 = vmatprep.mubr.f32.mxu0 0.0
      %1282 = vmatmul.mubr.f32.gmra.mxu0 %v1113
      %v1283 = vpop.f32.mrf.mxu0
      %v1284 = vadd.f32 0.0, %v1283
      %v1285 = vpop.f32.mrf.mxu0
      %v1286 = vadd.f32 0.0, %v1285
      %1287 = vmatprep.mubr.f32.mxu0 0.0
      %1288 = vmatmul.mubr.f32.gmra.mxu0 %v1116
      %v1289 = vpop.f32.mrf.mxu0
      %v1290 = vadd.f32 0.0, %v1289
      %v1291 = vpop.f32.mrf.mxu0
      %v1292 = vadd.f32 0.0, %v1291
      %1293 = vmatprep.mubr.f32.mxu0 0.0
      %1294 = vmatmul.mubr.f32.gmra.mxu0 %v1119
      %v1295 = vpop.f32.mrf.mxu0
      %v1296 = vadd.f32 0.0, %v1295
      %v1297 = vpop.f32.mrf.mxu0
      %v1298 = vadd.f32 0.0, %v1297
      %1299 = vmatprep.mubr.f32.mxu0 0.0
      %1300 = vmatmul.mubr.f32.gmra.mxu0 %v1122
      %v1301 = vpop.f32.mrf.mxu0
      %v1302 = vadd.f32 0.0, %v1301
      %v1303 = vpop.f32.mrf.mxu0
      %v1304 = vadd.f32 0.0, %v1303
      %1305 = vmatprep.mubr.f32.mxu0 0.0
      %1306 = vmatmul.mubr.f32.gmra.mxu0 %v1125
      %v1307 = vpop.f32.mrf.mxu0
      %v1308 = vadd.f32 0.0, %v1307
      %v1309 = vpop.f32.mrf.mxu0
      %v1310 = vadd.f32 0.0, %v1309
      %1311 = vmatprep.mubr.f32.mxu0 0.0
      %1312 = vmatmul.mubr.f32.gmra.mxu0 %v1128
      %v1313 = vpop.f32.mrf.mxu0
      %v1314 = vadd.f32 0.0, %v1313
      %v1315 = vpop.f32.mrf.mxu0
      %v1316 = vadd.f32 0.0, %v1315
      %1317 = vmatprep.mubr.f32.mxu0 0.0
      %1318 = vmatmul.mubr.f32.gmra.mxu0 %v1131
      %v1319 = vpop.f32.mrf.mxu0
      %v1320 = vadd.f32 0.0, %v1319
      %v1321 = vpop.f32.mrf.mxu0
      %v1322 = vadd.f32 0.0, %v1321
      %1323 = vmatprep.mubr.f32.mxu0 0.0
      %1324 = vmatmul.mubr.f32.gmra.mxu0 %v1134
      %v1325 = vpop.f32.mrf.mxu0
      %v1326 = vadd.f32 0.0, %v1325
      %v1327 = vpop.f32.mrf.mxu0
      %v1328 = vadd.f32 0.0, %v1327
      %1329 = vmatprep.mubr.f32.mxu0 0.0
      %1330 = vmatmul.mubr.f32.gmra.mxu0 %v1137
      %v1331 = vpop.f32.mrf.mxu0
      %v1332 = vadd.f32 0.0, %v1331
      %v1333 = vpop.f32.mrf.mxu0
      %v1334 = vadd.f32 0.0, %v1333
      %1335 = vmatprep.mubr.f32.mxu0 0.0
      %1336 = vmatmul.mubr.f32.gmra.mxu0 %v1140
      %v1337 = vpop.f32.mrf.mxu0
      %v1338 = vadd.f32 0.0, %v1337
      %v1339 = vpop.f32.mrf.mxu0
      %v1340 = vadd.f32 0.0, %v1339
      %1341 = vmatprep.mubr.f32.mxu0 0.0
      %1342 = vmatmul.mubr.f32.gmra.mxu0 %v1143
      %v1343 = vpop.f32.mrf.mxu0
      %v1344 = vadd.f32 0.0, %v1343
      %v1345 = vpop.f32.mrf.mxu0
      %v1346 = vadd.f32 0.0, %v1345
      %1347 = vmatprep.mubr.f32.mxu0 0.0
      %1348 = vmatmul.mubr.f32.gmra.mxu0 %v1146
      %v1349 = vpop.f32.mrf.mxu0
      %v1350 = vadd.f32 0.0, %v1349
      %v1351 = vpop.f32.mrf.mxu0
      %v1352 = vadd.f32 0.0, %v1351
      %1353 = vmatprep.mubr.f32.mxu0 0.0
      %1354 = vmatmul.mubr.f32.gmra.mxu0 %v1149
      %v1355 = vpop.f32.mrf.mxu0
      %v1356 = vadd.f32 0.0, %v1355
      %v1357 = vpop.f32.mrf.mxu0
      %v1358 = vadd.f32 0.0, %v1357
      %1359 = vmatprep.mubr.f32.mxu0 0.0
      %1360 = vmatmul.mubr.f32.gmra.mxu0 %v1152
      %v1361 = vpop.f32.mrf.mxu0
      %v1362 = vadd.f32 0.0, %v1361
      %v1363 = vpop.f32.mrf.mxu0
      %v1364 = vadd.f32 0.0, %v1363
      %1365 = vmatprep.mubr.f32.mxu0 0.0
      %1366 = vmatmul.mubr.f32.gmra.mxu0 %v1155
      %v1367 = vpop.f32.mrf.mxu0
      %v1368 = vadd.f32 0.0, %v1367
      %v1369 = vpop.f32.mrf.mxu0
      %v1370 = vadd.f32 0.0, %v1369
      %1371 = vmatprep.mubr.f32.mxu0 0.0
      %1372 = vmatmul.mubr.f32.gmra.mxu0 %v1158
      %v1373 = vpop.f32.mrf.mxu0
      %v1374 = vadd.f32 0.0, %v1373
      %v1375 = vpop.f32.mrf.mxu0
      %v1376 = vadd.f32 0.0, %v1375
      %1377 = vmatprep.mubr.f32.mxu0 0.0
      %1378 = vmatmul.mubr.f32.gmra.mxu0 %v1161
      %v1379 = vpop.f32.mrf.mxu0
      %v1380 = vadd.f32 0.0, %v1379
      %v1381 = vpop.f32.mrf.mxu0
      %v1382 = vadd.f32 0.0, %v1381
      %1383 = vmatprep.mubr.f32.mxu0 0.0
      %1384 = vmatmul.mubr.f32.gmra.mxu0 %v1164
      %v1385 = vpop.f32.mrf.mxu0
      %v1386 = vadd.f32 0.0, %v1385
      %v1387 = vpop.f32.mrf.mxu0
      %v1388 = vadd.f32 0.0, %v1387
      %1389 = vmatprep.mubr.f32.mxu0 0.0
      %1390 = vmatmul.mubr.f32.gmra.mxu0 %v1167
      %v1391 = vpop.f32.mrf.mxu0
      %v1392 = vadd.f32 0.0, %v1391
      %v1393 = vpop.f32.mrf.mxu0
      %v1394 = vadd.f32 0.0, %v1393
      %1395 = vmatprep.mubr.f32.mxu0 0.0
      %1396 = vmatmul.mubr.f32.gmra.mxu0 %v1170
      %v1397 = vpop.f32.mrf.mxu0
      %v1398 = vadd.f32 0.0, %v1397
      %v1399 = vpop.f32.mrf.mxu0
      %v1400 = vadd.f32 0.0, %v1399
      %1401 = vmatprep.mubr.f32.mxu0 0.0
      %1402 = vmatmul.mubr.f32.gmra.mxu0 %v1173
      %v1403 = vpop.f32.mrf.mxu0
      %v1404 = vadd.f32 0.0, %v1403
      %v1405 = vpop.f32.mrf.mxu0
      %v1406 = vadd.f32 0.0, %v1405
      %1407 = vmatprep.mubr.f32.mxu0 0.0
      %1408 = vmatmul.mubr.f32.gmra.mxu0 %v1176
      %v1409 = vpop.f32.mrf.mxu0
      %v1410 = vadd.f32 0.0, %v1409
      %v1411 = vpop.f32.mrf.mxu0
      %v1412 = vadd.f32 0.0, %v1411
      %1413 = vmatprep.mubr.f32.mxu0 0.0
      %1414 = vmatmul.mubr.f32.gmra.mxu0 %v1179
      %v1415 = vpop.f32.mrf.mxu0
      %v1416 = vadd.f32 0.0, %v1415
      %v1417 = vpop.f32.mrf.mxu0
      %v1418 = vadd.f32 0.0, %v1417
      %1419 = vmatprep.mubr.f32.mxu0 0.0
      %1420 = vmatmul.mubr.f32.gmra.mxu0 %v1182
      %v1421 = vpop.f32.mrf.mxu0
      %v1422 = vadd.f32 0.0, %v1421
      %v1423 = vpop.f32.mrf.mxu0
      %v1424 = vadd.f32 0.0, %v1423
      %1425 = vmatprep.mubr.f32.mxu0 0.0
      %1426 = vmatmul.mubr.f32.gmra.mxu0 %v1185
      %v1427 = vpop.f32.mrf.mxu0
      %v1428 = vadd.f32 0.0, %v1427
      %v1429 = vpop.f32.mrf.mxu0
      %v1430 = vadd.f32 0.0, %v1429
      %1431 = vmatprep.mubr.f32.mxu0 0.0
      %1432 = vmatmul.mubr.f32.gmra.mxu0 %v1188
      %v1433 = vpop.f32.mrf.mxu0
      %v1434 = vadd.f32 0.0, %v1433
      %v1435 = vpop.f32.mrf.mxu0
      %v1436 = vadd.f32 0.0, %v1435
      %1437 = vmatprep.mubr.f32.mxu0 0.0
      %1438 = vmatmul.mubr.f32.gmra.mxu0 %v1191
      %v1439 = vpop.f32.mrf.mxu0
      %v1440 = vadd.f32 0.0, %v1439
      %v1441 = vpop.f32.mrf.mxu0
      %v1442 = vadd.f32 0.0, %v1441
      %1443 = vmatprep.mubr.f32.mxu0 0.0
      %1444 = vmatmul.mubr.f32.gmra.mxu0 %v1194
      %v1445 = vpop.f32.mrf.mxu0
      %v1446 = vadd.f32 0.0, %v1445
      %v1447 = vpop.f32.mrf.mxu0
      %v1448 = vadd.f32 0.0, %v1447
      %1449 = vmatprep.mubr.f32.mxu0 0.0
      %1450 = vmatmul.mubr.f32.gmra.mxu0 %v1197
      %v1451 = vpop.f32.mrf.mxu0
      %v1452 = vadd.f32 0.0, %v1451
      %v1453 = vpop.f32.mrf.mxu0
      %v1454 = vadd.f32 0.0, %v1453
      %1455 = vdwg.mxu0
      %1456 = vxpose.xlu0.b32.start [1/16] %v974, 128
      %1457 = vxpose.xlu0.b32.cont [2/16] 0.0, 128
      %1458 = vxpose.xlu0.b32.cont [3/16] 0.0, 128
      %1459 = vxpose.xlu0.b32.cont [4/16] 0.0, 128
      %1460 = vxpose.xlu0.b32.cont [5/16] 0.0, 128
      %1461 = vxpose.xlu0.b32.cont [6/16] 0.0, 128
      %1462 = vxpose.xlu0.b32.cont [7/16] 0.0, 128
      %1463 = vxpose.xlu0.b32.cont [8/16] 0.0, 128
      %1464 = vxpose.xlu0.b32.cont [9/16] 0.0, 128
      %1465 = vxpose.xlu0.b32.cont [10/16] 0.0, 128
      %1466 = vxpose.xlu0.b32.cont [11/16] 0.0, 128
      %1467 = vxpose.xlu0.b32.cont [12/16] 0.0, 128
      %1468 = vxpose.xlu0.b32.cont [13/16] 0.0, 128
      %1469 = vxpose.xlu0.b32.cont [14/16] 0.0, 128
      %1470 = vxpose.xlu0.b32.cont [15/16] 0.0, 128
      %1471 = vxpose.xlu0.b32.end [16/16] 0.0, 128
      %v1472 = vpop.trf.xlu0
      %v1473 = vpop.trf.xlu0
      %v1474 = vpop.trf.xlu0
      %v1475 = vpop.trf.xlu0
      %v1476 = vpop.trf.xlu0
      %v1477 = vpop.trf.xlu0
      %v1478 = vpop.trf.xlu0
      %v1479 = vpop.trf.xlu0
      %v1480 = vpop.trf.xlu0
      %v1481 = vpop.trf.xlu0
      %v1482 = vpop.trf.xlu0
      %v1483 = vpop.trf.xlu0
      %v1484 = vpop.trf.xlu0
      %v1485 = vpop.trf.xlu0
      %v1486 = vpop.trf.xlu0
      %v1487 = vpop.trf.xlu0
      %1488 = vxpose.xlu0.b32.start [1/16] %v976, 128
      %1489 = vxpose.xlu0.b32.cont [2/16] 0.0, 128
      %1490 = vxpose.xlu0.b32.cont [3/16] 0.0, 128
      %1491 = vxpose.xlu0.b32.cont [4/16] 0.0, 128
      %1492 = vxpose.xlu0.b32.cont [5/16] 0.0, 128
      %1493 = vxpose.xlu0.b32.cont [6/16] 0.0, 128
      %1494 = vxpose.xlu0.b32.cont [7/16] 0.0, 128
      %1495 = vxpose.xlu0.b32.cont [8/16] 0.0, 128
      %1496 = vxpose.xlu0.b32.cont [9/16] 0.0, 128
      %1497 = vxpose.xlu0.b32.cont [10/16] 0.0, 128
      %1498 = vxpose.xlu0.b32.cont [11/16] 0.0, 128
      %1499 = vxpose.xlu0.b32.cont [12/16] 0.0, 128
      %1500 = vxpose.xlu0.b32.cont [13/16] 0.0, 128
      %1501 = vxpose.xlu0.b32.cont [14/16] 0.0, 128
      %1502 = vxpose.xlu0.b32.cont [15/16] 0.0, 128
      %1503 = vxpose.xlu0.b32.end [16/16] 0.0, 128
      %v1504 = vpop.trf.xlu0
      %v1505 = vpop.trf.xlu0
      %v1506 = vpop.trf.xlu0
      %v1507 = vpop.trf.xlu0
      %v1508 = vpop.trf.xlu0
      %v1509 = vpop.trf.xlu0
      %v1510 = vpop.trf.xlu0
      %v1511 = vpop.trf.xlu0
      %v1512 = vpop.trf.xlu0
      %v1513 = vpop.trf.xlu0
      %v1514 = vpop.trf.xlu0
      %v1515 = vpop.trf.xlu0
      %v1516 = vpop.trf.xlu0
      %v1517 = vpop.trf.xlu0
      %v1518 = vpop.trf.xlu0
      %v1519 = vpop.trf.xlu0
      %v1521 = vsel %vm1102, %v1472, 0
      %v1524 = vsel %vm1102, %v1473, 0
      %v1527 = vsel %vm1102, %v1474, 0
      %v1530 = vsel %vm1102, %v1475, 0
      %v1533 = vsel %vm1102, %v1476, 0
      %v1536 = vsel %vm1102, %v1477, 0
      %v1539 = vsel %vm1102, %v1478, 0
      %v1542 = vsel %vm1102, %v1479, 0
      %v1545 = vsel %vm1102, %v1480, 0
      %v1548 = vsel %vm1102, %v1481, 0
      %v1551 = vsel %vm1102, %v1482, 0
      %v1554 = vsel %vm1102, %v1483, 0
      %v1557 = vsel %vm1102, %v1484, 0
      %v1560 = vsel %vm1102, %v1485, 0
      %v1563 = vsel %vm1102, %v1486, 0
      %v1566 = vsel %vm1102, %v1487, 0
      %v1569 = vsel %vm1102, %v1504, 0
      %v1572 = vsel %vm1102, %v1505, 0
      %v1575 = vsel %vm1102, %v1506, 0
      %v1578 = vsel %vm1102, %v1507, 0
      %v1581 = vsel %vm1102, %v1508, 0
      %v1584 = vsel %vm1102, %v1509, 0
      %v1587 = vsel %vm1102, %v1510, 0
      %v1590 = vsel %vm1102, %v1511, 0
      %v1593 = vsel %vm1102, %v1512, 0
      %v1596 = vsel %vm1102, %v1513, 0
      %v1599 = vsel %vm1102, %v1514, 0
      %v1602 = vsel %vm1102, %v1515, 0
      %v1605 = vsel %vm1102, %v1516, 0
      %v1608 = vsel %vm1102, %v1517, 0
      %v1611 = vsel %vm1102, %v1518, 0
      %v1614 = vsel %vm1102, %v1519, 0
      %1616 = vmatprep.subr.mxu0 0.0
      %1617 = vmatpush1.msra.mxu0 0.0
      %1618 = vmatprep.subr.mxu0 0.0
      %1619 = vmatpush1.msra.mxu0 0.0
      %1620 = vmatprep.subr.mxu0 0.0
      %1621 = vmatpush1.msra.mxu0 0.0
      %1622 = vmatprep.subr.mxu0 0.0
      %1623 = vmatpush1.msra.mxu0 0.0
      %1624 = vmatprep.subr.mxu0 0.0
      %1625 = vmatpush1.msra.mxu0 0.0
      %1626 = vmatprep.subr.mxu0 0.0
      %1627 = vmatpush1.msra.mxu0 0.0
      %1628 = vmatprep.subr.mxu0 0.0
      %1629 = vmatpush1.msra.mxu0 0.0
      %1630 = vmatprep.subr.mxu0 0.0
      %1631 = vmatpush1.msra.mxu0 0.0
      %1632 = vmatprep.subr.mxu0 0.0
      %1633 = vmatpush1.msra.mxu0 0.0
      %1634 = vmatprep.subr.mxu0 0.0
      %1635 = vmatpush1.msra.mxu0 0.0
      %1636 = vmatprep.subr.mxu0 0.0
      %1637 = vmatpush1.msra.mxu0 0.0
      %1638 = vmatprep.subr.mxu0 0.0
      %1639 = vmatpush1.msra.mxu0 0.0
      %1640 = vmatprep.subr.mxu0 0.0
      %1641 = vmatpush1.msra.mxu0 0.0
      %1642 = vmatprep.subr.mxu0 0.0
      %1643 = vmatpush1.msra.mxu0 0.0
      %1644 = vmatprep.subr.mxu0 0.0
      %1645 = vmatpush1.msra.mxu0 0.0
      %1646 = vmatprep.subr.mxu0 %v1000
      %1647 = vmatpush1.msra.mxu0 %v998
      %1648 = vmatprep.subr.mxu0 0.0
      %1649 = vmatpush2.msra.mxu0 0.0
      %1650 = vmatprep.subr.mxu0 0.0
      %1651 = vmatpush2.msra.mxu0 0.0
      %1652 = vmatprep.subr.mxu0 0.0
      %1653 = vmatpush2.msra.mxu0 0.0
      %1654 = vmatprep.subr.mxu0 0.0
      %1655 = vmatpush2.msra.mxu0 0.0
      %1656 = vmatprep.subr.mxu0 0.0
      %1657 = vmatpush2.msra.mxu0 0.0
      %1658 = vmatprep.subr.mxu0 0.0
      %1659 = vmatpush2.msra.mxu0 0.0
      %1660 = vmatprep.subr.mxu0 0.0
      %1661 = vmatpush2.msra.mxu0 0.0
      %1662 = vmatprep.subr.mxu0 0.0
      %1663 = vmatpush2.msra.mxu0 0.0
      %1664 = vmatprep.subr.mxu0 0.0
      %1665 = vmatpush2.msra.mxu0 0.0
      %1666 = vmatprep.subr.mxu0 0.0
      %1667 = vmatpush2.msra.mxu0 0.0
      %1668 = vmatprep.subr.mxu0 0.0
      %1669 = vmatpush2.msra.mxu0 0.0
      %1670 = vmatprep.subr.mxu0 0.0
      %1671 = vmatpush2.msra.mxu0 0.0
      %1672 = vmatprep.subr.mxu0 0.0
      %1673 = vmatpush2.msra.mxu0 0.0
      %1674 = vmatprep.subr.mxu0 0.0
      %1675 = vmatpush2.msra.mxu0 0.0
      %1676 = vmatprep.subr.mxu0 0.0
      %1677 = vmatpush2.msra.mxu0 0.0
      %1678 = vmatprep.subr.mxu0 0.0
      %1679 = vmatpush2.msra.mxu0 0.0
      %1680 = vmatprep.mubr.f32.mxu0 0.0
      %1681 = vmatmul.mubr.f32.gmra.mxu0 %v1521
      %v1682 = vpop.f32.mrf.mxu0
      %v1683 = vadd.f32 0.0, %v1682
      %v1684 = vpop.f32.mrf.mxu0
      %v1685 = vadd.f32 0.0, %v1684
      %1686 = vmatprep.mubr.f32.mxu0 0.0
      %1687 = vmatmul.mubr.f32.gmra.mxu0 %v1524
      %v1688 = vpop.f32.mrf.mxu0
      %v1689 = vadd.f32 0.0, %v1688
      %v1690 = vpop.f32.mrf.mxu0
      %v1691 = vadd.f32 0.0, %v1690
      %1692 = vmatprep.mubr.f32.mxu0 0.0
      %1693 = vmatmul.mubr.f32.gmra.mxu0 %v1527
      %v1694 = vpop.f32.mrf.mxu0
      %v1695 = vadd.f32 0.0, %v1694
      %v1696 = vpop.f32.mrf.mxu0
      %v1697 = vadd.f32 0.0, %v1696
      %1698 = vmatprep.mubr.f32.mxu0 0.0
      %1699 = vmatmul.mubr.f32.gmra.mxu0 %v1530
      %v1700 = vpop.f32.mrf.mxu0
      %v1701 = vadd.f32 0.0, %v1700
      %v1702 = vpop.f32.mrf.mxu0
      %v1703 = vadd.f32 0.0, %v1702
      %1704 = vmatprep.mubr.f32.mxu0 0.0
      %1705 = vmatmul.mubr.f32.gmra.mxu0 %v1533
      %v1706 = vpop.f32.mrf.mxu0
      %v1707 = vadd.f32 0.0, %v1706
      %v1708 = vpop.f32.mrf.mxu0
      %v1709 = vadd.f32 0.0, %v1708
      %1710 = vmatprep.mubr.f32.mxu0 0.0
      %1711 = vmatmul.mubr.f32.gmra.mxu0 %v1536
      %v1712 = vpop.f32.mrf.mxu0
      %v1713 = vadd.f32 0.0, %v1712
      %v1714 = vpop.f32.mrf.mxu0
      %v1715 = vadd.f32 0.0, %v1714
      %1716 = vmatprep.mubr.f32.mxu0 0.0
      %1717 = vmatmul.mubr.f32.gmra.mxu0 %v1539
      %v1718 = vpop.f32.mrf.mxu0
      %v1719 = vadd.f32 0.0, %v1718
      %v1720 = vpop.f32.mrf.mxu0
      %v1721 = vadd.f32 0.0, %v1720
      %1722 = vmatprep.mubr.f32.mxu0 0.0
      %1723 = vmatmul.mubr.f32.gmra.mxu0 %v1542
      %v1724 = vpop.f32.mrf.mxu0
      %v1725 = vadd.f32 0.0, %v1724
      %v1726 = vpop.f32.mrf.mxu0
      %v1727 = vadd.f32 0.0, %v1726
      %1728 = vmatprep.mubr.f32.mxu0 0.0
      %1729 = vmatmul.mubr.f32.gmra.mxu0 %v1545
      %v1730 = vpop.f32.mrf.mxu0
      %v1731 = vadd.f32 0.0, %v1730
      %v1732 = vpop.f32.mrf.mxu0
      %v1733 = vadd.f32 0.0, %v1732
      %1734 = vmatprep.mubr.f32.mxu0 0.0
      %1735 = vmatmul.mubr.f32.gmra.mxu0 %v1548
      %v1736 = vpop.f32.mrf.mxu0
      %v1737 = vadd.f32 0.0, %v1736
      %v1738 = vpop.f32.mrf.mxu0
      %v1739 = vadd.f32 0.0, %v1738
      %1740 = vmatprep.mubr.f32.mxu0 0.0
      %1741 = vmatmul.mubr.f32.gmra.mxu0 %v1551
      %v1742 = vpop.f32.mrf.mxu0
      %v1743 = vadd.f32 0.0, %v1742
      %v1744 = vpop.f32.mrf.mxu0
      %v1745 = vadd.f32 0.0, %v1744
      %1746 = vmatprep.mubr.f32.mxu0 0.0
      %1747 = vmatmul.mubr.f32.gmra.mxu0 %v1554
      %v1748 = vpop.f32.mrf.mxu0
      %v1749 = vadd.f32 0.0, %v1748
      %v1750 = vpop.f32.mrf.mxu0
      %v1751 = vadd.f32 0.0, %v1750
      %1752 = vmatprep.mubr.f32.mxu0 0.0
      %1753 = vmatmul.mubr.f32.gmra.mxu0 %v1557
      %v1754 = vpop.f32.mrf.mxu0
      %v1755 = vadd.f32 0.0, %v1754
      %v1756 = vpop.f32.mrf.mxu0
      %v1757 = vadd.f32 0.0, %v1756
      %1758 = vmatprep.mubr.f32.mxu0 0.0
      %1759 = vmatmul.mubr.f32.gmra.mxu0 %v1560
      %v1760 = vpop.f32.mrf.mxu0
      %v1761 = vadd.f32 0.0, %v1760
      %v1762 = vpop.f32.mrf.mxu0
      %v1763 = vadd.f32 0.0, %v1762
      %1764 = vmatprep.mubr.f32.mxu0 0.0
      %1765 = vmatmul.mubr.f32.gmra.mxu0 %v1563
      %v1766 = vpop.f32.mrf.mxu0
      %v1767 = vadd.f32 0.0, %v1766
      %v1768 = vpop.f32.mrf.mxu0
      %v1769 = vadd.f32 0.0, %v1768
      %1770 = vmatprep.mubr.f32.mxu0 0.0
      %1771 = vmatmul.mubr.f32.gmra.mxu0 %v1566
      %v1772 = vpop.f32.mrf.mxu0
      %v1773 = vadd.f32 0.0, %v1772
      %v1774 = vpop.f32.mrf.mxu0
      %v1775 = vadd.f32 0.0, %v1774
      %1776 = vmatprep.mubr.f32.mxu0 0.0
      %1777 = vmatmul.mubr.f32.gmra.mxu0 %v1569
      %v1778 = vpop.f32.mrf.mxu0
      %v1779 = vadd.f32 0.0, %v1778
      %v1780 = vpop.f32.mrf.mxu0
      %v1781 = vadd.f32 0.0, %v1780
      %1782 = vmatprep.mubr.f32.mxu0 0.0
      %1783 = vmatmul.mubr.f32.gmra.mxu0 %v1572
      %v1784 = vpop.f32.mrf.mxu0
      %v1785 = vadd.f32 0.0, %v1784
      %v1786 = vpop.f32.mrf.mxu0
      %v1787 = vadd.f32 0.0, %v1786
      %1788 = vmatprep.mubr.f32.mxu0 0.0
      %1789 = vmatmul.mubr.f32.gmra.mxu0 %v1575
      %v1790 = vpop.f32.mrf.mxu0
      %v1791 = vadd.f32 0.0, %v1790
      %v1792 = vpop.f32.mrf.mxu0
      %v1793 = vadd.f32 0.0, %v1792
      %1794 = vmatprep.mubr.f32.mxu0 0.0
      %1795 = vmatmul.mubr.f32.gmra.mxu0 %v1578
      %v1796 = vpop.f32.mrf.mxu0
      %v1797 = vadd.f32 0.0, %v1796
      %v1798 = vpop.f32.mrf.mxu0
      %v1799 = vadd.f32 0.0, %v1798
      %1800 = vmatprep.mubr.f32.mxu0 0.0
      %1801 = vmatmul.mubr.f32.gmra.mxu0 %v1581
      %v1802 = vpop.f32.mrf.mxu0
      %v1803 = vadd.f32 0.0, %v1802
      %v1804 = vpop.f32.mrf.mxu0
      %v1805 = vadd.f32 0.0, %v1804
      %1806 = vmatprep.mubr.f32.mxu0 0.0
      %1807 = vmatmul.mubr.f32.gmra.mxu0 %v1584
      %v1808 = vpop.f32.mrf.mxu0
      %v1809 = vadd.f32 0.0, %v1808
      %v1810 = vpop.f32.mrf.mxu0
      %v1811 = vadd.f32 0.0, %v1810
      %1812 = vmatprep.mubr.f32.mxu0 0.0
      %1813 = vmatmul.mubr.f32.gmra.mxu0 %v1587
      %v1814 = vpop.f32.mrf.mxu0
      %v1815 = vadd.f32 0.0, %v1814
      %v1816 = vpop.f32.mrf.mxu0
      %v1817 = vadd.f32 0.0, %v1816
      %1818 = vmatprep.mubr.f32.mxu0 0.0
      %1819 = vmatmul.mubr.f32.gmra.mxu0 %v1590
      %v1820 = vpop.f32.mrf.mxu0
      %v1821 = vadd.f32 0.0, %v1820
      %v1822 = vpop.f32.mrf.mxu0
      %v1823 = vadd.f32 0.0, %v1822
      %1824 = vmatprep.mubr.f32.mxu0 0.0
      %1825 = vmatmul.mubr.f32.gmra.mxu0 %v1593
      %v1826 = vpop.f32.mrf.mxu0
      %v1827 = vadd.f32 0.0, %v1826
      %v1828 = vpop.f32.mrf.mxu0
      %v1829 = vadd.f32 0.0, %v1828
      %1830 = vmatprep.mubr.f32.mxu0 0.0
      %1831 = vmatmul.mubr.f32.gmra.mxu0 %v1596
      %v1832 = vpop.f32.mrf.mxu0
      %v1833 = vadd.f32 0.0, %v1832
      %v1834 = vpop.f32.mrf.mxu0
      %v1835 = vadd.f32 0.0, %v1834
      %1836 = vmatprep.mubr.f32.mxu0 0.0
      %1837 = vmatmul.mubr.f32.gmra.mxu0 %v1599
      %v1838 = vpop.f32.mrf.mxu0
      %v1839 = vadd.f32 0.0, %v1838
      %v1840 = vpop.f32.mrf.mxu0
      %v1841 = vadd.f32 0.0, %v1840
      %1842 = vmatprep.mubr.f32.mxu0 0.0
      %1843 = vmatmul.mubr.f32.gmra.mxu0 %v1602
      %v1844 = vpop.f32.mrf.mxu0
      %v1845 = vadd.f32 0.0, %v1844
      %v1846 = vpop.f32.mrf.mxu0
      %v1847 = vadd.f32 0.0, %v1846
      %1848 = vmatprep.mubr.f32.mxu0 0.0
      %1849 = vmatmul.mubr.f32.gmra.mxu0 %v1605
      %v1850 = vpop.f32.mrf.mxu0
      %v1851 = vadd.f32 0.0, %v1850
      %v1852 = vpop.f32.mrf.mxu0
      %v1853 = vadd.f32 0.0, %v1852
      %1854 = vmatprep.mubr.f32.mxu0 0.0
      %1855 = vmatmul.mubr.f32.gmra.mxu0 %v1608
      %v1856 = vpop.f32.mrf.mxu0
      %v1857 = vadd.f32 0.0, %v1856
      %v1858 = vpop.f32.mrf.mxu0
      %v1859 = vadd.f32 0.0, %v1858
      %1860 = vmatprep.mubr.f32.mxu0 0.0
      %1861 = vmatmul.mubr.f32.gmra.mxu0 %v1611
      %v1862 = vpop.f32.mrf.mxu0
      %v1863 = vadd.f32 0.0, %v1862
      %v1864 = vpop.f32.mrf.mxu0
      %v1865 = vadd.f32 0.0, %v1864
      %1866 = vmatprep.mubr.f32.mxu0 0.0
      %1867 = vmatmul.mubr.f32.gmra.mxu0 %v1614
      %v1868 = vpop.f32.mrf.mxu0
      %v1869 = vadd.f32 0.0, %v1868
      %v1870 = vpop.f32.mrf.mxu0
      %v1871 = vadd.f32 0.0, %v1870
      %1872 = vdwg.mxu0
      %1873 = vxpose.xlu0.b32.start [1/16] %v980, 128
      %1874 = vxpose.xlu0.b32.cont [2/16] 0.0, 128
      %1875 = vxpose.xlu0.b32.cont [3/16] 0.0, 128
      %1876 = vxpose.xlu0.b32.cont [4/16] 0.0, 128
      %1877 = vxpose.xlu0.b32.cont [5/16] 0.0, 128
      %1878 = vxpose.xlu0.b32.cont [6/16] 0.0, 128
      %1879 = vxpose.xlu0.b32.cont [7/16] 0.0, 128
      %1880 = vxpose.xlu0.b32.cont [8/16] 0.0, 128
      %1881 = vxpose.xlu0.b32.cont [9/16] 0.0, 128
      %1882 = vxpose.xlu0.b32.cont [10/16] 0.0, 128
      %1883 = vxpose.xlu0.b32.cont [11/16] 0.0, 128
      %1884 = vxpose.xlu0.b32.cont [12/16] 0.0, 128
      %1885 = vxpose.xlu0.b32.cont [13/16] 0.0, 128
      %1886 = vxpose.xlu0.b32.cont [14/16] 0.0, 128
      %1887 = vxpose.xlu0.b32.cont [15/16] 0.0, 128
      %1888 = vxpose.xlu0.b32.end [16/16] 0.0, 128
      %v1889 = vpop.trf.xlu0
      %v1890 = vpop.trf.xlu0
      %v1891 = vpop.trf.xlu0
      %v1892 = vpop.trf.xlu0
      %v1893 = vpop.trf.xlu0
      %v1894 = vpop.trf.xlu0
      %v1895 = vpop.trf.xlu0
      %v1896 = vpop.trf.xlu0
      %v1897 = vpop.trf.xlu0
      %v1898 = vpop.trf.xlu0
      %v1899 = vpop.trf.xlu0
      %v1900 = vpop.trf.xlu0
      %v1901 = vpop.trf.xlu0
      %v1902 = vpop.trf.xlu0
      %v1903 = vpop.trf.xlu0
      %v1904 = vpop.trf.xlu0
      %1905 = vxpose.xlu0.b32.start [1/16] %v982, 128
      %1906 = vxpose.xlu0.b32.cont [2/16] 0.0, 128
      %1907 = vxpose.xlu0.b32.cont [3/16] 0.0, 128
      %1908 = vxpose.xlu0.b32.cont [4/16] 0.0, 128
      %1909 = vxpose.xlu0.b32.cont [5/16] 0.0, 128
      %1910 = vxpose.xlu0.b32.cont [6/16] 0.0, 128
      %1911 = vxpose.xlu0.b32.cont [7/16] 0.0, 128
      %1912 = vxpose.xlu0.b32.cont [8/16] 0.0, 128
      %1913 = vxpose.xlu0.b32.cont [9/16] 0.0, 128
      %1914 = vxpose.xlu0.b32.cont [10/16] 0.0, 128
      %1915 = vxpose.xlu0.b32.cont [11/16] 0.0, 128
      %1916 = vxpose.xlu0.b32.cont [12/16] 0.0, 128
      %1917 = vxpose.xlu0.b32.cont [13/16] 0.0, 128
      %1918 = vxpose.xlu0.b32.cont [14/16] 0.0, 128
      %1919 = vxpose.xlu0.b32.cont [15/16] 0.0, 128
      %1920 = vxpose.xlu0.b32.end [16/16] 0.0, 128
      %v1921 = vpop.trf.xlu0
      %v1922 = vpop.trf.xlu0
      %v1923 = vpop.trf.xlu0
      %v1924 = vpop.trf.xlu0
      %v1925 = vpop.trf.xlu0
      %v1926 = vpop.trf.xlu0
      %v1927 = vpop.trf.xlu0
      %v1928 = vpop.trf.xlu0
      %v1929 = vpop.trf.xlu0
      %v1930 = vpop.trf.xlu0
      %v1931 = vpop.trf.xlu0
      %v1932 = vpop.trf.xlu0
      %v1933 = vpop.trf.xlu0
      %v1934 = vpop.trf.xlu0
      %v1935 = vpop.trf.xlu0
      %v1936 = vpop.trf.xlu0
      %v1938 = vsel %vm1102, %v1889, 0
      %v1941 = vsel %vm1102, %v1890, 0
      %v1944 = vsel %vm1102, %v1891, 0
      %v1947 = vsel %vm1102, %v1892, 0
      %v1950 = vsel %vm1102, %v1893, 0
      %v1953 = vsel %vm1102, %v1894, 0
      %v1956 = vsel %vm1102, %v1895, 0
      %v1959 = vsel %vm1102, %v1896, 0
      %v1962 = vsel %vm1102, %v1897, 0
      %v1965 = vsel %vm1102, %v1898, 0
      %v1968 = vsel %vm1102, %v1899, 0
      %v1971 = vsel %vm1102, %v1900, 0
      %v1974 = vsel %vm1102, %v1901, 0
      %v1977 = vsel %vm1102, %v1902, 0
      %v1980 = vsel %vm1102, %v1903, 0
      %v1983 = vsel %vm1102, %v1904, 0
      %v1986 = vsel %vm1102, %v1921, 0
      %v1989 = vsel %vm1102, %v1922, 0
      %v1992 = vsel %vm1102, %v1923, 0
      %v1995 = vsel %vm1102, %v1924, 0
      %v1998 = vsel %vm1102, %v1925, 0
      %v2001 = vsel %vm1102, %v1926, 0
      %v2004 = vsel %vm1102, %v1927, 0
      %v2007 = vsel %vm1102, %v1928, 0
      %v2010 = vsel %vm1102, %v1929, 0
      %v2013 = vsel %vm1102, %v1930, 0
      %v2016 = vsel %vm1102, %v1931, 0
      %v2019 = vsel %vm1102, %v1932, 0
      %v2022 = vsel %vm1102, %v1933, 0
      %v2025 = vsel %vm1102, %v1934, 0
      %v2028 = vsel %vm1102, %v1935, 0
      %v2031 = vsel %vm1102, %v1936, 0
      %2033 = vmatprep.subr.mxu0 0.0
      %2034 = vmatpush1.msra.mxu0 0.0
      %2035 = vmatprep.subr.mxu0 0.0
      %2036 = vmatpush1.msra.mxu0 0.0
      %2037 = vmatprep.subr.mxu0 0.0
      %2038 = vmatpush1.msra.mxu0 0.0
      %2039 = vmatprep.subr.mxu0 0.0
      %2040 = vmatpush1.msra.mxu0 0.0
      %2041 = vmatprep.subr.mxu0 0.0
      %2042 = vmatpush1.msra.mxu0 0.0
      %2043 = vmatprep.subr.mxu0 0.0
      %2044 = vmatpush1.msra.mxu0 0.0
      %2045 = vmatprep.subr.mxu0 0.0
      %2046 = vmatpush1.msra.mxu0 0.0
      %2047 = vmatprep.subr.mxu0 0.0
      %2048 = vmatpush1.msra.mxu0 0.0
      %2049 = vmatprep.subr.mxu0 0.0
      %2050 = vmatpush1.msra.mxu0 0.0
      %2051 = vmatprep.subr.mxu0 0.0
      %2052 = vmatpush1.msra.mxu0 0.0
      %2053 = vmatprep.subr.mxu0 0.0
      %2054 = vmatpush1.msra.mxu0 0.0
      %2055 = vmatprep.subr.mxu0 0.0
      %2056 = vmatpush1.msra.mxu0 0.0
      %2057 = vmatprep.subr.mxu0 0.0
      %2058 = vmatpush1.msra.mxu0 0.0
      %2059 = vmatprep.subr.mxu0 0.0
      %2060 = vmatpush1.msra.mxu0 0.0
      %2061 = vmatprep.subr.mxu0 0.0
      %2062 = vmatpush1.msra.mxu0 0.0
      %2063 = vmatprep.subr.mxu0 %v1006
      %2064 = vmatpush1.msra.mxu0 %v1004
      %2065 = vmatprep.subr.mxu0 0.0
      %2066 = vmatpush2.msra.mxu0 0.0
      %2067 = vmatprep.subr.mxu0 0.0
      %2068 = vmatpush2.msra.mxu0 0.0
      %2069 = vmatprep.subr.mxu0 0.0
      %2070 = vmatpush2.msra.mxu0 0.0
      %2071 = vmatprep.subr.mxu0 0.0
      %2072 = vmatpush2.msra.mxu0 0.0
      %2073 = vmatprep.subr.mxu0 0.0
      %2074 = vmatpush2.msra.mxu0 0.0
      %2075 = vmatprep.subr.mxu0 0.0
      %2076 = vmatpush2.msra.mxu0 0.0
      %2077 = vmatprep.subr.mxu0 0.0
      %2078 = vmatpush2.msra.mxu0 0.0
      %2079 = vmatprep.subr.mxu0 0.0
      %2080 = vmatpush2.msra.mxu0 0.0
      %2081 = vmatprep.subr.mxu0 0.0
      %2082 = vmatpush2.msra.mxu0 0.0
      %2083 = vmatprep.subr.mxu0 0.0
      %2084 = vmatpush2.msra.mxu0 0.0
      %2085 = vmatprep.subr.mxu0 0.0
      %2086 = vmatpush2.msra.mxu0 0.0
      %2087 = vmatprep.subr.mxu0 0.0
      %2088 = vmatpush2.msra.mxu0 0.0
      %2089 = vmatprep.subr.mxu0 0.0
      %2090 = vmatpush2.msra.mxu0 0.0
      %2091 = vmatprep.subr.mxu0 0.0
      %2092 = vmatpush2.msra.mxu0 0.0
      %2093 = vmatprep.subr.mxu0 0.0
      %2094 = vmatpush2.msra.mxu0 0.0
      %2095 = vmatprep.subr.mxu0 0.0
      %2096 = vmatpush2.msra.mxu0 0.0
      %2097 = vmatprep.mubr.f32.mxu0 0.0
      %2098 = vmatmul.mubr.f32.gmra.mxu0 %v1938
      %v2099 = vpop.f32.mrf.mxu0
      %v2100 = vadd.f32 0.0, %v2099
      %v2101 = vpop.f32.mrf.mxu0
      %v2102 = vadd.f32 0.0, %v2101
      %2103 = vmatprep.mubr.f32.mxu0 0.0
      %2104 = vmatmul.mubr.f32.gmra.mxu0 %v1941
      %v2105 = vpop.f32.mrf.mxu0
      %v2106 = vadd.f32 0.0, %v2105
      %v2107 = vpop.f32.mrf.mxu0
      %v2108 = vadd.f32 0.0, %v2107
      %2109 = vmatprep.mubr.f32.mxu0 0.0
      %2110 = vmatmul.mubr.f32.gmra.mxu0 %v1944
      %v2111 = vpop.f32.mrf.mxu0
      %v2112 = vadd.f32 0.0, %v2111
      %v2113 = vpop.f32.mrf.mxu0
      %v2114 = vadd.f32 0.0, %v2113
      %2115 = vmatprep.mubr.f32.mxu0 0.0
      %2116 = vmatmul.mubr.f32.gmra.mxu0 %v1947
      %v2117 = vpop.f32.mrf.mxu0
      %v2118 = vadd.f32 0.0, %v2117
      %v2119 = vpop.f32.mrf.mxu0
      %v2120 = vadd.f32 0.0, %v2119
      %2121 = vmatprep.mubr.f32.mxu0 0.0
      %2122 = vmatmul.mubr.f32.gmra.mxu0 %v1950
      %v2123 = vpop.f32.mrf.mxu0
      %v2124 = vadd.f32 0.0, %v2123
      %v2125 = vpop.f32.mrf.mxu0
      %v2126 = vadd.f32 0.0, %v2125
      %2127 = vmatprep.mubr.f32.mxu0 0.0
      %2128 = vmatmul.mubr.f32.gmra.mxu0 %v1953
      %v2129 = vpop.f32.mrf.mxu0
      %v2130 = vadd.f32 0.0, %v2129
      %v2131 = vpop.f32.mrf.mxu0
      %v2132 = vadd.f32 0.0, %v2131
      %2133 = vmatprep.mubr.f32.mxu0 0.0
      %2134 = vmatmul.mubr.f32.gmra.mxu0 %v1956
      %v2135 = vpop.f32.mrf.mxu0
      %v2136 = vadd.f32 0.0, %v2135
      %v2137 = vpop.f32.mrf.mxu0
      %v2138 = vadd.f32 0.0, %v2137
      %2139 = vmatprep.mubr.f32.mxu0 0.0
      %2140 = vmatmul.mubr.f32.gmra.mxu0 %v1959
      %v2141 = vpop.f32.mrf.mxu0
      %v2142 = vadd.f32 0.0, %v2141
      %v2143 = vpop.f32.mrf.mxu0
      %v2144 = vadd.f32 0.0, %v2143
      %2145 = vmatprep.mubr.f32.mxu0 0.0
      %2146 = vmatmul.mubr.f32.gmra.mxu0 %v1962
      %v2147 = vpop.f32.mrf.mxu0
      %v2148 = vadd.f32 0.0, %v2147
      %v2149 = vpop.f32.mrf.mxu0
      %v2150 = vadd.f32 0.0, %v2149
      %2151 = vmatprep.mubr.f32.mxu0 0.0
      %2152 = vmatmul.mubr.f32.gmra.mxu0 %v1965
      %v2153 = vpop.f32.mrf.mxu0
      %v2154 = vadd.f32 0.0, %v2153
      %v2155 = vpop.f32.mrf.mxu0
      %v2156 = vadd.f32 0.0, %v2155
      %2157 = vmatprep.mubr.f32.mxu0 0.0
      %2158 = vmatmul.mubr.f32.gmra.mxu0 %v1968
      %v2159 = vpop.f32.mrf.mxu0
      %v2160 = vadd.f32 0.0, %v2159
      %v2161 = vpop.f32.mrf.mxu0
      %v2162 = vadd.f32 0.0, %v2161
      %2163 = vmatprep.mubr.f32.mxu0 0.0
      %2164 = vmatmul.mubr.f32.gmra.mxu0 %v1971
      %v2165 = vpop.f32.mrf.mxu0
      %v2166 = vadd.f32 0.0, %v2165
      %v2167 = vpop.f32.mrf.mxu0
      %v2168 = vadd.f32 0.0, %v2167
      %2169 = vmatprep.mubr.f32.mxu0 0.0
      %2170 = vmatmul.mubr.f32.gmra.mxu0 %v1974
      %v2171 = vpop.f32.mrf.mxu0
      %v2172 = vadd.f32 0.0, %v2171
      %v2173 = vpop.f32.mrf.mxu0
      %v2174 = vadd.f32 0.0, %v2173
      %2175 = vmatprep.mubr.f32.mxu0 0.0
      %2176 = vmatmul.mubr.f32.gmra.mxu0 %v1977
      %v2177 = vpop.f32.mrf.mxu0
      %v2178 = vadd.f32 0.0, %v2177
      %v2179 = vpop.f32.mrf.mxu0
      %v2180 = vadd.f32 0.0, %v2179
      %2181 = vmatprep.mubr.f32.mxu0 0.0
      %2182 = vmatmul.mubr.f32.gmra.mxu0 %v1980
      %v2183 = vpop.f32.mrf.mxu0
      %v2184 = vadd.f32 0.0, %v2183
      %v2185 = vpop.f32.mrf.mxu0
      %v2186 = vadd.f32 0.0, %v2185
      %2187 = vmatprep.mubr.f32.mxu0 0.0
      %2188 = vmatmul.mubr.f32.gmra.mxu0 %v1983
      %v2189 = vpop.f32.mrf.mxu0
      %v2190 = vadd.f32 0.0, %v2189
      %v2191 = vpop.f32.mrf.mxu0
      %v2192 = vadd.f32 0.0, %v2191
      %2193 = vmatprep.mubr.f32.mxu0 0.0
      %2194 = vmatmul.mubr.f32.gmra.mxu0 %v1986
      %v2195 = vpop.f32.mrf.mxu0
      %v2196 = vadd.f32 0.0, %v2195
      %v2197 = vpop.f32.mrf.mxu0
      %v2198 = vadd.f32 0.0, %v2197
      %2199 = vmatprep.mubr.f32.mxu0 0.0
      %2200 = vmatmul.mubr.f32.gmra.mxu0 %v1989
      %v2201 = vpop.f32.mrf.mxu0
      %v2202 = vadd.f32 0.0, %v2201
      %v2203 = vpop.f32.mrf.mxu0
      %v2204 = vadd.f32 0.0, %v2203
      %2205 = vmatprep.mubr.f32.mxu0 0.0
      %2206 = vmatmul.mubr.f32.gmra.mxu0 %v1992
      %v2207 = vpop.f32.mrf.mxu0
      %v2208 = vadd.f32 0.0, %v2207
      %v2209 = vpop.f32.mrf.mxu0
      %v2210 = vadd.f32 0.0, %v2209
      %2211 = vmatprep.mubr.f32.mxu0 0.0
      %2212 = vmatmul.mubr.f32.gmra.mxu0 %v1995
      %v2213 = vpop.f32.mrf.mxu0
      %v2214 = vadd.f32 0.0, %v2213
      %v2215 = vpop.f32.mrf.mxu0
      %v2216 = vadd.f32 0.0, %v2215
      %2217 = vmatprep.mubr.f32.mxu0 0.0
      %2218 = vmatmul.mubr.f32.gmra.mxu0 %v1998
      %v2219 = vpop.f32.mrf.mxu0
      %v2220 = vadd.f32 0.0, %v2219
      %v2221 = vpop.f32.mrf.mxu0
      %v2222 = vadd.f32 0.0, %v2221
      %2223 = vmatprep.mubr.f32.mxu0 0.0
      %2224 = vmatmul.mubr.f32.gmra.mxu0 %v2001
      %v2225 = vpop.f32.mrf.mxu0
      %v2226 = vadd.f32 0.0, %v2225
      %v2227 = vpop.f32.mrf.mxu0
      %v2228 = vadd.f32 0.0, %v2227
      %2229 = vmatprep.mubr.f32.mxu0 0.0
      %2230 = vmatmul.mubr.f32.gmra.mxu0 %v2004
      %v2231 = vpop.f32.mrf.mxu0
      %v2232 = vadd.f32 0.0, %v2231
      %v2233 = vpop.f32.mrf.mxu0
      %v2234 = vadd.f32 0.0, %v2233
      %2235 = vmatprep.mubr.f32.mxu0 0.0
      %2236 = vmatmul.mubr.f32.gmra.mxu0 %v2007
      %v2237 = vpop.f32.mrf.mxu0
      %v2238 = vadd.f32 0.0, %v2237
      %v2239 = vpop.f32.mrf.mxu0
      %v2240 = vadd.f32 0.0, %v2239
      %2241 = vmatprep.mubr.f32.mxu0 0.0
      %2242 = vmatmul.mubr.f32.gmra.mxu0 %v2010
      %v2243 = vpop.f32.mrf.mxu0
      %v2244 = vadd.f32 0.0, %v2243
      %v2245 = vpop.f32.mrf.mxu0
      %v2246 = vadd.f32 0.0, %v2245
      %2247 = vmatprep.mubr.f32.mxu0 0.0
      %2248 = vmatmul.mubr.f32.gmra.mxu0 %v2013
      %v2249 = vpop.f32.mrf.mxu0
      %v2250 = vadd.f32 0.0, %v2249
      %v2251 = vpop.f32.mrf.mxu0
      %v2252 = vadd.f32 0.0, %v2251
      %2253 = vmatprep.mubr.f32.mxu0 0.0
      %2254 = vmatmul.mubr.f32.gmra.mxu0 %v2016
      %v2255 = vpop.f32.mrf.mxu0
      %v2256 = vadd.f32 0.0, %v2255
      %v2257 = vpop.f32.mrf.mxu0
      %v2258 = vadd.f32 0.0, %v2257
      %2259 = vmatprep.mubr.f32.mxu0 0.0
      %2260 = vmatmul.mubr.f32.gmra.mxu0 %v2019
      %v2261 = vpop.f32.mrf.mxu0
      %v2262 = vadd.f32 0.0, %v2261
      %v2263 = vpop.f32.mrf.mxu0
      %v2264 = vadd.f32 0.0, %v2263
      %2265 = vmatprep.mubr.f32.mxu0 0.0
      %2266 = vmatmul.mubr.f32.gmra.mxu0 %v2022
      %v2267 = vpop.f32.mrf.mxu0
      %v2268 = vadd.f32 0.0, %v2267
      %v2269 = vpop.f32.mrf.mxu0
      %v2270 = vadd.f32 0.0, %v2269
      %2271 = vmatprep.mubr.f32.mxu0 0.0
      %2272 = vmatmul.mubr.f32.gmra.mxu0 %v2025
      %v2273 = vpop.f32.mrf.mxu0
      %v2274 = vadd.f32 0.0, %v2273
      %v2275 = vpop.f32.mrf.mxu0
      %v2276 = vadd.f32 0.0, %v2275
      %2277 = vmatprep.mubr.f32.mxu0 0.0
      %2278 = vmatmul.mubr.f32.gmra.mxu0 %v2028
      %v2279 = vpop.f32.mrf.mxu0
      %v2280 = vadd.f32 0.0, %v2279
      %v2281 = vpop.f32.mrf.mxu0
      %v2282 = vadd.f32 0.0, %v2281
      %2283 = vmatprep.mubr.f32.mxu0 0.0
      %2284 = vmatmul.mubr.f32.gmra.mxu0 %v2031
      %v2285 = vpop.f32.mrf.mxu0
      %v2286 = vadd.f32 0.0, %v2285
      %v2287 = vpop.f32.mrf.mxu0
      %v2288 = vadd.f32 0.0, %v2287
      %2289 = vdwg.mxu0
      %2290 = vxpose.xlu0.b32.start [1/16] %v986, 128
      %2291 = vxpose.xlu0.b32.cont [2/16] 0.0, 128
      %2292 = vxpose.xlu0.b32.cont [3/16] 0.0, 128
      %2293 = vxpose.xlu0.b32.cont [4/16] 0.0, 128
      %2294 = vxpose.xlu0.b32.cont [5/16] 0.0, 128
      %2295 = vxpose.xlu0.b32.cont [6/16] 0.0, 128
      %2296 = vxpose.xlu0.b32.cont [7/16] 0.0, 128
      %2297 = vxpose.xlu0.b32.cont [8/16] 0.0, 128
      %2298 = vxpose.xlu0.b32.cont [9/16] 0.0, 128
      %2299 = vxpose.xlu0.b32.cont [10/16] 0.0, 128
      %2300 = vxpose.xlu0.b32.cont [11/16] 0.0, 128
      %2301 = vxpose.xlu0.b32.cont [12/16] 0.0, 128
      %2302 = vxpose.xlu0.b32.cont [13/16] 0.0, 128
      %2303 = vxpose.xlu0.b32.cont [14/16] 0.0, 128
      %2304 = vxpose.xlu0.b32.cont [15/16] 0.0, 128
      %2305 = vxpose.xlu0.b32.end [16/16] 0.0, 128
      %v2306 = vpop.trf.xlu0
      %v2307 = vpop.trf.xlu0
      %v2308 = vpop.trf.xlu0
      %v2309 = vpop.trf.xlu0
      %v2310 = vpop.trf.xlu0
      %v2311 = vpop.trf.xlu0
      %v2312 = vpop.trf.xlu0
      %v2313 = vpop.trf.xlu0
      %v2314 = vpop.trf.xlu0
      %v2315 = vpop.trf.xlu0
      %v2316 = vpop.trf.xlu0
      %v2317 = vpop.trf.xlu0
      %v2318 = vpop.trf.xlu0
      %v2319 = vpop.trf.xlu0
      %v2320 = vpop.trf.xlu0
      %v2321 = vpop.trf.xlu0
      %2322 = vxpose.xlu0.b32.start [1/16] %v988, 128
      %2323 = vxpose.xlu0.b32.cont [2/16] 0.0, 128
      %2324 = vxpose.xlu0.b32.cont [3/16] 0.0, 128
      %2325 = vxpose.xlu0.b32.cont [4/16] 0.0, 128
      %2326 = vxpose.xlu0.b32.cont [5/16] 0.0, 128
      %2327 = vxpose.xlu0.b32.cont [6/16] 0.0, 128
      %2328 = vxpose.xlu0.b32.cont [7/16] 0.0, 128
      %2329 = vxpose.xlu0.b32.cont [8/16] 0.0, 128
      %2330 = vxpose.xlu0.b32.cont [9/16] 0.0, 128
      %2331 = vxpose.xlu0.b32.cont [10/16] 0.0, 128
      %2332 = vxpose.xlu0.b32.cont [11/16] 0.0, 128
      %2333 = vxpose.xlu0.b32.cont [12/16] 0.0, 128
      %2334 = vxpose.xlu0.b32.cont [13/16] 0.0, 128
      %2335 = vxpose.xlu0.b32.cont [14/16] 0.0, 128
      %2336 = vxpose.xlu0.b32.cont [15/16] 0.0, 128
      %2337 = vxpose.xlu0.b32.end [16/16] 0.0, 128
      %v2338 = vpop.trf.xlu0
      %v2339 = vpop.trf.xlu0
      %v2340 = vpop.trf.xlu0
      %v2341 = vpop.trf.xlu0
      %v2342 = vpop.trf.xlu0
      %v2343 = vpop.trf.xlu0
      %v2344 = vpop.trf.xlu0
      %v2345 = vpop.trf.xlu0
      %v2346 = vpop.trf.xlu0
      %v2347 = vpop.trf.xlu0
      %v2348 = vpop.trf.xlu0
      %v2349 = vpop.trf.xlu0
      %v2350 = vpop.trf.xlu0
      %v2351 = vpop.trf.xlu0
      %v2352 = vpop.trf.xlu0
      %v2353 = vpop.trf.xlu0
      %v2355 = vsel %vm1102, %v2306, 0
      %v2358 = vsel %vm1102, %v2307, 0
      %v2361 = vsel %vm1102, %v2308, 0
      %v2364 = vsel %vm1102, %v2309, 0
      %v2367 = vsel %vm1102, %v2310, 0
      %v2370 = vsel %vm1102, %v2311, 0
      %v2373 = vsel %vm1102, %v2312, 0
      %v2376 = vsel %vm1102, %v2313, 0
      %v2379 = vsel %vm1102, %v2314, 0
      %v2382 = vsel %vm1102, %v2315, 0
      %v2385 = vsel %vm1102, %v2316, 0
      %v2388 = vsel %vm1102, %v2317, 0
      %v2391 = vsel %vm1102, %v2318, 0
      %v2394 = vsel %vm1102, %v2319, 0
      %v2397 = vsel %vm1102, %v2320, 0
      %v2400 = vsel %vm1102, %v2321, 0
      %v2403 = vsel %vm1102, %v2338, 0
      %v2406 = vsel %vm1102, %v2339, 0
      %v2409 = vsel %vm1102, %v2340, 0
      %v2412 = vsel %vm1102, %v2341, 0
      %v2415 = vsel %vm1102, %v2342, 0
      %v2418 = vsel %vm1102, %v2343, 0
      %v2421 = vsel %vm1102, %v2344, 0
      %v2424 = vsel %vm1102, %v2345, 0
      %v2427 = vsel %vm1102, %v2346, 0
      %v2430 = vsel %vm1102, %v2347, 0
      %v2433 = vsel %vm1102, %v2348, 0
      %v2436 = vsel %vm1102, %v2349, 0
      %v2439 = vsel %vm1102, %v2350, 0
      %v2442 = vsel %vm1102, %v2351, 0
      %v2445 = vsel %vm1102, %v2352, 0
      %v2448 = vsel %vm1102, %v2353, 0
      %2450 = vmatprep.subr.mxu0 0.0
      %2451 = vmatpush1.msra.mxu0 0.0
      %2452 = vmatprep.subr.mxu0 0.0
      %2453 = vmatpush1.msra.mxu0 0.0
      %2454 = vmatprep.subr.mxu0 0.0
      %2455 = vmatpush1.msra.mxu0 0.0
      %2456 = vmatprep.subr.mxu0 0.0
      %2457 = vmatpush1.msra.mxu0 0.0
      %2458 = vmatprep.subr.mxu0 0.0
      %2459 = vmatpush1.msra.mxu0 0.0
      %2460 = vmatprep.subr.mxu0 0.0
      %2461 = vmatpush1.msra.mxu0 0.0
      %2462 = vmatprep.subr.mxu0 0.0
      %2463 = vmatpush1.msra.mxu0 0.0
      %2464 = vmatprep.subr.mxu0 0.0
      %2465 = vmatpush1.msra.mxu0 0.0
      %2466 = vmatprep.subr.mxu0 0.0
      %2467 = vmatpush1.msra.mxu0 0.0
      %2468 = vmatprep.subr.mxu0 0.0
      %2469 = vmatpush1.msra.mxu0 0.0
      %2470 = vmatprep.subr.mxu0 0.0
      %2471 = vmatpush1.msra.mxu0 0.0
      %2472 = vmatprep.subr.mxu0 0.0
      %2473 = vmatpush1.msra.mxu0 0.0
      %2474 = vmatprep.subr.mxu0 0.0
      %2475 = vmatpush1.msra.mxu0 0.0
      %2476 = vmatprep.subr.mxu0 0.0
      %2477 = vmatpush1.msra.mxu0 0.0
      %2478 = vmatprep.subr.mxu0 0.0
      %2479 = vmatpush1.msra.mxu0 0.0
      %2480 = vmatprep.subr.mxu0 %v1012
      %2481 = vmatpush1.msra.mxu0 %v1010
      %2482 = vmatprep.subr.mxu0 0.0
      %2483 = vmatpush2.msra.mxu0 0.0
      %2484 = vmatprep.subr.mxu0 0.0
      %2485 = vmatpush2.msra.mxu0 0.0
      %2486 = vmatprep.subr.mxu0 0.0
      %2487 = vmatpush2.msra.mxu0 0.0
      %2488 = vmatprep.subr.mxu0 0.0
      %2489 = vmatpush2.msra.mxu0 0.0
      %2490 = vmatprep.subr.mxu0 0.0
      %2491 = vmatpush2.msra.mxu0 0.0
      %2492 = vmatprep.subr.mxu0 0.0
      %2493 = vmatpush2.msra.mxu0 0.0
      %2494 = vmatprep.subr.mxu0 0.0
      %2495 = vmatpush2.msra.mxu0 0.0
      %2496 = vmatprep.subr.mxu0 0.0
      %2497 = vmatpush2.msra.mxu0 0.0
      %2498 = vmatprep.subr.mxu0 0.0
      %2499 = vmatpush2.msra.mxu0 0.0
      %2500 = vmatprep.subr.mxu0 0.0
      %2501 = vmatpush2.msra.mxu0 0.0
      %2502 = vmatprep.subr.mxu0 0.0
      %2503 = vmatpush2.msra.mxu0 0.0
      %2504 = vmatprep.subr.mxu0 0.0
      %2505 = vmatpush2.msra.mxu0 0.0
      %2506 = vmatprep.subr.mxu0 0.0
      %2507 = vmatpush2.msra.mxu0 0.0
      %2508 = vmatprep.subr.mxu0 0.0
      %2509 = vmatpush2.msra.mxu0 0.0
      %2510 = vmatprep.subr.mxu0 0.0
      %2511 = vmatpush2.msra.mxu0 0.0
      %2512 = vmatprep.subr.mxu0 0.0
      %2513 = vmatpush2.msra.mxu0 0.0
      %2514 = vmatprep.mubr.f32.mxu0 0.0
      %2515 = vmatmul.mubr.f32.gmra.mxu0 %v2355
      %v2516 = vpop.f32.mrf.mxu0
      %v2517 = vadd.f32 0.0, %v2516
      %v2518 = vpop.f32.mrf.mxu0
      %v2519 = vadd.f32 0.0, %v2518
      %2520 = vmatprep.mubr.f32.mxu0 0.0
      %2521 = vmatmul.mubr.f32.gmra.mxu0 %v2358
      %v2522 = vpop.f32.mrf.mxu0
      %v2523 = vadd.f32 0.0, %v2522
      %v2524 = vpop.f32.mrf.mxu0
      %v2525 = vadd.f32 0.0, %v2524
      %2526 = vmatprep.mubr.f32.mxu0 0.0
      %2527 = vmatmul.mubr.f32.gmra.mxu0 %v2361
      %v2528 = vpop.f32.mrf.mxu0
      %v2529 = vadd.f32 0.0, %v2528
      %v2530 = vpop.f32.mrf.mxu0
      %v2531 = vadd.f32 0.0, %v2530
      %2532 = vmatprep.mubr.f32.mxu0 0.0
      %2533 = vmatmul.mubr.f32.gmra.mxu0 %v2364
      %v2534 = vpop.f32.mrf.mxu0
      %v2535 = vadd.f32 0.0, %v2534
      %v2536 = vpop.f32.mrf.mxu0
      %v2537 = vadd.f32 0.0, %v2536
      %2538 = vmatprep.mubr.f32.mxu0 0.0
      %2539 = vmatmul.mubr.f32.gmra.mxu0 %v2367
      %v2540 = vpop.f32.mrf.mxu0
      %v2541 = vadd.f32 0.0, %v2540
      %v2542 = vpop.f32.mrf.mxu0
      %v2543 = vadd.f32 0.0, %v2542
      %2544 = vmatprep.mubr.f32.mxu0 0.0
      %2545 = vmatmul.mubr.f32.gmra.mxu0 %v2370
      %v2546 = vpop.f32.mrf.mxu0
      %v2547 = vadd.f32 0.0, %v2546
      %v2548 = vpop.f32.mrf.mxu0
      %v2549 = vadd.f32 0.0, %v2548
      %2550 = vmatprep.mubr.f32.mxu0 0.0
      %2551 = vmatmul.mubr.f32.gmra.mxu0 %v2373
      %v2552 = vpop.f32.mrf.mxu0
      %v2553 = vadd.f32 0.0, %v2552
      %v2554 = vpop.f32.mrf.mxu0
      %v2555 = vadd.f32 0.0, %v2554
      %2556 = vmatprep.mubr.f32.mxu0 0.0
      %2557 = vmatmul.mubr.f32.gmra.mxu0 %v2376
      %v2558 = vpop.f32.mrf.mxu0
      %v2559 = vadd.f32 0.0, %v2558
      %v2560 = vpop.f32.mrf.mxu0
      %v2561 = vadd.f32 0.0, %v2560
      %2562 = vmatprep.mubr.f32.mxu0 0.0
      %2563 = vmatmul.mubr.f32.gmra.mxu0 %v2379
      %v2564 = vpop.f32.mrf.mxu0
      %v2565 = vadd.f32 0.0, %v2564
      %v2566 = vpop.f32.mrf.mxu0
      %v2567 = vadd.f32 0.0, %v2566
      %2568 = vmatprep.mubr.f32.mxu0 0.0
      %2569 = vmatmul.mubr.f32.gmra.mxu0 %v2382
      %v2570 = vpop.f32.mrf.mxu0
      %v2571 = vadd.f32 0.0, %v2570
      %v2572 = vpop.f32.mrf.mxu0
      %v2573 = vadd.f32 0.0, %v2572
      %2574 = vmatprep.mubr.f32.mxu0 0.0
      %2575 = vmatmul.mubr.f32.gmra.mxu0 %v2385
      %v2576 = vpop.f32.mrf.mxu0
      %v2577 = vadd.f32 0.0, %v2576
      %v2578 = vpop.f32.mrf.mxu0
      %v2579 = vadd.f32 0.0, %v2578
      %2580 = vmatprep.mubr.f32.mxu0 0.0
      %2581 = vmatmul.mubr.f32.gmra.mxu0 %v2388
      %v2582 = vpop.f32.mrf.mxu0
      %v2583 = vadd.f32 0.0, %v2582
      %v2584 = vpop.f32.mrf.mxu0
      %v2585 = vadd.f32 0.0, %v2584
      %2586 = vmatprep.mubr.f32.mxu0 0.0
      %2587 = vmatmul.mubr.f32.gmra.mxu0 %v2391
      %v2588 = vpop.f32.mrf.mxu0
      %v2589 = vadd.f32 0.0, %v2588
      %v2590 = vpop.f32.mrf.mxu0
      %v2591 = vadd.f32 0.0, %v2590
      %2592 = vmatprep.mubr.f32.mxu0 0.0
      %2593 = vmatmul.mubr.f32.gmra.mxu0 %v2394
      %v2594 = vpop.f32.mrf.mxu0
      %v2595 = vadd.f32 0.0, %v2594
      %v2596 = vpop.f32.mrf.mxu0
      %v2597 = vadd.f32 0.0, %v2596
      %2598 = vmatprep.mubr.f32.mxu0 0.0
      %2599 = vmatmul.mubr.f32.gmra.mxu0 %v2397
      %v2600 = vpop.f32.mrf.mxu0
      %v2601 = vadd.f32 0.0, %v2600
      %v2602 = vpop.f32.mrf.mxu0
      %v2603 = vadd.f32 0.0, %v2602
      %2604 = vmatprep.mubr.f32.mxu0 0.0
      %2605 = vmatmul.mubr.f32.gmra.mxu0 %v2400
      %v2606 = vpop.f32.mrf.mxu0
      %v2607 = vadd.f32 0.0, %v2606
      %v2608 = vpop.f32.mrf.mxu0
      %v2609 = vadd.f32 0.0, %v2608
      %2610 = vmatprep.mubr.f32.mxu0 0.0
      %2611 = vmatmul.mubr.f32.gmra.mxu0 %v2403
      %v2612 = vpop.f32.mrf.mxu0
      %v2613 = vadd.f32 0.0, %v2612
      %v2614 = vpop.f32.mrf.mxu0
      %v2615 = vadd.f32 0.0, %v2614
      %2616 = vmatprep.mubr.f32.mxu0 0.0
      %2617 = vmatmul.mubr.f32.gmra.mxu0 %v2406
      %v2618 = vpop.f32.mrf.mxu0
      %v2619 = vadd.f32 0.0, %v2618
      %v2620 = vpop.f32.mrf.mxu0
      %v2621 = vadd.f32 0.0, %v2620
      %2622 = vmatprep.mubr.f32.mxu0 0.0
      %2623 = vmatmul.mubr.f32.gmra.mxu0 %v2409
      %v2624 = vpop.f32.mrf.mxu0
      %v2625 = vadd.f32 0.0, %v2624
      %v2626 = vpop.f32.mrf.mxu0
      %v2627 = vadd.f32 0.0, %v2626
      %2628 = vmatprep.mubr.f32.mxu0 0.0
      %2629 = vmatmul.mubr.f32.gmra.mxu0 %v2412
      %v2630 = vpop.f32.mrf.mxu0
      %v2631 = vadd.f32 0.0, %v2630
      %v2632 = vpop.f32.mrf.mxu0
      %v2633 = vadd.f32 0.0, %v2632
      %2634 = vmatprep.mubr.f32.mxu0 0.0
      %2635 = vmatmul.mubr.f32.gmra.mxu0 %v2415
      %v2636 = vpop.f32.mrf.mxu0
      %v2637 = vadd.f32 0.0, %v2636
      %v2638 = vpop.f32.mrf.mxu0
      %v2639 = vadd.f32 0.0, %v2638
      %2640 = vmatprep.mubr.f32.mxu0 0.0
      %2641 = vmatmul.mubr.f32.gmra.mxu0 %v2418
      %v2642 = vpop.f32.mrf.mxu0
      %v2643 = vadd.f32 0.0, %v2642
      %v2644 = vpop.f32.mrf.mxu0
      %v2645 = vadd.f32 0.0, %v2644
      %2646 = vmatprep.mubr.f32.mxu0 0.0
      %2647 = vmatmul.mubr.f32.gmra.mxu0 %v2421
      %v2648 = vpop.f32.mrf.mxu0
      %v2649 = vadd.f32 0.0, %v2648
      %v2650 = vpop.f32.mrf.mxu0
      %v2651 = vadd.f32 0.0, %v2650
      %2652 = vmatprep.mubr.f32.mxu0 0.0
      %2653 = vmatmul.mubr.f32.gmra.mxu0 %v2424
      %v2654 = vpop.f32.mrf.mxu0
      %v2655 = vadd.f32 0.0, %v2654
      %v2656 = vpop.f32.mrf.mxu0
      %v2657 = vadd.f32 0.0, %v2656
      %2658 = vmatprep.mubr.f32.mxu0 0.0
      %2659 = vmatmul.mubr.f32.gmra.mxu0 %v2427
      %v2660 = vpop.f32.mrf.mxu0
      %v2661 = vadd.f32 0.0, %v2660
      %v2662 = vpop.f32.mrf.mxu0
      %v2663 = vadd.f32 0.0, %v2662
      %2664 = vmatprep.mubr.f32.mxu0 0.0
      %2665 = vmatmul.mubr.f32.gmra.mxu0 %v2430
      %v2666 = vpop.f32.mrf.mxu0
      %v2667 = vadd.f32 0.0, %v2666
      %v2668 = vpop.f32.mrf.mxu0
      %v2669 = vadd.f32 0.0, %v2668
      %2670 = vmatprep.mubr.f32.mxu0 0.0
      %2671 = vmatmul.mubr.f32.gmra.mxu0 %v2433
      %v2672 = vpop.f32.mrf.mxu0
      %v2673 = vadd.f32 0.0, %v2672
      %v2674 = vpop.f32.mrf.mxu0
      %v2675 = vadd.f32 0.0, %v2674
      %2676 = vmatprep.mubr.f32.mxu0 0.0
      %2677 = vmatmul.mubr.f32.gmra.mxu0 %v2436
      %v2678 = vpop.f32.mrf.mxu0
      %v2679 = vadd.f32 0.0, %v2678
      %v2680 = vpop.f32.mrf.mxu0
      %v2681 = vadd.f32 0.0, %v2680
      %2682 = vmatprep.mubr.f32.mxu0 0.0
      %2683 = vmatmul.mubr.f32.gmra.mxu0 %v2439
      %v2684 = vpop.f32.mrf.mxu0
      %v2685 = vadd.f32 0.0, %v2684
      %v2686 = vpop.f32.mrf.mxu0
      %v2687 = vadd.f32 0.0, %v2686
      %2688 = vmatprep.mubr.f32.mxu0 0.0
      %2689 = vmatmul.mubr.f32.gmra.mxu0 %v2442
      %v2690 = vpop.f32.mrf.mxu0
      %v2691 = vadd.f32 0.0, %v2690
      %v2692 = vpop.f32.mrf.mxu0
      %v2693 = vadd.f32 0.0, %v2692
      %2694 = vmatprep.mubr.f32.mxu0 0.0
      %2695 = vmatmul.mubr.f32.gmra.mxu0 %v2445
      %v2696 = vpop.f32.mrf.mxu0
      %v2697 = vadd.f32 0.0, %v2696
      %v2698 = vpop.f32.mrf.mxu0
      %v2699 = vadd.f32 0.0, %v2698
      %2700 = vmatprep.mubr.f32.mxu0 0.0
      %2701 = vmatmul.mubr.f32.gmra.mxu0 %v2448
      %v2702 = vpop.f32.mrf.mxu0
      %v2703 = vadd.f32 0.0, %v2702
      %v2704 = vpop.f32.mrf.mxu0
      %v2705 = vadd.f32 0.0, %v2704
      %2706 = vdwg.mxu0
      %v2707 = vmul.f32 %v1266, 0.35355338
      %v2708 = vmul.f32 %v1268, 0.35355338
      %v2709 = vmul.f32 %v1272, 0.35355338
      %v2710 = vmul.f32 %v1274, 0.35355338
      %v2711 = vmul.f32 %v1278, 0.35355338
      %v2712 = vmul.f32 %v1280, 0.35355338
      %v2713 = vmul.f32 %v1284, 0.35355338
      %v2714 = vmul.f32 %v1286, 0.35355338
      %v2715 = vmul.f32 %v1290, 0.35355338
      %v2716 = vmul.f32 %v1292, 0.35355338
      %v2717 = vmul.f32 %v1296, 0.35355338
      %v2718 = vmul.f32 %v1298, 0.35355338
      %v2719 = vmul.f32 %v1302, 0.35355338
      %v2720 = vmul.f32 %v1304, 0.35355338
      %v2721 = vmul.f32 %v1308, 0.35355338
      %v2722 = vmul.f32 %v1310, 0.35355338
      %v2723 = vmul.f32 %v1314, 0.35355338
      %v2724 = vmul.f32 %v1316, 0.35355338
      %v2725 = vmul.f32 %v1320, 0.35355338
      %v2726 = vmul.f32 %v1322, 0.35355338
      %v2727 = vmul.f32 %v1326, 0.35355338
      %v2728 = vmul.f32 %v1328, 0.35355338
      %v2729 = vmul.f32 %v1332, 0.35355338
      %v2730 = vmul.f32 %v1334, 0.35355338
      %v2731 = vmul.f32 %v1338, 0.35355338
      %v2732 = vmul.f32 %v1340, 0.35355338
      %v2733 = vmul.f32 %v1344, 0.35355338
      %v2734 = vmul.f32 %v1346, 0.35355338
      %v2735 = vmul.f32 %v1350, 0.35355338
      %v2736 = vmul.f32 %v1352, 0.35355338
      %v2737 = vmul.f32 %v1356, 0.35355338
      %v2738 = vmul.f32 %v1358, 0.35355338
      %v2739 = vmul.f32 %v1362, 0.35355338
      %v2740 = vmul.f32 %v1364, 0.35355338
      %v2741 = vmul.f32 %v1368, 0.35355338
      %v2742 = vmul.f32 %v1370, 0.35355338
      %v2743 = vmul.f32 %v1374, 0.35355338
      %v2744 = vmul.f32 %v1376, 0.35355338
      %v2745 = vmul.f32 %v1380, 0.35355338
      %v2746 = vmul.f32 %v1382, 0.35355338
      %v2747 = vmul.f32 %v1386, 0.35355338
      %v2748 = vmul.f32 %v1388, 0.35355338
      %v2749 = vmul.f32 %v1392, 0.35355338
      %v2750 = vmul.f32 %v1394, 0.35355338
      %v2751 = vmul.f32 %v1398, 0.35355338
      %v2752 = vmul.f32 %v1400, 0.35355338
      %v2753 = vmul.f32 %v1404, 0.35355338
      %v2754 = vmul.f32 %v1406, 0.35355338
      %v2755 = vmul.f32 %v1410, 0.35355338
      %v2756 = vmul.f32 %v1412, 0.35355338
      %v2757 = vmul.f32 %v1416, 0.35355338
      %v2758 = vmul.f32 %v1418, 0.35355338
      %v2759 = vmul.f32 %v1422, 0.35355338
      %v2760 = vmul.f32 %v1424, 0.35355338
      %v2761 = vmul.f32 %v1428, 0.35355338
      %v2762 = vmul.f32 %v1430, 0.35355338
      %v2763 = vmul.f32 %v1434, 0.35355338
      %v2764 = vmul.f32 %v1436, 0.35355338
      %v2765 = vmul.f32 %v1440, 0.35355338
      %v2766 = vmul.f32 %v1442, 0.35355338
      %v2767 = vmul.f32 %v1446, 0.35355338
      %v2768 = vmul.f32 %v1448, 0.35355338
      %v2769 = vmul.f32 %v1452, 0.35355338
      %v2770 = vmul.f32 %v1454, 0.35355338
      %v2771 = vmul.f32 %v1683, 0.35355338
      %v2772 = vmul.f32 %v1685, 0.35355338
      %v2773 = vmul.f32 %v1689, 0.35355338
      %v2774 = vmul.f32 %v1691, 0.35355338
      %v2775 = vmul.f32 %v1695, 0.35355338
      %v2776 = vmul.f32 %v1697, 0.35355338
      %v2777 = vmul.f32 %v1701, 0.35355338
      %v2778 = vmul.f32 %v1703, 0.35355338
      %v2779 = vmul.f32 %v1707, 0.35355338
      %v2780 = vmul.f32 %v1709, 0.35355338
      %v2781 = vmul.f32 %v1713, 0.35355338
      %v2782 = vmul.f32 %v1715, 0.35355338
      %v2783 = vmul.f32 %v1719, 0.35355338
      %v2784 = vmul.f32 %v1721, 0.35355338
      %v2785 = vmul.f32 %v1725, 0.35355338
      %v2786 = vmul.f32 %v1727, 0.35355338
      %v2787 = vmul.f32 %v1731, 0.35355338
      %v2788 = vmul.f32 %v1733, 0.35355338
      %v2789 = vmul.f32 %v1737, 0.35355338
      %v2790 = vmul.f32 %v1739, 0.35355338
      %v2791 = vmul.f32 %v1743, 0.35355338
      %v2792 = vmul.f32 %v1745, 0.35355338
      %v2793 = vmul.f32 %v1749, 0.35355338
      %v2794 = vmul.f32 %v1751, 0.35355338
      %v2795 = vmul.f32 %v1755, 0.35355338
      %v2796 = vmul.f32 %v1757, 0.35355338
      %v2797 = vmul.f32 %v1761, 0.35355338
      %v2798 = vmul.f32 %v1763, 0.35355338
      %v2799 = vmul.f32 %v1767, 0.35355338
      %v2800 = vmul.f32 %v1769, 0.35355338
      %v2801 = vmul.f32 %v1773, 0.35355338
      %v2802 = vmul.f32 %v1775, 0.35355338
      %v2803 = vmul.f32 %v1779, 0.35355338
      %v2804 = vmul.f32 %v1781, 0.35355338
      %v2805 = vmul.f32 %v1785, 0.35355338
      %v2806 = vmul.f32 %v1787, 0.35355338
      %v2807 = vmul.f32 %v1791, 0.35355338
      %v2808 = vmul.f32 %v1793, 0.35355338
      %v2809 = vmul.f32 %v1797, 0.35355338
      %v2810 = vmul.f32 %v1799, 0.35355338
      %v2811 = vmul.f32 %v1803, 0.35355338
      %v2812 = vmul.f32 %v1805, 0.35355338
      %v2813 = vmul.f32 %v1809, 0.35355338
      %v2814 = vmul.f32 %v1811, 0.35355338
      %v2815 = vmul.f32 %v1815, 0.35355338
      %v2816 = vmul.f32 %v1817, 0.35355338
      %v2817 = vmul.f32 %v1821, 0.35355338
      %v2818 = vmul.f32 %v1823, 0.35355338
      %v2819 = vmul.f32 %v1827, 0.35355338
      %v2820 = vmul.f32 %v1829, 0.35355338
      %v2821 = vmul.f32 %v1833, 0.35355338
      %v2822 = vmul.f32 %v1835, 0.35355338
      %v2823 = vmul.f32 %v1839, 0.35355338
      %v2824 = vmul.f32 %v1841, 0.35355338
      %v2825 = vmul.f32 %v1845, 0.35355338
      %v2826 = vmul.f32 %v1847, 0.35355338
      %v2827 = vmul.f32 %v1851, 0.35355338
      %v2828 = vmul.f32 %v1853, 0.35355338
      %v2829 = vmul.f32 %v1857, 0.35355338
      %v2830 = vmul.f32 %v1859, 0.35355338
      %v2831 = vmul.f32 %v1863, 0.35355338
      %v2832 = vmul.f32 %v1865, 0.35355338
      %v2833 = vmul.f32 %v1869, 0.35355338
      %v2834 = vmul.f32 %v1871, 0.35355338
      %v2835 = vmul.f32 %v2100, 0.35355338
      %v2836 = vmul.f32 %v2102, 0.35355338
      %v2837 = vmul.f32 %v2106, 0.35355338
      %v2838 = vmul.f32 %v2108, 0.35355338
      %v2839 = vmul.f32 %v2112, 0.35355338
      %v2840 = vmul.f32 %v2114, 0.35355338
      %v2841 = vmul.f32 %v2118, 0.35355338
      %v2842 = vmul.f32 %v2120, 0.35355338
      %v2843 = vmul.f32 %v2124, 0.35355338
      %v2844 = vmul.f32 %v2126, 0.35355338
      %v2845 = vmul.f32 %v2130, 0.35355338
      %v2846 = vmul.f32 %v2132, 0.35355338
      %v2847 = vmul.f32 %v2136, 0.35355338
      %v2848 = vmul.f32 %v2138, 0.35355338
      %v2849 = vmul.f32 %v2142, 0.35355338
      %v2850 = vmul.f32 %v2144, 0.35355338
      %v2851 = vmul.f32 %v2148, 0.35355338
      %v2852 = vmul.f32 %v2150, 0.35355338
      %v2853 = vmul.f32 %v2154, 0.35355338
      %v2854 = vmul.f32 %v2156, 0.35355338
      %v2855 = vmul.f32 %v2160, 0.35355338
      %v2856 = vmul.f32 %v2162, 0.35355338
      %v2857 = vmul.f32 %v2166, 0.35355338
      %v2858 = vmul.f32 %v2168, 0.35355338
      %v2859 = vmul.f32 %v2172, 0.35355338
      %v2860 = vmul.f32 %v2174, 0.35355338
      %v2861 = vmul.f32 %v2178, 0.35355338
      %v2862 = vmul.f32 %v2180, 0.35355338
      %v2863 = vmul.f32 %v2184, 0.35355338
      %v2864 = vmul.f32 %v2186, 0.35355338
      %v2865 = vmul.f32 %v2190, 0.35355338
      %v2866 = vmul.f32 %v2192, 0.35355338
      %v2867 = vmul.f32 %v2196, 0.35355338
      %v2868 = vmul.f32 %v2198, 0.35355338
      %v2869 = vmul.f32 %v2202, 0.35355338
      %v2870 = vmul.f32 %v2204, 0.35355338
      %v2871 = vmul.f32 %v2208, 0.35355338
      %v2872 = vmul.f32 %v2210, 0.35355338
      %v2873 = vmul.f32 %v2214, 0.35355338
      %v2874 = vmul.f32 %v2216, 0.35355338
      %v2875 = vmul.f32 %v2220, 0.35355338
      %v2876 = vmul.f32 %v2222, 0.35355338
      %v2877 = vmul.f32 %v2226, 0.35355338
      %v2878 = vmul.f32 %v2228, 0.35355338
      %v2879 = vmul.f32 %v2232, 0.35355338
      %v2880 = vmul.f32 %v2234, 0.35355338
      %v2881 = vmul.f32 %v2238, 0.35355338
      %v2882 = vmul.f32 %v2240, 0.35355338
      %v2883 = vmul.f32 %v2244, 0.35355338
      %v2884 = vmul.f32 %v2246, 0.35355338
      %v2885 = vmul.f32 %v2250, 0.35355338
      %v2886 = vmul.f32 %v2252, 0.35355338
      %v2887 = vmul.f32 %v2256, 0.35355338
      %v2888 = vmul.f32 %v2258, 0.35355338
      %v2889 = vmul.f32 %v2262, 0.35355338
      %v2890 = vmul.f32 %v2264, 0.35355338
      %v2891 = vmul.f32 %v2268, 0.35355338
      %v2892 = vmul.f32 %v2270, 0.35355338
      %v2893 = vmul.f32 %v2274, 0.35355338
      %v2894 = vmul.f32 %v2276, 0.35355338
      %v2895 = vmul.f32 %v2280, 0.35355338
      %v2896 = vmul.f32 %v2282, 0.35355338
      %v2897 = vmul.f32 %v2286, 0.35355338
      %v2898 = vmul.f32 %v2288, 0.35355338
      %v2899 = vmul.f32 %v2517, 0.35355338
      %v2900 = vmul.f32 %v2519, 0.35355338
      %v2901 = vmul.f32 %v2523, 0.35355338
      %v2902 = vmul.f32 %v2525, 0.35355338
      %v2903 = vmul.f32 %v2529, 0.35355338
      %v2904 = vmul.f32 %v2531, 0.35355338
      %v2905 = vmul.f32 %v2535, 0.35355338
      %v2906 = vmul.f32 %v2537, 0.35355338
      %v2907 = vmul.f32 %v2541, 0.35355338
      %v2908 = vmul.f32 %v2543, 0.35355338
      %v2909 = vmul.f32 %v2547, 0.35355338
      %v2910 = vmul.f32 %v2549, 0.35355338
      %v2911 = vmul.f32 %v2553, 0.35355338
      %v2912 = vmul.f32 %v2555, 0.35355338
      %v2913 = vmul.f32 %v2559, 0.35355338
      %v2914 = vmul.f32 %v2561, 0.35355338
      %v2915 = vmul.f32 %v2565, 0.35355338
      %v2916 = vmul.f32 %v2567, 0.35355338
      %v2917 = vmul.f32 %v2571, 0.35355338
      %v2918 = vmul.f32 %v2573, 0.35355338
      %v2919 = vmul.f32 %v2577, 0.35355338
      %v2920 = vmul.f32 %v2579, 0.35355338
      %v2921 = vmul.f32 %v2583, 0.35355338
      %v2922 = vmul.f32 %v2585, 0.35355338
      %v2923 = vmul.f32 %v2589, 0.35355338
      %v2924 = vmul.f32 %v2591, 0.35355338
      %v2925 = vmul.f32 %v2595, 0.35355338
      %v2926 = vmul.f32 %v2597, 0.35355338
      %v2927 = vmul.f32 %v2601, 0.35355338
      %v2928 = vmul.f32 %v2603, 0.35355338
      %v2929 = vmul.f32 %v2607, 0.35355338
      %v2930 = vmul.f32 %v2609, 0.35355338
      %v2931 = vmul.f32 %v2613, 0.35355338
      %v2932 = vmul.f32 %v2615, 0.35355338
      %v2933 = vmul.f32 %v2619, 0.35355338
      %v2934 = vmul.f32 %v2621, 0.35355338
      %v2935 = vmul.f32 %v2625, 0.35355338
      %v2936 = vmul.f32 %v2627, 0.35355338
      %v2937 = vmul.f32 %v2631, 0.35355338
      %v2938 = vmul.f32 %v2633, 0.35355338
      %v2939 = vmul.f32 %v2637, 0.35355338
      %v2940 = vmul.f32 %v2639, 0.35355338
      %v2941 = vmul.f32 %v2643, 0.35355338
      %v2942 = vmul.f32 %v2645, 0.35355338
      %v2943 = vmul.f32 %v2649, 0.35355338
      %v2944 = vmul.f32 %v2651, 0.35355338
      %v2945 = vmul.f32 %v2655, 0.35355338
      %v2946 = vmul.f32 %v2657, 0.35355338
      %v2947 = vmul.f32 %v2661, 0.35355338
      %v2948 = vmul.f32 %v2663, 0.35355338
      %v2949 = vmul.f32 %v2667, 0.35355338
      %v2950 = vmul.f32 %v2669, 0.35355338
      %v2951 = vmul.f32 %v2673, 0.35355338
      %v2952 = vmul.f32 %v2675, 0.35355338
      %v2953 = vmul.f32 %v2679, 0.35355338
      %v2954 = vmul.f32 %v2681, 0.35355338
      %v2955 = vmul.f32 %v2685, 0.35355338
      %v2956 = vmul.f32 %v2687, 0.35355338
      %v2957 = vmul.f32 %v2691, 0.35355338
      %v2958 = vmul.f32 %v2693, 0.35355338
      %v2959 = vmul.f32 %v2697, 0.35355338
      %v2960 = vmul.f32 %v2699, 0.35355338
      %v2961 = vmul.f32 %v2703, 0.35355338
      %v2962 = vmul.f32 %v2705, 0.35355338
      %v2963 = vmax.f32 %v2707, %v2708
      %2964 = vmax.xlane.f32.xlu0 %v2963
      %v2965 = vpop.xlane.xlu0 %2964
      %v2966 = vmax.f32 %v2709, %v2710
      %2967 = vmax.xlane.f32.xlu0 %v2966
      %v2968 = vpop.xlane.xlu0 %2967
      %v2969 = vmax.f32 %v2711, %v2712
      %2970 = vmax.xlane.f32.xlu0 %v2969
      %v2971 = vpop.xlane.xlu0 %2970
      %v2972 = vmax.f32 %v2713, %v2714
      %2973 = vmax.xlane.f32.xlu0 %v2972
      %v2974 = vpop.xlane.xlu0 %2973
      %v2975 = vmax.f32 %v2715, %v2716
      %2976 = vmax.xlane.f32.xlu0 %v2975
      %v2977 = vpop.xlane.xlu0 %2976
      %v2978 = vmax.f32 %v2717, %v2718
      %2979 = vmax.xlane.f32.xlu0 %v2978
      %v2980 = vpop.xlane.xlu0 %2979
      %v2981 = vmax.f32 %v2719, %v2720
      %2982 = vmax.xlane.f32.xlu0 %v2981
      %v2983 = vpop.xlane.xlu0 %2982
      %v2984 = vmax.f32 %v2721, %v2722
      %2985 = vmax.xlane.f32.xlu0 %v2984
      %v2986 = vpop.xlane.xlu0 %2985
      %v2987 = vmax.f32 %v2723, %v2724
      %2988 = vmax.xlane.f32.xlu0 %v2987
      %v2989 = vpop.xlane.xlu0 %2988
      %v2990 = vmax.f32 %v2725, %v2726
      %2991 = vmax.xlane.f32.xlu0 %v2990
      %v2992 = vpop.xlane.xlu0 %2991
      %v2993 = vmax.f32 %v2727, %v2728
      %2994 = vmax.xlane.f32.xlu0 %v2993
      %v2995 = vpop.xlane.xlu0 %2994
      %v2996 = vmax.f32 %v2729, %v2730
      %2997 = vmax.xlane.f32.xlu0 %v2996
      %v2998 = vpop.xlane.xlu0 %2997
      %v2999 = vmax.f32 %v2731, %v2732
      %3000 = vmax.xlane.f32.xlu0 %v2999
      %v3001 = vpop.xlane.xlu0 %3000
      %v3002 = vmax.f32 %v2733, %v2734
      %3003 = vmax.xlane.f32.xlu0 %v3002
      %v3004 = vpop.xlane.xlu0 %3003
      %v3005 = vmax.f32 %v2735, %v2736
      %3006 = vmax.xlane.f32.xlu0 %v3005
      %v3007 = vpop.xlane.xlu0 %3006
      %v3008 = vmax.f32 %v2737, %v2738
      %3009 = vmax.xlane.f32.xlu0 %v3008
      %v3010 = vpop.xlane.xlu0 %3009
      %v3011 = vmax.f32 %v2739, %v2740
      %3012 = vmax.xlane.f32.xlu0 %v3011
      %v3013 = vpop.xlane.xlu0 %3012
      %v3014 = vmax.f32 %v2741, %v2742
      %3015 = vmax.xlane.f32.xlu0 %v3014
      %v3016 = vpop.xlane.xlu0 %3015
      %v3017 = vmax.f32 %v2743, %v2744
      %3018 = vmax.xlane.f32.xlu0 %v3017
      %v3019 = vpop.xlane.xlu0 %3018
      %v3020 = vmax.f32 %v2745, %v2746
      %3021 = vmax.xlane.f32.xlu0 %v3020
      %v3022 = vpop.xlane.xlu0 %3021
      %v3023 = vmax.f32 %v2747, %v2748
      %3024 = vmax.xlane.f32.xlu0 %v3023
      %v3025 = vpop.xlane.xlu0 %3024
      %v3026 = vmax.f32 %v2749, %v2750
      %3027 = vmax.xlane.f32.xlu0 %v3026
      %v3028 = vpop.xlane.xlu0 %3027
      %v3029 = vmax.f32 %v2751, %v2752
      %3030 = vmax.xlane.f32.xlu0 %v3029
      %v3031 = vpop.xlane.xlu0 %3030
      %v3032 = vmax.f32 %v2753, %v2754
      %3033 = vmax.xlane.f32.xlu0 %v3032
      %v3034 = vpop.xlane.xlu0 %3033
      %v3035 = vmax.f32 %v2755, %v2756
      %3036 = vmax.xlane.f32.xlu0 %v3035
      %v3037 = vpop.xlane.xlu0 %3036
      %v3038 = vmax.f32 %v2757, %v2758
      %3039 = vmax.xlane.f32.xlu0 %v3038
      %v3040 = vpop.xlane.xlu0 %3039
      %v3041 = vmax.f32 %v2759, %v2760
      %3042 = vmax.xlane.f32.xlu0 %v3041
      %v3043 = vpop.xlane.xlu0 %3042
      %v3044 = vmax.f32 %v2761, %v2762
      %3045 = vmax.xlane.f32.xlu0 %v3044
      %v3046 = vpop.xlane.xlu0 %3045
      %v3047 = vmax.f32 %v2763, %v2764
      %3048 = vmax.xlane.f32.xlu0 %v3047
      %v3049 = vpop.xlane.xlu0 %3048
      %v3050 = vmax.f32 %v2765, %v2766
      %3051 = vmax.xlane.f32.xlu0 %v3050
      %v3052 = vpop.xlane.xlu0 %3051
      %v3053 = vmax.f32 %v2767, %v2768
      %3054 = vmax.xlane.f32.xlu0 %v3053
      %v3055 = vpop.xlane.xlu0 %3054
      %v3056 = vmax.f32 %v2769, %v2770
      %3057 = vmax.xlane.f32.xlu0 %v3056
      %v3058 = vpop.xlane.xlu0 %3057
      %v3059 = vmax.f32 %v2771, %v2772
      %3060 = vmax.xlane.f32.xlu0 %v3059
      %v3061 = vpop.xlane.xlu0 %3060
      %v3062 = vmax.f32 %v2773, %v2774
      %3063 = vmax.xlane.f32.xlu0 %v3062
      %v3064 = vpop.xlane.xlu0 %3063
      %v3065 = vmax.f32 %v2775, %v2776
      %3066 = vmax.xlane.f32.xlu0 %v3065
      %v3067 = vpop.xlane.xlu0 %3066
      %v3068 = vmax.f32 %v2777, %v2778
      %3069 = vmax.xlane.f32.xlu0 %v3068
      %v3070 = vpop.xlane.xlu0 %3069
      %v3071 = vmax.f32 %v2779, %v2780
      %3072 = vmax.xlane.f32.xlu0 %v3071
      %v3073 = vpop.xlane.xlu0 %3072
      %v3074 = vmax.f32 %v2781, %v2782
      %3075 = vmax.xlane.f32.xlu0 %v3074
      %v3076 = vpop.xlane.xlu0 %3075
      %v3077 = vmax.f32 %v2783, %v2784
      %3078 = vmax.xlane.f32.xlu0 %v3077
      %v3079 = vpop.xlane.xlu0 %3078
      %v3080 = vmax.f32 %v2785, %v2786
      %3081 = vmax.xlane.f32.xlu0 %v3080
      %v3082 = vpop.xlane.xlu0 %3081
      %v3083 = vmax.f32 %v2787, %v2788
      %3084 = vmax.xlane.f32.xlu0 %v3083
      %v3085 = vpop.xlane.xlu0 %3084
      %v3086 = vmax.f32 %v2789, %v2790
      %3087 = vmax.xlane.f32.xlu0 %v3086
      %v3088 = vpop.xlane.xlu0 %3087
      %v3089 = vmax.f32 %v2791, %v2792
      %3090 = vmax.xlane.f32.xlu0 %v3089
      %v3091 = vpop.xlane.xlu0 %3090
      %v3092 = vmax.f32 %v2793, %v2794
      %3093 = vmax.xlane.f32.xlu0 %v3092
      %v3094 = vpop.xlane.xlu0 %3093
      %v3095 = vmax.f32 %v2795, %v2796
      %3096 = vmax.xlane.f32.xlu0 %v3095
      %v3097 = vpop.xlane.xlu0 %3096
      %v3098 = vmax.f32 %v2797, %v2798
      %3099 = vmax.xlane.f32.xlu0 %v3098
      %v3100 = vpop.xlane.xlu0 %3099
      %v3101 = vmax.f32 %v2799, %v2800
      %3102 = vmax.xlane.f32.xlu0 %v3101
      %v3103 = vpop.xlane.xlu0 %3102
      %v3104 = vmax.f32 %v2801, %v2802
      %3105 = vmax.xlane.f32.xlu0 %v3104
      %v3106 = vpop.xlane.xlu0 %3105
      %v3107 = vmax.f32 %v2803, %v2804
      %3108 = vmax.xlane.f32.xlu0 %v3107
      %v3109 = vpop.xlane.xlu0 %3108
      %v3110 = vmax.f32 %v2805, %v2806
      %3111 = vmax.xlane.f32.xlu0 %v3110
      %v3112 = vpop.xlane.xlu0 %3111
      %v3113 = vmax.f32 %v2807, %v2808
      %3114 = vmax.xlane.f32.xlu0 %v3113
      %v3115 = vpop.xlane.xlu0 %3114
      %v3116 = vmax.f32 %v2809, %v2810
      %3117 = vmax.xlane.f32.xlu0 %v3116
      %v3118 = vpop.xlane.xlu0 %3117
      %v3119 = vmax.f32 %v2811, %v2812
      %3120 = vmax.xlane.f32.xlu0 %v3119
      %v3121 = vpop.xlane.xlu0 %3120
      %v3122 = vmax.f32 %v2813, %v2814
      %3123 = vmax.xlane.f32.xlu0 %v3122
      %v3124 = vpop.xlane.xlu0 %3123
      %v3125 = vmax.f32 %v2815, %v2816
      %3126 = vmax.xlane.f32.xlu0 %v3125
      %v3127 = vpop.xlane.xlu0 %3126
      %v3128 = vmax.f32 %v2817, %v2818
      %3129 = vmax.xlane.f32.xlu0 %v3128
      %v3130 = vpop.xlane.xlu0 %3129
      %v3131 = vmax.f32 %v2819, %v2820
      %3132 = vmax.xlane.f32.xlu0 %v3131
      %v3133 = vpop.xlane.xlu0 %3132
      %v3134 = vmax.f32 %v2821, %v2822
      %3135 = vmax.xlane.f32.xlu0 %v3134
      %v3136 = vpop.xlane.xlu0 %3135
      %v3137 = vmax.f32 %v2823, %v2824
      %3138 = vmax.xlane.f32.xlu0 %v3137
      %v3139 = vpop.xlane.xlu0 %3138
      %v3140 = vmax.f32 %v2825, %v2826
      %3141 = vmax.xlane.f32.xlu0 %v3140
      %v3142 = vpop.xlane.xlu0 %3141
      %v3143 = vmax.f32 %v2827, %v2828
      %3144 = vmax.xlane.f32.xlu0 %v3143
      %v3145 = vpop.xlane.xlu0 %3144
      %v3146 = vmax.f32 %v2829, %v2830
      %3147 = vmax.xlane.f32.xlu0 %v3146
      %v3148 = vpop.xlane.xlu0 %3147
      %v3149 = vmax.f32 %v2831, %v2832
      %3150 = vmax.xlane.f32.xlu0 %v3149
      %v3151 = vpop.xlane.xlu0 %3150
      %v3152 = vmax.f32 %v2833, %v2834
      %3153 = vmax.xlane.f32.xlu0 %v3152
      %v3154 = vpop.xlane.xlu0 %3153
      %v3155 = vmax.f32 %v2835, %v2836
      %3156 = vmax.xlane.f32.xlu0 %v3155
      %v3157 = vpop.xlane.xlu0 %3156
      %v3158 = vmax.f32 %v2837, %v2838
      %3159 = vmax.xlane.f32.xlu0 %v3158
      %v3160 = vpop.xlane.xlu0 %3159
      %v3161 = vmax.f32 %v2839, %v2840
      %3162 = vmax.xlane.f32.xlu0 %v3161
      %v3163 = vpop.xlane.xlu0 %3162
      %v3164 = vmax.f32 %v2841, %v2842
      %3165 = vmax.xlane.f32.xlu0 %v3164
      %v3166 = vpop.xlane.xlu0 %3165
      %v3167 = vmax.f32 %v2843, %v2844
      %3168 = vmax.xlane.f32.xlu0 %v3167
      %v3169 = vpop.xlane.xlu0 %3168
      %v3170 = vmax.f32 %v2845, %v2846
      %3171 = vmax.xlane.f32.xlu0 %v3170
      %v3172 = vpop.xlane.xlu0 %3171
      %v3173 = vmax.f32 %v2847, %v2848
      %3174 = vmax.xlane.f32.xlu0 %v3173
      %v3175 = vpop.xlane.xlu0 %3174
      %v3176 = vmax.f32 %v2849, %v2850
      %3177 = vmax.xlane.f32.xlu0 %v3176
      %v3178 = vpop.xlane.xlu0 %3177
      %v3179 = vmax.f32 %v2851, %v2852
      %3180 = vmax.xlane.f32.xlu0 %v3179
      %v3181 = vpop.xlane.xlu0 %3180
      %v3182 = vmax.f32 %v2853, %v2854
      %3183 = vmax.xlane.f32.xlu0 %v3182
      %v3184 = vpop.xlane.xlu0 %3183
      %v3185 = vmax.f32 %v2855, %v2856
      %3186 = vmax.xlane.f32.xlu0 %v3185
      %v3187 = vpop.xlane.xlu0 %3186
      %v3188 = vmax.f32 %v2857, %v2858
      %3189 = vmax.xlane.f32.xlu0 %v3188
      %v3190 = vpop.xlane.xlu0 %3189
      %v3191 = vmax.f32 %v2859, %v2860
      %3192 = vmax.xlane.f32.xlu0 %v3191
      %v3193 = vpop.xlane.xlu0 %3192
      %v3194 = vmax.f32 %v2861, %v2862
      %3195 = vmax.xlane.f32.xlu0 %v3194
      %v3196 = vpop.xlane.xlu0 %3195
      %v3197 = vmax.f32 %v2863, %v2864
      %3198 = vmax.xlane.f32.xlu0 %v3197
      %v3199 = vpop.xlane.xlu0 %3198
      %v3200 = vmax.f32 %v2865, %v2866
      %3201 = vmax.xlane.f32.xlu0 %v3200
      %v3202 = vpop.xlane.xlu0 %3201
      %v3203 = vmax.f32 %v2867, %v2868
      %3204 = vmax.xlane.f32.xlu0 %v3203
      %v3205 = vpop.xlane.xlu0 %3204
      %v3206 = vmax.f32 %v2869, %v2870
      %3207 = vmax.xlane.f32.xlu0 %v3206
      %v3208 = vpop.xlane.xlu0 %3207
      %v3209 = vmax.f32 %v2871, %v2872
      %3210 = vmax.xlane.f32.xlu0 %v3209
      %v3211 = vpop.xlane.xlu0 %3210
      %v3212 = vmax.f32 %v2873, %v2874
      %3213 = vmax.xlane.f32.xlu0 %v3212
      %v3214 = vpop.xlane.xlu0 %3213
      %v3215 = vmax.f32 %v2875, %v2876
      %3216 = vmax.xlane.f32.xlu0 %v3215
      %v3217 = vpop.xlane.xlu0 %3216
      %v3218 = vmax.f32 %v2877, %v2878
      %3219 = vmax.xlane.f32.xlu0 %v3218
      %v3220 = vpop.xlane.xlu0 %3219
      %v3221 = vmax.f32 %v2879, %v2880
      %3222 = vmax.xlane.f32.xlu0 %v3221
      %v3223 = vpop.xlane.xlu0 %3222
      %v3224 = vmax.f32 %v2881, %v2882
      %3225 = vmax.xlane.f32.xlu0 %v3224
      %v3226 = vpop.xlane.xlu0 %3225
      %v3227 = vmax.f32 %v2883, %v2884
      %3228 = vmax.xlane.f32.xlu0 %v3227
      %v3229 = vpop.xlane.xlu0 %3228
      %v3230 = vmax.f32 %v2885, %v2886
      %3231 = vmax.xlane.f32.xlu0 %v3230
      %v3232 = vpop.xlane.xlu0 %3231
      %v3233 = vmax.f32 %v2887, %v2888
      %3234 = vmax.xlane.f32.xlu0 %v3233
      %v3235 = vpop.xlane.xlu0 %3234
      %v3236 = vmax.f32 %v2889, %v2890
      %3237 = vmax.xlane.f32.xlu0 %v3236
      %v3238 = vpop.xlane.xlu0 %3237
      %v3239 = vmax.f32 %v2891, %v2892
      %3240 = vmax.xlane.f32.xlu0 %v3239
      %v3241 = vpop.xlane.xlu0 %3240
      %v3242 = vmax.f32 %v2893, %v2894
      %3243 = vmax.xlane.f32.xlu0 %v3242
      %v3244 = vpop.xlane.xlu0 %3243
      %v3245 = vmax.f32 %v2895, %v2896
      %3246 = vmax.xlane.f32.xlu0 %v3245
      %v3247 = vpop.xlane.xlu0 %3246
      %v3248 = vmax.f32 %v2897, %v2898
      %3249 = vmax.xlane.f32.xlu0 %v3248
      %v3250 = vpop.xlane.xlu0 %3249
      %v3251 = vmax.f32 %v2899, %v2900
      %3252 = vmax.xlane.f32.xlu0 %v3251
      %v3253 = vpop.xlane.xlu0 %3252
      %v3254 = vmax.f32 %v2901, %v2902
      %3255 = vmax.xlane.f32.xlu0 %v3254
      %v3256 = vpop.xlane.xlu0 %3255
      %v3257 = vmax.f32 %v2903, %v2904
      %3258 = vmax.xlane.f32.xlu0 %v3257
      %v3259 = vpop.xlane.xlu0 %3258
      %v3260 = vmax.f32 %v2905, %v2906
      %3261 = vmax.xlane.f32.xlu0 %v3260
      %v3262 = vpop.xlane.xlu0 %3261
      %v3263 = vmax.f32 %v2907, %v2908
      %3264 = vmax.xlane.f32.xlu0 %v3263
      %v3265 = vpop.xlane.xlu0 %3264
      %v3266 = vmax.f32 %v2909, %v2910
      %3267 = vmax.xlane.f32.xlu0 %v3266
      %v3268 = vpop.xlane.xlu0 %3267
      %v3269 = vmax.f32 %v2911, %v2912
      %3270 = vmax.xlane.f32.xlu0 %v3269
      %v3271 = vpop.xlane.xlu0 %3270
      %v3272 = vmax.f32 %v2913, %v2914
      %3273 = vmax.xlane.f32.xlu0 %v3272
      %v3274 = vpop.xlane.xlu0 %3273
      %v3275 = vmax.f32 %v2915, %v2916
      %3276 = vmax.xlane.f32.xlu0 %v3275
      %v3277 = vpop.xlane.xlu0 %3276
      %v3278 = vmax.f32 %v2917, %v2918
      %3279 = vmax.xlane.f32.xlu0 %v3278
      %v3280 = vpop.xlane.xlu0 %3279
      %v3281 = vmax.f32 %v2919, %v2920
      %3282 = vmax.xlane.f32.xlu0 %v3281
      %v3283 = vpop.xlane.xlu0 %3282
      %v3284 = vmax.f32 %v2921, %v2922
      %3285 = vmax.xlane.f32.xlu0 %v3284
      %v3286 = vpop.xlane.xlu0 %3285
      %v3287 = vmax.f32 %v2923, %v2924
      %3288 = vmax.xlane.f32.xlu0 %v3287
      %v3289 = vpop.xlane.xlu0 %3288
      %v3290 = vmax.f32 %v2925, %v2926
      %3291 = vmax.xlane.f32.xlu0 %v3290
      %v3292 = vpop.xlane.xlu0 %3291
      %v3293 = vmax.f32 %v2927, %v2928
      %3294 = vmax.xlane.f32.xlu0 %v3293
      %v3295 = vpop.xlane.xlu0 %3294
      %v3296 = vmax.f32 %v2929, %v2930
      %3297 = vmax.xlane.f32.xlu0 %v3296
      %v3298 = vpop.xlane.xlu0 %3297
      %v3299 = vmax.f32 %v2931, %v2932
      %3300 = vmax.xlane.f32.xlu0 %v3299
      %v3301 = vpop.xlane.xlu0 %3300
      %v3302 = vmax.f32 %v2933, %v2934
      %3303 = vmax.xlane.f32.xlu0 %v3302
      %v3304 = vpop.xlane.xlu0 %3303
      %v3305 = vmax.f32 %v2935, %v2936
      %3306 = vmax.xlane.f32.xlu0 %v3305
      %v3307 = vpop.xlane.xlu0 %3306
      %v3308 = vmax.f32 %v2937, %v2938
      %3309 = vmax.xlane.f32.xlu0 %v3308
      %v3310 = vpop.xlane.xlu0 %3309
      %v3311 = vmax.f32 %v2939, %v2940
      %3312 = vmax.xlane.f32.xlu0 %v3311
      %v3313 = vpop.xlane.xlu0 %3312
      %v3314 = vmax.f32 %v2941, %v2942
      %3315 = vmax.xlane.f32.xlu0 %v3314
      %v3316 = vpop.xlane.xlu0 %3315
      %v3317 = vmax.f32 %v2943, %v2944
      %3318 = vmax.xlane.f32.xlu0 %v3317
      %v3319 = vpop.xlane.xlu0 %3318
      %v3320 = vmax.f32 %v2945, %v2946
      %3321 = vmax.xlane.f32.xlu0 %v3320
      %v3322 = vpop.xlane.xlu0 %3321
      %v3323 = vmax.f32 %v2947, %v2948
      %3324 = vmax.xlane.f32.xlu0 %v3323
      %v3325 = vpop.xlane.xlu0 %3324
      %v3326 = vmax.f32 %v2949, %v2950
      %3327 = vmax.xlane.f32.xlu0 %v3326
      %v3328 = vpop.xlane.xlu0 %3327
      %v3329 = vmax.f32 %v2951, %v2952
      %3330 = vmax.xlane.f32.xlu0 %v3329
      %v3331 = vpop.xlane.xlu0 %3330
      %v3332 = vmax.f32 %v2953, %v2954
      %3333 = vmax.xlane.f32.xlu0 %v3332
      %v3334 = vpop.xlane.xlu0 %3333
      %v3335 = vmax.f32 %v2955, %v2956
      %3336 = vmax.xlane.f32.xlu0 %v3335
      %v3337 = vpop.xlane.xlu0 %3336
      %v3338 = vmax.f32 %v2957, %v2958
      %3339 = vmax.xlane.f32.xlu0 %v3338
      %v3340 = vpop.xlane.xlu0 %3339
      %v3341 = vmax.f32 %v2959, %v2960
      %3342 = vmax.xlane.f32.xlu0 %v3341
      %v3343 = vpop.xlane.xlu0 %3342
      %v3344 = vmax.f32 %v2961, %v2962
      %3345 = vmax.xlane.f32.xlu0 %v3344
      %v3346 = vpop.xlane.xlu0 %3345
      %v3347 = vsub.f32 %v2707, %v2965
      %v3348 = vsub.f32 %v2708, %v2965
      %v3349 = vsub.f32 %v2709, %v2968
      %v3350 = vsub.f32 %v2710, %v2968
      %v3351 = vsub.f32 %v2711, %v2971
      %v3352 = vsub.f32 %v2712, %v2971
      %v3353 = vsub.f32 %v2713, %v2974
      %v3354 = vsub.f32 %v2714, %v2974
      %v3355 = vsub.f32 %v2715, %v2977
      %v3356 = vsub.f32 %v2716, %v2977
      %v3357 = vsub.f32 %v2717, %v2980
      %v3358 = vsub.f32 %v2718, %v2980
      %v3359 = vsub.f32 %v2719, %v2983
      %v3360 = vsub.f32 %v2720, %v2983
      %v3361 = vsub.f32 %v2721, %v2986
      %v3362 = vsub.f32 %v2722, %v2986
      %v3363 = vsub.f32 %v2723, %v2989
      %v3364 = vsub.f32 %v2724, %v2989
      %v3365 = vsub.f32 %v2725, %v2992
      %v3366 = vsub.f32 %v2726, %v2992
      %v3367 = vsub.f32 %v2727, %v2995
      %v3368 = vsub.f32 %v2728, %v2995
      %v3369 = vsub.f32 %v2729, %v2998
      %v3370 = vsub.f32 %v2730, %v2998
      %v3371 = vsub.f32 %v2731, %v3001
      %v3372 = vsub.f32 %v2732, %v3001
      %v3373 = vsub.f32 %v2733, %v3004
      %v3374 = vsub.f32 %v2734, %v3004
      %v3375 = vsub.f32 %v2735, %v3007
      %v3376 = vsub.f32 %v2736, %v3007
      %v3377 = vsub.f32 %v2737, %v3010
      %v3378 = vsub.f32 %v2738, %v3010
      %v3379 = vsub.f32 %v2739, %v3013
      %v3380 = vsub.f32 %v2740, %v3013
      %v3381 = vsub.f32 %v2741, %v3016
      %v3382 = vsub.f32 %v2742, %v3016
      %v3383 = vsub.f32 %v2743, %v3019
      %v3384 = vsub.f32 %v2744, %v3019
      %v3385 = vsub.f32 %v2745, %v3022
      %v3386 = vsub.f32 %v2746, %v3022
      %v3387 = vsub.f32 %v2747, %v3025
      %v3388 = vsub.f32 %v2748, %v3025
      %v3389 = vsub.f32 %v2749, %v3028
      %v3390 = vsub.f32 %v2750, %v3028
      %v3391 = vsub.f32 %v2751, %v3031
      %v3392 = vsub.f32 %v2752, %v3031
      %v3393 = vsub.f32 %v2753, %v3034
      %v3394 = vsub.f32 %v2754, %v3034
      %v3395 = vsub.f32 %v2755, %v3037
      %v3396 = vsub.f32 %v2756, %v3037
      %v3397 = vsub.f32 %v2757, %v3040
      %v3398 = vsub.f32 %v2758, %v3040
      %v3399 = vsub.f32 %v2759, %v3043
      %v3400 = vsub.f32 %v2760, %v3043
      %v3401 = vsub.f32 %v2761, %v3046
      %v3402 = vsub.f32 %v2762, %v3046
      %v3403 = vsub.f32 %v2763, %v3049
      %v3404 = vsub.f32 %v2764, %v3049
      %v3405 = vsub.f32 %v2765, %v3052
      %v3406 = vsub.f32 %v2766, %v3052
      %v3407 = vsub.f32 %v2767, %v3055
      %v3408 = vsub.f32 %v2768, %v3055
      %v3409 = vsub.f32 %v2769, %v3058
      %v3410 = vsub.f32 %v2770, %v3058
      %v3411 = vsub.f32 %v2771, %v3061
      %v3412 = vsub.f32 %v2772, %v3061
      %v3413 = vsub.f32 %v2773, %v3064
      %v3414 = vsub.f32 %v2774, %v3064
      %v3415 = vsub.f32 %v2775, %v3067
      %v3416 = vsub.f32 %v2776, %v3067
      %v3417 = vsub.f32 %v2777, %v3070
      %v3418 = vsub.f32 %v2778, %v3070
      %v3419 = vsub.f32 %v2779, %v3073
      %v3420 = vsub.f32 %v2780, %v3073
      %v3421 = vsub.f32 %v2781, %v3076
      %v3422 = vsub.f32 %v2782, %v3076
      %v3423 = vsub.f32 %v2783, %v3079
      %v3424 = vsub.f32 %v2784, %v3079
      %v3425 = vsub.f32 %v2785, %v3082
      %v3426 = vsub.f32 %v2786, %v3082
      %v3427 = vsub.f32 %v2787, %v3085
      %v3428 = vsub.f32 %v2788, %v3085
      %v3429 = vsub.f32 %v2789, %v3088
      %v3430 = vsub.f32 %v2790, %v3088
      %v3431 = vsub.f32 %v2791, %v3091
      %v3432 = vsub.f32 %v2792, %v3091
      %v3433 = vsub.f32 %v2793, %v3094
      %v3434 = vsub.f32 %v2794, %v3094
      %v3435 = vsub.f32 %v2795, %v3097
      %v3436 = vsub.f32 %v2796, %v3097
      %v3437 = vsub.f32 %v2797, %v3100
      %v3438 = vsub.f32 %v2798, %v3100
      %v3439 = vsub.f32 %v2799, %v3103
      %v3440 = vsub.f32 %v2800, %v3103
      %v3441 = vsub.f32 %v2801, %v3106
      %v3442 = vsub.f32 %v2802, %v3106
      %v3443 = vsub.f32 %v2803, %v3109
      %v3444 = vsub.f32 %v2804, %v3109
      %v3445 = vsub.f32 %v2805, %v3112
      %v3446 = vsub.f32 %v2806, %v3112
      %v3447 = vsub.f32 %v2807, %v3115
      %v3448 = vsub.f32 %v2808, %v3115
      %v3449 = vsub.f32 %v2809, %v3118
      %v3450 = vsub.f32 %v2810, %v3118
      %v3451 = vsub.f32 %v2811, %v3121
      %v3452 = vsub.f32 %v2812, %v3121
      %v3453 = vsub.f32 %v2813, %v3124
      %v3454 = vsub.f32 %v2814, %v3124
      %v3455 = vsub.f32 %v2815, %v3127
      %v3456 = vsub.f32 %v2816, %v3127
      %v3457 = vsub.f32 %v2817, %v3130
      %v3458 = vsub.f32 %v2818, %v3130
      %v3459 = vsub.f32 %v2819, %v3133
      %v3460 = vsub.f32 %v2820, %v3133
      %v3461 = vsub.f32 %v2821, %v3136
      %v3462 = vsub.f32 %v2822, %v3136
      %v3463 = vsub.f32 %v2823, %v3139
      %v3464 = vsub.f32 %v2824, %v3139
      %v3465 = vsub.f32 %v2825, %v3142
      %v3466 = vsub.f32 %v2826, %v3142
      %v3467 = vsub.f32 %v2827, %v3145
      %v3468 = vsub.f32 %v2828, %v3145
      %v3469 = vsub.f32 %v2829, %v3148
      %v3470 = vsub.f32 %v2830, %v3148
      %v3471 = vsub.f32 %v2831, %v3151
      %v3472 = vsub.f32 %v2832, %v3151
      %v3473 = vsub.f32 %v2833, %v3154
      %v3474 = vsub.f32 %v2834, %v3154
      %v3475 = vsub.f32 %v2835, %v3157
      %v3476 = vsub.f32 %v2836, %v3157
      %v3477 = vsub.f32 %v2837, %v3160
      %v3478 = vsub.f32 %v2838, %v3160
      %v3479 = vsub.f32 %v2839, %v3163
      %v3480 = vsub.f32 %v2840, %v3163
      %v3481 = vsub.f32 %v2841, %v3166
      %v3482 = vsub.f32 %v2842, %v3166
      %v3483 = vsub.f32 %v2843, %v3169
      %v3484 = vsub.f32 %v2844, %v3169
      %v3485 = vsub.f32 %v2845, %v3172
      %v3486 = vsub.f32 %v2846, %v3172
      %v3487 = vsub.f32 %v2847, %v3175
      %v3488 = vsub.f32 %v2848, %v3175
      %v3489 = vsub.f32 %v2849, %v3178
      %v3490 = vsub.f32 %v2850, %v3178
      %v3491 = vsub.f32 %v2851, %v3181
      %v3492 = vsub.f32 %v2852, %v3181
      %v3493 = vsub.f32 %v2853, %v3184
      %v3494 = vsub.f32 %v2854, %v3184
      %v3495 = vsub.f32 %v2855, %v3187
      %v3496 = vsub.f32 %v2856, %v3187
      %v3497 = vsub.f32 %v2857, %v3190
      %v3498 = vsub.f32 %v2858, %v3190
      %v3499 = vsub.f32 %v2859, %v3193
      %v3500 = vsub.f32 %v2860, %v3193
      %v3501 = vsub.f32 %v2861, %v3196
      %v3502 = vsub.f32 %v2862, %v3196
      %v3503 = vsub.f32 %v2863, %v3199
      %v3504 = vsub.f32 %v2864, %v3199
      %v3505 = vsub.f32 %v2865, %v3202
      %v3506 = vsub.f32 %v2866, %v3202
      %v3507 = vsub.f32 %v2867, %v3205
      %v3508 = vsub.f32 %v2868, %v3205
      %v3509 = vsub.f32 %v2869, %v3208
      %v3510 = vsub.f32 %v2870, %v3208
      %v3511 = vsub.f32 %v2871, %v3211
      %v3512 = vsub.f32 %v2872, %v3211
      %v3513 = vsub.f32 %v2873, %v3214
      %v3514 = vsub.f32 %v2874, %v3214
      %v3515 = vsub.f32 %v2875, %v3217
      %v3516 = vsub.f32 %v2876, %v3217
      %v3517 = vsub.f32 %v2877, %v3220
      %v3518 = vsub.f32 %v2878, %v3220
      %v3519 = vsub.f32 %v2879, %v3223
      %v3520 = vsub.f32 %v2880, %v3223
      %v3521 = vsub.f32 %v2881, %v3226
      %v3522 = vsub.f32 %v2882, %v3226
      %v3523 = vsub.f32 %v2883, %v3229
      %v3524 = vsub.f32 %v2884, %v3229
      %v3525 = vsub.f32 %v2885, %v3232
      %v3526 = vsub.f32 %v2886, %v3232
      %v3527 = vsub.f32 %v2887, %v3235
      %v3528 = vsub.f32 %v2888, %v3235
      %v3529 = vsub.f32 %v2889, %v3238
      %v3530 = vsub.f32 %v2890, %v3238
      %v3531 = vsub.f32 %v2891, %v3241
      %v3532 = vsub.f32 %v2892, %v3241
      %v3533 = vsub.f32 %v2893, %v3244
      %v3534 = vsub.f32 %v2894, %v3244
      %v3535 = vsub.f32 %v2895, %v3247
      %v3536 = vsub.f32 %v2896, %v3247
      %v3537 = vsub.f32 %v2897, %v3250
      %v3538 = vsub.f32 %v2898, %v3250
      %v3539 = vsub.f32 %v2899, %v3253
      %v3540 = vsub.f32 %v2900, %v3253
      %v3541 = vsub.f32 %v2901, %v3256
      %v3542 = vsub.f32 %v2902, %v3256
      %v3543 = vsub.f32 %v2903, %v3259
      %v3544 = vsub.f32 %v2904, %v3259
      %v3545 = vsub.f32 %v2905, %v3262
      %v3546 = vsub.f32 %v2906, %v3262
      %v3547 = vsub.f32 %v2907, %v3265
      %v3548 = vsub.f32 %v2908, %v3265
      %v3549 = vsub.f32 %v2909, %v3268
      %v3550 = vsub.f32 %v2910, %v3268
      %v3551 = vsub.f32 %v2911, %v3271
      %v3552 = vsub.f32 %v2912, %v3271
      %v3553 = vsub.f32 %v2913, %v3274
      %v3554 = vsub.f32 %v2914, %v3274
      %v3555 = vsub.f32 %v2915, %v3277
      %v3556 = vsub.f32 %v2916, %v3277
      %v3557 = vsub.f32 %v2917, %v3280
      %v3558 = vsub.f32 %v2918, %v3280
      %v3559 = vsub.f32 %v2919, %v3283
      %v3560 = vsub.f32 %v2920, %v3283
      %v3561 = vsub.f32 %v2921, %v3286
      %v3562 = vsub.f32 %v2922, %v3286
      %v3563 = vsub.f32 %v2923, %v3289
      %v3564 = vsub.f32 %v2924, %v3289
      %v3565 = vsub.f32 %v2925, %v3292
      %v3566 = vsub.f32 %v2926, %v3292
      %v3567 = vsub.f32 %v2927, %v3295
      %v3568 = vsub.f32 %v2928, %v3295
      %v3569 = vsub.f32 %v2929, %v3298
      %v3570 = vsub.f32 %v2930, %v3298
      %v3571 = vsub.f32 %v2931, %v3301
      %v3572 = vsub.f32 %v2932, %v3301
      %v3573 = vsub.f32 %v2933, %v3304
      %v3574 = vsub.f32 %v2934, %v3304
      %v3575 = vsub.f32 %v2935, %v3307
      %v3576 = vsub.f32 %v2936, %v3307
      %v3577 = vsub.f32 %v2937, %v3310
      %v3578 = vsub.f32 %v2938, %v3310
      %v3579 = vsub.f32 %v2939, %v3313
      %v3580 = vsub.f32 %v2940, %v3313
      %v3581 = vsub.f32 %v2941, %v3316
      %v3582 = vsub.f32 %v2942, %v3316
      %v3583 = vsub.f32 %v2943, %v3319
      %v3584 = vsub.f32 %v2944, %v3319
      %v3585 = vsub.f32 %v2945, %v3322
      %v3586 = vsub.f32 %v2946, %v3322
      %v3587 = vsub.f32 %v2947, %v3325
      %v3588 = vsub.f32 %v2948, %v3325
      %v3589 = vsub.f32 %v2949, %v3328
      %v3590 = vsub.f32 %v2950, %v3328
      %v3591 = vsub.f32 %v2951, %v3331
      %v3592 = vsub.f32 %v2952, %v3331
      %v3593 = vsub.f32 %v2953, %v3334
      %v3594 = vsub.f32 %v2954, %v3334
      %v3595 = vsub.f32 %v2955, %v3337
      %v3596 = vsub.f32 %v2956, %v3337
      %v3597 = vsub.f32 %v2957, %v3340
      %v3598 = vsub.f32 %v2958, %v3340
      %v3599 = vsub.f32 %v2959, %v3343
      %v3600 = vsub.f32 %v2960, %v3343
      %v3601 = vsub.f32 %v2961, %v3346
      %v3602 = vsub.f32 %v2962, %v3346
      %v3603 = vmul.f32 %v3347, 1.442695
      %v3604 = vpow.pop %v3603
      %v3605 = vmul.f32 %v3348, 1.442695
      %v3606 = vpow.pop %v3605
      %v3607 = vmul.f32 %v3349, 1.442695
      %v3608 = vpow.pop %v3607
      %v3609 = vmul.f32 %v3350, 1.442695
      %v3610 = vpow.pop %v3609
      %v3611 = vmul.f32 %v3351, 1.442695
      %v3612 = vpow.pop %v3611
      %v3613 = vmul.f32 %v3352, 1.442695
      %v3614 = vpow.pop %v3613
      %v3615 = vmul.f32 %v3353, 1.442695
      %v3616 = vpow.pop %v3615
      %v3617 = vmul.f32 %v3354, 1.442695
      %v3618 = vpow.pop %v3617
      %v3619 = vmul.f32 %v3355, 1.442695
      %v3620 = vpow.pop %v3619
      %v3621 = vmul.f32 %v3356, 1.442695
      %v3622 = vpow.pop %v3621
      %v3623 = vmul.f32 %v3357, 1.442695
      %v3624 = vpow.pop %v3623
      %v3625 = vmul.f32 %v3358, 1.442695
      %v3626 = vpow.pop %v3625
      %v3627 = vmul.f32 %v3359, 1.442695
      %v3628 = vpow.pop %v3627
      %v3629 = vmul.f32 %v3360, 1.442695
      %v3630 = vpow.pop %v3629
      %v3631 = vmul.f32 %v3361, 1.442695
      %v3632 = vpow.pop %v3631
      %v3633 = vmul.f32 %v3362, 1.442695
      %v3634 = vpow.pop %v3633
      %v3635 = vmul.f32 %v3363, 1.442695
      %v3636 = vpow.pop %v3635
      %v3637 = vmul.f32 %v3364, 1.442695
      %v3638 = vpow.pop %v3637
      %v3639 = vmul.f32 %v3365, 1.442695
      %v3640 = vpow.pop %v3639
      %v3641 = vmul.f32 %v3366, 1.442695
      %v3642 = vpow.pop %v3641
      %v3643 = vmul.f32 %v3367, 1.442695
      %v3644 = vpow.pop %v3643
      %v3645 = vmul.f32 %v3368, 1.442695
      %v3646 = vpow.pop %v3645
      %v3647 = vmul.f32 %v3369, 1.442695
      %v3648 = vpow.pop %v3647
      %v3649 = vmul.f32 %v3370, 1.442695
      %v3650 = vpow.pop %v3649
      %v3651 = vmul.f32 %v3371, 1.442695
      %v3652 = vpow.pop %v3651
      %v3653 = vmul.f32 %v3372, 1.442695
      %v3654 = vpow.pop %v3653
      %v3655 = vmul.f32 %v3373, 1.442695
      %v3656 = vpow.pop %v3655
      %v3657 = vmul.f32 %v3374, 1.442695
      %v3658 = vpow.pop %v3657
      %v3659 = vmul.f32 %v3375, 1.442695
      %v3660 = vpow.pop %v3659
      %v3661 = vmul.f32 %v3376, 1.442695
      %v3662 = vpow.pop %v3661
      %v3663 = vmul.f32 %v3377, 1.442695
      %v3664 = vpow.pop %v3663
      %v3665 = vmul.f32 %v3378, 1.442695
      %v3666 = vpow.pop %v3665
      %v3667 = vmul.f32 %v3379, 1.442695
      %v3668 = vpow.pop %v3667
      %v3669 = vmul.f32 %v3380, 1.442695
      %v3670 = vpow.pop %v3669
      %v3671 = vmul.f32 %v3381, 1.442695
      %v3672 = vpow.pop %v3671
      %v3673 = vmul.f32 %v3382, 1.442695
      %v3674 = vpow.pop %v3673
      %v3675 = vmul.f32 %v3383, 1.442695
      %v3676 = vpow.pop %v3675
      %v3677 = vmul.f32 %v3384, 1.442695
      %v3678 = vpow.pop %v3677
      %v3679 = vmul.f32 %v3385, 1.442695
      %v3680 = vpow.pop %v3679
      %v3681 = vmul.f32 %v3386, 1.442695
      %v3682 = vpow.pop %v3681
      %v3683 = vmul.f32 %v3387, 1.442695
      %v3684 = vpow.pop %v3683
      %v3685 = vmul.f32 %v3388, 1.442695
      %v3686 = vpow.pop %v3685
      %v3687 = vmul.f32 %v3389, 1.442695
      %v3688 = vpow.pop %v3687
      %v3689 = vmul.f32 %v3390, 1.442695
      %v3690 = vpow.pop %v3689
      %v3691 = vmul.f32 %v3391, 1.442695
      %v3692 = vpow.pop %v3691
      %v3693 = vmul.f32 %v3392, 1.442695
      %v3694 = vpow.pop %v3693
      %v3695 = vmul.f32 %v3393, 1.442695
      %v3696 = vpow.pop %v3695
      %v3697 = vmul.f32 %v3394, 1.442695
      %v3698 = vpow.pop %v3697
      %v3699 = vmul.f32 %v3395, 1.442695
      %v3700 = vpow.pop %v3699
      %v3701 = vmul.f32 %v3396, 1.442695
      %v3702 = vpow.pop %v3701
      %v3703 = vmul.f32 %v3397, 1.442695
      %v3704 = vpow.pop %v3703
      %v3705 = vmul.f32 %v3398, 1.442695
      %v3706 = vpow.pop %v3705
      %v3707 = vmul.f32 %v3399, 1.442695
      %v3708 = vpow.pop %v3707
      %v3709 = vmul.f32 %v3400, 1.442695
      %v3710 = vpow.pop %v3709
      %v3711 = vmul.f32 %v3401, 1.442695
      %v3712 = vpow.pop %v3711
      %v3713 = vmul.f32 %v3402, 1.442695
      %v3714 = vpow.pop %v3713
      %v3715 = vmul.f32 %v3403, 1.442695
      %v3716 = vpow.pop %v3715
      %v3717 = vmul.f32 %v3404, 1.442695
      %v3718 = vpow.pop %v3717
      %v3719 = vmul.f32 %v3405, 1.442695
      %v3720 = vpow.pop %v3719
      %v3721 = vmul.f32 %v3406, 1.442695
      %v3722 = vpow.pop %v3721
      %v3723 = vmul.f32 %v3407, 1.442695
      %v3724 = vpow.pop %v3723
      %v3725 = vmul.f32 %v3408, 1.442695
      %v3726 = vpow.pop %v3725
      %v3727 = vmul.f32 %v3409, 1.442695
      %v3728 = vpow.pop %v3727
      %v3729 = vmul.f32 %v3410, 1.442695
      %v3730 = vpow.pop %v3729
      %v3731 = vmul.f32 %v3411, 1.442695
      %v3732 = vpow.pop %v3731
      %v3733 = vmul.f32 %v3412, 1.442695
      %v3734 = vpow.pop %v3733
      %v3735 = vmul.f32 %v3413, 1.442695
      %v3736 = vpow.pop %v3735
      %v3737 = vmul.f32 %v3414, 1.442695
      %v3738 = vpow.pop %v3737
      %v3739 = vmul.f32 %v3415, 1.442695
      %v3740 = vpow.pop %v3739
      %v3741 = vmul.f32 %v3416, 1.442695
      %v3742 = vpow.pop %v3741
      %v3743 = vmul.f32 %v3417, 1.442695
      %v3744 = vpow.pop %v3743
      %v3745 = vmul.f32 %v3418, 1.442695
      %v3746 = vpow.pop %v3745
      %v3747 = vmul.f32 %v3419, 1.442695
      %v3748 = vpow.pop %v3747
      %v3749 = vmul.f32 %v3420, 1.442695
      %v3750 = vpow.pop %v3749
      %v3751 = vmul.f32 %v3421, 1.442695
      %v3752 = vpow.pop %v3751
      %v3753 = vmul.f32 %v3422, 1.442695
      %v3754 = vpow.pop %v3753
      %v3755 = vmul.f32 %v3423, 1.442695
      %v3756 = vpow.pop %v3755
      %v3757 = vmul.f32 %v3424, 1.442695
      %v3758 = vpow.pop %v3757
      %v3759 = vmul.f32 %v3425, 1.442695
      %v3760 = vpow.pop %v3759
      %v3761 = vmul.f32 %v3426, 1.442695
      %v3762 = vpow.pop %v3761
      %v3763 = vmul.f32 %v3427, 1.442695
      %v3764 = vpow.pop %v3763
      %v3765 = vmul.f32 %v3428, 1.442695
      %v3766 = vpow.pop %v3765
      %v3767 = vmul.f32 %v3429, 1.442695
      %v3768 = vpow.pop %v3767
      %v3769 = vmul.f32 %v3430, 1.442695
      %v3770 = vpow.pop %v3769
      %v3771 = vmul.f32 %v3431, 1.442695
      %v3772 = vpow.pop %v3771
      %v3773 = vmul.f32 %v3432, 1.442695
      %v3774 = vpow.pop %v3773
      %v3775 = vmul.f32 %v3433, 1.442695
      %v3776 = vpow.pop %v3775
      %v3777 = vmul.f32 %v3434, 1.442695
      %v3778 = vpow.pop %v3777
      %v3779 = vmul.f32 %v3435, 1.442695
      %v3780 = vpow.pop %v3779
      %v3781 = vmul.f32 %v3436, 1.442695
      %v3782 = vpow.pop %v3781
      %v3783 = vmul.f32 %v3437, 1.442695
      %v3784 = vpow.pop %v3783
      %v3785 = vmul.f32 %v3438, 1.442695
      %v3786 = vpow.pop %v3785
      %v3787 = vmul.f32 %v3439, 1.442695
      %v3788 = vpow.pop %v3787
      %v3789 = vmul.f32 %v3440, 1.442695
      %v3790 = vpow.pop %v3789
      %v3791 = vmul.f32 %v3441, 1.442695
      %v3792 = vpow.pop %v3791
      %v3793 = vmul.f32 %v3442, 1.442695
      %v3794 = vpow.pop %v3793
      %v3795 = vmul.f32 %v3443, 1.442695
      %v3796 = vpow.pop %v3795
      %v3797 = vmul.f32 %v3444, 1.442695
      %v3798 = vpow.pop %v3797
      %v3799 = vmul.f32 %v3445, 1.442695
      %v3800 = vpow.pop %v3799
      %v3801 = vmul.f32 %v3446, 1.442695
      %v3802 = vpow.pop %v3801
      %v3803 = vmul.f32 %v3447, 1.442695
      %v3804 = vpow.pop %v3803
      %v3805 = vmul.f32 %v3448, 1.442695
      %v3806 = vpow.pop %v3805
      %v3807 = vmul.f32 %v3449, 1.442695
      %v3808 = vpow.pop %v3807
      %v3809 = vmul.f32 %v3450, 1.442695
      %v3810 = vpow.pop %v3809
      %v3811 = vmul.f32 %v3451, 1.442695
      %v3812 = vpow.pop %v3811
      %v3813 = vmul.f32 %v3452, 1.442695
      %v3814 = vpow.pop %v3813
      %v3815 = vmul.f32 %v3453, 1.442695
      %v3816 = vpow.pop %v3815
      %v3817 = vmul.f32 %v3454, 1.442695
      %v3818 = vpow.pop %v3817
      %v3819 = vmul.f32 %v3455, 1.442695
      %v3820 = vpow.pop %v3819
      %v3821 = vmul.f32 %v3456, 1.442695
      %v3822 = vpow.pop %v3821
      %v3823 = vmul.f32 %v3457, 1.442695
      %v3824 = vpow.pop %v3823
      %v3825 = vmul.f32 %v3458, 1.442695
      %v3826 = vpow.pop %v3825
      %v3827 = vmul.f32 %v3459, 1.442695
      %v3828 = vpow.pop %v3827
      %v3829 = vmul.f32 %v3460, 1.442695
      %v3830 = vpow.pop %v3829
      %v3831 = vmul.f32 %v3461, 1.442695
      %v3832 = vpow.pop %v3831
      %v3833 = vmul.f32 %v3462, 1.442695
      %v3834 = vpow.pop %v3833
      %v3835 = vmul.f32 %v3463, 1.442695
      %v3836 = vpow.pop %v3835
      %v3837 = vmul.f32 %v3464, 1.442695
      %v3838 = vpow.pop %v3837
      %v3839 = vmul.f32 %v3465, 1.442695
      %v3840 = vpow.pop %v3839
      %v3841 = vmul.f32 %v3466, 1.442695
      %v3842 = vpow.pop %v3841
      %v3843 = vmul.f32 %v3467, 1.442695
      %v3844 = vpow.pop %v3843
      %v3845 = vmul.f32 %v3468, 1.442695
      %v3846 = vpow.pop %v3845
      %v3847 = vmul.f32 %v3469, 1.442695
      %v3848 = vpow.pop %v3847
      %v3849 = vmul.f32 %v3470, 1.442695
      %v3850 = vpow.pop %v3849
      %v3851 = vmul.f32 %v3471, 1.442695
      %v3852 = vpow.pop %v3851
      %v3853 = vmul.f32 %v3472, 1.442695
      %v3854 = vpow.pop %v3853
      %v3855 = vmul.f32 %v3473, 1.442695
      %v3856 = vpow.pop %v3855
      %v3857 = vmul.f32 %v3474, 1.442695
      %v3858 = vpow.pop %v3857
      %v3859 = vmul.f32 %v3475, 1.442695
      %v3860 = vpow.pop %v3859
      %v3861 = vmul.f32 %v3476, 1.442695
      %v3862 = vpow.pop %v3861
      %v3863 = vmul.f32 %v3477, 1.442695
      %v3864 = vpow.pop %v3863
      %v3865 = vmul.f32 %v3478, 1.442695
      %v3866 = vpow.pop %v3865
      %v3867 = vmul.f32 %v3479, 1.442695
      %v3868 = vpow.pop %v3867
      %v3869 = vmul.f32 %v3480, 1.442695
      %v3870 = vpow.pop %v3869
      %v3871 = vmul.f32 %v3481, 1.442695
      %v3872 = vpow.pop %v3871
      %v3873 = vmul.f32 %v3482, 1.442695
      %v3874 = vpow.pop %v3873
      %v3875 = vmul.f32 %v3483, 1.442695
      %v3876 = vpow.pop %v3875
      %v3877 = vmul.f32 %v3484, 1.442695
      %v3878 = vpow.pop %v3877
      %v3879 = vmul.f32 %v3485, 1.442695
      %v3880 = vpow.pop %v3879
      %v3881 = vmul.f32 %v3486, 1.442695
      %v3882 = vpow.pop %v3881
      %v3883 = vmul.f32 %v3487, 1.442695
      %v3884 = vpow.pop %v3883
      %v3885 = vmul.f32 %v3488, 1.442695
      %v3886 = vpow.pop %v3885
      %v3887 = vmul.f32 %v3489, 1.442695
      %v3888 = vpow.pop %v3887
      %v3889 = vmul.f32 %v3490, 1.442695
      %v3890 = vpow.pop %v3889
      %v3891 = vmul.f32 %v3491, 1.442695
      %v3892 = vpow.pop %v3891
      %v3893 = vmul.f32 %v3492, 1.442695
      %v3894 = vpow.pop %v3893
      %v3895 = vmul.f32 %v3493, 1.442695
      %v3896 = vpow.pop %v3895
      %v3897 = vmul.f32 %v3494, 1.442695
      %v3898 = vpow.pop %v3897
      %v3899 = vmul.f32 %v3495, 1.442695
      %v3900 = vpow.pop %v3899
      %v3901 = vmul.f32 %v3496, 1.442695
      %v3902 = vpow.pop %v3901
      %v3903 = vmul.f32 %v3497, 1.442695
      %v3904 = vpow.pop %v3903
      %v3905 = vmul.f32 %v3498, 1.442695
      %v3906 = vpow.pop %v3905
      %v3907 = vmul.f32 %v3499, 1.442695
      %v3908 = vpow.pop %v3907
      %v3909 = vmul.f32 %v3500, 1.442695
      %v3910 = vpow.pop %v3909
      %v3911 = vmul.f32 %v3501, 1.442695
      %v3912 = vpow.pop %v3911
      %v3913 = vmul.f32 %v3502, 1.442695
      %v3914 = vpow.pop %v3913
      %v3915 = vmul.f32 %v3503, 1.442695
      %v3916 = vpow.pop %v3915
      %v3917 = vmul.f32 %v3504, 1.442695
      %v3918 = vpow.pop %v3917
      %v3919 = vmul.f32 %v3505, 1.442695
      %v3920 = vpow.pop %v3919
      %v3921 = vmul.f32 %v3506, 1.442695
      %v3922 = vpow.pop %v3921
      %v3923 = vmul.f32 %v3507, 1.442695
      %v3924 = vpow.pop %v3923
      %v3925 = vmul.f32 %v3508, 1.442695
      %v3926 = vpow.pop %v3925
      %v3927 = vmul.f32 %v3509, 1.442695
      %v3928 = vpow.pop %v3927
      %v3929 = vmul.f32 %v3510, 1.442695
      %v3930 = vpow.pop %v3929
      %v3931 = vmul.f32 %v3511, 1.442695
      %v3932 = vpow.pop %v3931
      %v3933 = vmul.f32 %v3512, 1.442695
      %v3934 = vpow.pop %v3933
      %v3935 = vmul.f32 %v3513, 1.442695
      %v3936 = vpow.pop %v3935
      %v3937 = vmul.f32 %v3514, 1.442695
      %v3938 = vpow.pop %v3937
      %v3939 = vmul.f32 %v3515, 1.442695
      %v3940 = vpow.pop %v3939
      %v3941 = vmul.f32 %v3516, 1.442695
      %v3942 = vpow.pop %v3941
      %v3943 = vmul.f32 %v3517, 1.442695
      %v3944 = vpow.pop %v3943
      %v3945 = vmul.f32 %v3518, 1.442695
      %v3946 = vpow.pop %v3945
      %v3947 = vmul.f32 %v3519, 1.442695
      %v3948 = vpow.pop %v3947
      %v3949 = vmul.f32 %v3520, 1.442695
      %v3950 = vpow.pop %v3949
      %v3951 = vmul.f32 %v3521, 1.442695
      %v3952 = vpow.pop %v3951
      %v3953 = vmul.f32 %v3522, 1.442695
      %v3954 = vpow.pop %v3953
      %v3955 = vmul.f32 %v3523, 1.442695
      %v3956 = vpow.pop %v3955
      %v3957 = vmul.f32 %v3524, 1.442695
      %v3958 = vpow.pop %v3957
      %v3959 = vmul.f32 %v3525, 1.442695
      %v3960 = vpow.pop %v3959
      %v3961 = vmul.f32 %v3526, 1.442695
      %v3962 = vpow.pop %v3961
      %v3963 = vmul.f32 %v3527, 1.442695
      %v3964 = vpow.pop %v3963
      %v3965 = vmul.f32 %v3528, 1.442695
      %v3966 = vpow.pop %v3965
      %v3967 = vmul.f32 %v3529, 1.442695
      %v3968 = vpow.pop %v3967
      %v3969 = vmul.f32 %v3530, 1.442695
      %v3970 = vpow.pop %v3969
      %v3971 = vmul.f32 %v3531, 1.442695
      %v3972 = vpow.pop %v3971
      %v3973 = vmul.f32 %v3532, 1.442695
      %v3974 = vpow.pop %v3973
      %v3975 = vmul.f32 %v3533, 1.442695
      %v3976 = vpow.pop %v3975
      %v3977 = vmul.f32 %v3534, 1.442695
      %v3978 = vpow.pop %v3977
      %v3979 = vmul.f32 %v3535, 1.442695
      %v3980 = vpow.pop %v3979
      %v3981 = vmul.f32 %v3536, 1.442695
      %v3982 = vpow.pop %v3981
      %v3983 = vmul.f32 %v3537, 1.442695
      %v3984 = vpow.pop %v3983
      %v3985 = vmul.f32 %v3538, 1.442695
      %v3986 = vpow.pop %v3985
      %v3987 = vmul.f32 %v3539, 1.442695
      %v3988 = vpow.pop %v3987
      %v3989 = vmul.f32 %v3540, 1.442695
      %v3990 = vpow.pop %v3989
      %v3991 = vmul.f32 %v3541, 1.442695
      %v3992 = vpow.pop %v3991
      %v3993 = vmul.f32 %v3542, 1.442695
      %v3994 = vpow.pop %v3993
      %v3995 = vmul.f32 %v3543, 1.442695
      %v3996 = vpow.pop %v3995
      %v3997 = vmul.f32 %v3544, 1.442695
      %v3998 = vpow.pop %v3997
      %v3999 = vmul.f32 %v3545, 1.442695
      %v4000 = vpow.pop %v3999
      %v4001 = vmul.f32 %v3546, 1.442695
      %v4002 = vpow.pop %v4001
      %v4003 = vmul.f32 %v3547, 1.442695
      %v4004 = vpow.pop %v4003
      %v4005 = vmul.f32 %v3548, 1.442695
      %v4006 = vpow.pop %v4005
      %v4007 = vmul.f32 %v3549, 1.442695
      %v4008 = vpow.pop %v4007
      %v4009 = vmul.f32 %v3550, 1.442695
      %v4010 = vpow.pop %v4009
      %v4011 = vmul.f32 %v3551, 1.442695
      %v4012 = vpow.pop %v4011
      %v4013 = vmul.f32 %v3552, 1.442695
      %v4014 = vpow.pop %v4013
      %v4015 = vmul.f32 %v3553, 1.442695
      %v4016 = vpow.pop %v4015
      %v4017 = vmul.f32 %v3554, 1.442695
      %v4018 = vpow.pop %v4017
      %v4019 = vmul.f32 %v3555, 1.442695
      %v4020 = vpow.pop %v4019
      %v4021 = vmul.f32 %v3556, 1.442695
      %v4022 = vpow.pop %v4021
      %v4023 = vmul.f32 %v3557, 1.442695
      %v4024 = vpow.pop %v4023
      %v4025 = vmul.f32 %v3558, 1.442695
      %v4026 = vpow.pop %v4025
      %v4027 = vmul.f32 %v3559, 1.442695
      %v4028 = vpow.pop %v4027
      %v4029 = vmul.f32 %v3560, 1.442695
      %v4030 = vpow.pop %v4029
      %v4031 = vmul.f32 %v3561, 1.442695
      %v4032 = vpow.pop %v4031
      %v4033 = vmul.f32 %v3562, 1.442695
      %v4034 = vpow.pop %v4033
      %v4035 = vmul.f32 %v3563, 1.442695
      %v4036 = vpow.pop %v4035
      %v4037 = vmul.f32 %v3564, 1.442695
      %v4038 = vpow.pop %v4037
      %v4039 = vmul.f32 %v3565, 1.442695
      %v4040 = vpow.pop %v4039
      %v4041 = vmul.f32 %v3566, 1.442695
      %v4042 = vpow.pop %v4041
      %v4043 = vmul.f32 %v3567, 1.442695
      %v4044 = vpow.pop %v4043
      %v4045 = vmul.f32 %v3568, 1.442695
      %v4046 = vpow.pop %v4045
      %v4047 = vmul.f32 %v3569, 1.442695
      %v4048 = vpow.pop %v4047
      %v4049 = vmul.f32 %v3570, 1.442695
      %v4050 = vpow.pop %v4049
      %v4051 = vmul.f32 %v3571, 1.442695
      %v4052 = vpow.pop %v4051
      %v4053 = vmul.f32 %v3572, 1.442695
      %v4054 = vpow.pop %v4053
      %v4055 = vmul.f32 %v3573, 1.442695
      %v4056 = vpow.pop %v4055
      %v4057 = vmul.f32 %v3574, 1.442695
      %v4058 = vpow.pop %v4057
      %v4059 = vmul.f32 %v3575, 1.442695
      %v4060 = vpow.pop %v4059
      %v4061 = vmul.f32 %v3576, 1.442695
      %v4062 = vpow.pop %v4061
      %v4063 = vmul.f32 %v3577, 1.442695
      %v4064 = vpow.pop %v4063
      %v4065 = vmul.f32 %v3578, 1.442695
      %v4066 = vpow.pop %v4065
      %v4067 = vmul.f32 %v3579, 1.442695
      %v4068 = vpow.pop %v4067
      %v4069 = vmul.f32 %v3580, 1.442695
      %v4070 = vpow.pop %v4069
      %v4071 = vmul.f32 %v3581, 1.442695
      %v4072 = vpow.pop %v4071
      %v4073 = vmul.f32 %v3582, 1.442695
      %v4074 = vpow.pop %v4073
      %v4075 = vmul.f32 %v3583, 1.442695
      %v4076 = vpow.pop %v4075
      %v4077 = vmul.f32 %v3584, 1.442695
      %v4078 = vpow.pop %v4077
      %v4079 = vmul.f32 %v3585, 1.442695
      %v4080 = vpow.pop %v4079
      %v4081 = vmul.f32 %v3586, 1.442695
      %v4082 = vpow.pop %v4081
      %v4083 = vmul.f32 %v3587, 1.442695
      %v4084 = vpow.pop %v4083
      %v4085 = vmul.f32 %v3588, 1.442695
      %v4086 = vpow.pop %v4085
      %v4087 = vmul.f32 %v3589, 1.442695
      %v4088 = vpow.pop %v4087
      %v4089 = vmul.f32 %v3590, 1.442695
      %v4090 = vpow.pop %v4089
      %v4091 = vmul.f32 %v3591, 1.442695
      %v4092 = vpow.pop %v4091
      %v4093 = vmul.f32 %v3592, 1.442695
      %v4094 = vpow.pop %v4093
      %v4095 = vmul.f32 %v3593, 1.442695
      %v4096 = vpow.pop %v4095
      %v4097 = vmul.f32 %v3594, 1.442695
      %v4098 = vpow.pop %v4097
      %v4099 = vmul.f32 %v3595, 1.442695
      %v4100 = vpow.pop %v4099
      %v4101 = vmul.f32 %v3596, 1.442695
      %v4102 = vpow.pop %v4101
      %v4103 = vmul.f32 %v3597, 1.442695
      %v4104 = vpow.pop %v4103
      %v4105 = vmul.f32 %v3598, 1.442695
      %v4106 = vpow.pop %v4105
      %v4107 = vmul.f32 %v3599, 1.442695
      %v4108 = vpow.pop %v4107
      %v4109 = vmul.f32 %v3600, 1.442695
      %v4110 = vpow.pop %v4109
      %v4111 = vmul.f32 %v3601, 1.442695
      %v4112 = vpow.pop %v4111
      %v4113 = vmul.f32 %v3602, 1.442695
      %v4114 = vpow.pop %v4113
      %v4115 = vadd.f32 %v3604, %v3606
      %4116 = vadd.xlane.f32.xlu0 %v4115
      %v4117 = vpop.xlane.xlu0 %4116
      %v4118 = vadd.f32 %v3608, %v3610
      %4119 = vadd.xlane.f32.xlu0 %v4118
      %v4120 = vpop.xlane.xlu0 %4119
      %v4121 = vadd.f32 %v3612, %v3614
      %4122 = vadd.xlane.f32.xlu0 %v4121
      %v4123 = vpop.xlane.xlu0 %4122
      %v4124 = vadd.f32 %v3616, %v3618
      %4125 = vadd.xlane.f32.xlu0 %v4124
      %v4126 = vpop.xlane.xlu0 %4125
      %v4127 = vadd.f32 %v3620, %v3622
      %4128 = vadd.xlane.f32.xlu0 %v4127
      %v4129 = vpop.xlane.xlu0 %4128
      %v4130 = vadd.f32 %v3624, %v3626
      %4131 = vadd.xlane.f32.xlu0 %v4130
      %v4132 = vpop.xlane.xlu0 %4131
      %v4133 = vadd.f32 %v3628, %v3630
      %4134 = vadd.xlane.f32.xlu0 %v4133
      %v4135 = vpop.xlane.xlu0 %4134
      %v4136 = vadd.f32 %v3632, %v3634
      %4137 = vadd.xlane.f32.xlu0 %v4136
      %v4138 = vpop.xlane.xlu0 %4137
      %v4139 = vadd.f32 %v3636, %v3638
      %4140 = vadd.xlane.f32.xlu0 %v4139
      %v4141 = vpop.xlane.xlu0 %4140
      %v4142 = vadd.f32 %v3640, %v3642
      %4143 = vadd.xlane.f32.xlu0 %v4142
      %v4144 = vpop.xlane.xlu0 %4143
      %v4145 = vadd.f32 %v3644, %v3646
      %4146 = vadd.xlane.f32.xlu0 %v4145
      %v4147 = vpop.xlane.xlu0 %4146
      %v4148 = vadd.f32 %v3648, %v3650
      %4149 = vadd.xlane.f32.xlu0 %v4148
      %v4150 = vpop.xlane.xlu0 %4149
      %v4151 = vadd.f32 %v3652, %v3654
      %4152 = vadd.xlane.f32.xlu0 %v4151
      %v4153 = vpop.xlane.xlu0 %4152
      %v4154 = vadd.f32 %v3656, %v3658
      %4155 = vadd.xlane.f32.xlu0 %v4154
      %v4156 = vpop.xlane.xlu0 %4155
      %v4157 = vadd.f32 %v3660, %v3662
      %4158 = vadd.xlane.f32.xlu0 %v4157
      %v4159 = vpop.xlane.xlu0 %4158
      %v4160 = vadd.f32 %v3664, %v3666
      %4161 = vadd.xlane.f32.xlu0 %v4160
      %v4162 = vpop.xlane.xlu0 %4161
      %v4163 = vadd.f32 %v3668, %v3670
      %4164 = vadd.xlane.f32.xlu0 %v4163
      %v4165 = vpop.xlane.xlu0 %4164
      %v4166 = vadd.f32 %v3672, %v3674
      %4167 = vadd.xlane.f32.xlu0 %v4166
      %v4168 = vpop.xlane.xlu0 %4167
      %v4169 = vadd.f32 %v3676, %v3678
      %4170 = vadd.xlane.f32.xlu0 %v4169
      %v4171 = vpop.xlane.xlu0 %4170
      %v4172 = vadd.f32 %v3680, %v3682
      %4173 = vadd.xlane.f32.xlu0 %v4172
      %v4174 = vpop.xlane.xlu0 %4173
      %v4175 = vadd.f32 %v3684, %v3686
      %4176 = vadd.xlane.f32.xlu0 %v4175
      %v4177 = vpop.xlane.xlu0 %4176
      %v4178 = vadd.f32 %v3688, %v3690
      %4179 = vadd.xlane.f32.xlu0 %v4178
      %v4180 = vpop.xlane.xlu0 %4179
      %v4181 = vadd.f32 %v3692, %v3694
      %4182 = vadd.xlane.f32.xlu0 %v4181
      %v4183 = vpop.xlane.xlu0 %4182
      %v4184 = vadd.f32 %v3696, %v3698
      %4185 = vadd.xlane.f32.xlu0 %v4184
      %v4186 = vpop.xlane.xlu0 %4185
      %v4187 = vadd.f32 %v3700, %v3702
      %4188 = vadd.xlane.f32.xlu0 %v4187
      %v4189 = vpop.xlane.xlu0 %4188
      %v4190 = vadd.f32 %v3704, %v3706
      %4191 = vadd.xlane.f32.xlu0 %v4190
      %v4192 = vpop.xlane.xlu0 %4191
      %v4193 = vadd.f32 %v3708, %v3710
      %4194 = vadd.xlane.f32.xlu0 %v4193
      %v4195 = vpop.xlane.xlu0 %4194
      %v4196 = vadd.f32 %v3712, %v3714
      %4197 = vadd.xlane.f32.xlu0 %v4196
      %v4198 = vpop.xlane.xlu0 %4197
      %v4199 = vadd.f32 %v3716, %v3718
      %4200 = vadd.xlane.f32.xlu0 %v4199
      %v4201 = vpop.xlane.xlu0 %4200
      %v4202 = vadd.f32 %v3720, %v3722
      %4203 = vadd.xlane.f32.xlu0 %v4202
      %v4204 = vpop.xlane.xlu0 %4203
      %v4205 = vadd.f32 %v3724, %v3726
      %4206 = vadd.xlane.f32.xlu0 %v4205
      %v4207 = vpop.xlane.xlu0 %4206
      %v4208 = vadd.f32 %v3728, %v3730
      %4209 = vadd.xlane.f32.xlu0 %v4208
      %v4210 = vpop.xlane.xlu0 %4209
      %v4211 = vadd.f32 %v3732, %v3734
      %4212 = vadd.xlane.f32.xlu0 %v4211
      %v4213 = vpop.xlane.xlu0 %4212
      %v4214 = vadd.f32 %v3736, %v3738
      %4215 = vadd.xlane.f32.xlu0 %v4214
      %v4216 = vpop.xlane.xlu0 %4215
      %v4217 = vadd.f32 %v3740, %v3742
      %4218 = vadd.xlane.f32.xlu0 %v4217
      %v4219 = vpop.xlane.xlu0 %4218
      %v4220 = vadd.f32 %v3744, %v3746
      %4221 = vadd.xlane.f32.xlu0 %v4220
      %v4222 = vpop.xlane.xlu0 %4221
      %v4223 = vadd.f32 %v3748, %v3750
      %4224 = vadd.xlane.f32.xlu0 %v4223
      %v4225 = vpop.xlane.xlu0 %4224
      %v4226 = vadd.f32 %v3752, %v3754
      %4227 = vadd.xlane.f32.xlu0 %v4226
      %v4228 = vpop.xlane.xlu0 %4227
      %v4229 = vadd.f32 %v3756, %v3758
      %4230 = vadd.xlane.f32.xlu0 %v4229
      %v4231 = vpop.xlane.xlu0 %4230
      %v4232 = vadd.f32 %v3760, %v3762
      %4233 = vadd.xlane.f32.xlu0 %v4232
      %v4234 = vpop.xlane.xlu0 %4233
      %v4235 = vadd.f32 %v3764, %v3766
      %4236 = vadd.xlane.f32.xlu0 %v4235
      %v4237 = vpop.xlane.xlu0 %4236
      %v4238 = vadd.f32 %v3768, %v3770
      %4239 = vadd.xlane.f32.xlu0 %v4238
      %v4240 = vpop.xlane.xlu0 %4239
      %v4241 = vadd.f32 %v3772, %v3774
      %4242 = vadd.xlane.f32.xlu0 %v4241
      %v4243 = vpop.xlane.xlu0 %4242
      %v4244 = vadd.f32 %v3776, %v3778
      %4245 = vadd.xlane.f32.xlu0 %v4244
      %v4246 = vpop.xlane.xlu0 %4245
      %v4247 = vadd.f32 %v3780, %v3782
      %4248 = vadd.xlane.f32.xlu0 %v4247
      %v4249 = vpop.xlane.xlu0 %4248
      %v4250 = vadd.f32 %v3784, %v3786
      %4251 = vadd.xlane.f32.xlu0 %v4250
      %v4252 = vpop.xlane.xlu0 %4251
      %v4253 = vadd.f32 %v3788, %v3790
      %4254 = vadd.xlane.f32.xlu0 %v4253
      %v4255 = vpop.xlane.xlu0 %4254
      %v4256 = vadd.f32 %v3792, %v3794
      %4257 = vadd.xlane.f32.xlu0 %v4256
      %v4258 = vpop.xlane.xlu0 %4257
      %v4259 = vadd.f32 %v3796, %v3798
      %4260 = vadd.xlane.f32.xlu0 %v4259
      %v4261 = vpop.xlane.xlu0 %4260
      %v4262 = vadd.f32 %v3800, %v3802
      %4263 = vadd.xlane.f32.xlu0 %v4262
      %v4264 = vpop.xlane.xlu0 %4263
      %v4265 = vadd.f32 %v3804, %v3806
      %4266 = vadd.xlane.f32.xlu0 %v4265
      %v4267 = vpop.xlane.xlu0 %4266
      %v4268 = vadd.f32 %v3808, %v3810
      %4269 = vadd.xlane.f32.xlu0 %v4268
      %v4270 = vpop.xlane.xlu0 %4269
      %v4271 = vadd.f32 %v3812, %v3814
      %4272 = vadd.xlane.f32.xlu0 %v4271
      %v4273 = vpop.xlane.xlu0 %4272
      %v4274 = vadd.f32 %v3816, %v3818
      %4275 = vadd.xlane.f32.xlu0 %v4274
      %v4276 = vpop.xlane.xlu0 %4275
      %v4277 = vadd.f32 %v3820, %v3822
      %4278 = vadd.xlane.f32.xlu0 %v4277
      %v4279 = vpop.xlane.xlu0 %4278
      %v4280 = vadd.f32 %v3824, %v3826
      %4281 = vadd.xlane.f32.xlu0 %v4280
      %v4282 = vpop.xlane.xlu0 %4281
      %v4283 = vadd.f32 %v3828, %v3830
      %4284 = vadd.xlane.f32.xlu0 %v4283
      %v4285 = vpop.xlane.xlu0 %4284
      %v4286 = vadd.f32 %v3832, %v3834
      %4287 = vadd.xlane.f32.xlu0 %v4286
      %v4288 = vpop.xlane.xlu0 %4287
      %v4289 = vadd.f32 %v3836, %v3838
      %4290 = vadd.xlane.f32.xlu0 %v4289
      %v4291 = vpop.xlane.xlu0 %4290
      %v4292 = vadd.f32 %v3840, %v3842
      %4293 = vadd.xlane.f32.xlu0 %v4292
      %v4294 = vpop.xlane.xlu0 %4293
      %v4295 = vadd.f32 %v3844, %v3846
      %4296 = vadd.xlane.f32.xlu0 %v4295
      %v4297 = vpop.xlane.xlu0 %4296
      %v4298 = vadd.f32 %v3848, %v3850
      %4299 = vadd.xlane.f32.xlu0 %v4298
      %v4300 = vpop.xlane.xlu0 %4299
      %v4301 = vadd.f32 %v3852, %v3854
      %4302 = vadd.xlane.f32.xlu0 %v4301
      %v4303 = vpop.xlane.xlu0 %4302
      %v4304 = vadd.f32 %v3856, %v3858
      %4305 = vadd.xlane.f32.xlu0 %v4304
      %v4306 = vpop.xlane.xlu0 %4305
      %v4307 = vadd.f32 %v3860, %v3862
      %4308 = vadd.xlane.f32.xlu0 %v4307
      %v4309 = vpop.xlane.xlu0 %4308
      %v4310 = vadd.f32 %v3864, %v3866
      %4311 = vadd.xlane.f32.xlu0 %v4310
      %v4312 = vpop.xlane.xlu0 %4311
      %v4313 = vadd.f32 %v3868, %v3870
      %4314 = vadd.xlane.f32.xlu0 %v4313
      %v4315 = vpop.xlane.xlu0 %4314
      %v4316 = vadd.f32 %v3872, %v3874
      %4317 = vadd.xlane.f32.xlu0 %v4316
      %v4318 = vpop.xlane.xlu0 %4317
      %v4319 = vadd.f32 %v3876, %v3878
      %4320 = vadd.xlane.f32.xlu0 %v4319
      %v4321 = vpop.xlane.xlu0 %4320
      %v4322 = vadd.f32 %v3880, %v3882
      %4323 = vadd.xlane.f32.xlu0 %v4322
      %v4324 = vpop.xlane.xlu0 %4323
      %v4325 = vadd.f32 %v3884, %v3886
      %4326 = vadd.xlane.f32.xlu0 %v4325
      %v4327 = vpop.xlane.xlu0 %4326
      %v4328 = vadd.f32 %v3888, %v3890
      %4329 = vadd.xlane.f32.xlu0 %v4328
      %v4330 = vpop.xlane.xlu0 %4329
      %v4331 = vadd.f32 %v3892, %v3894
      %4332 = vadd.xlane.f32.xlu0 %v4331
      %v4333 = vpop.xlane.xlu0 %4332
      %v4334 = vadd.f32 %v3896, %v3898
      %4335 = vadd.xlane.f32.xlu0 %v4334
      %v4336 = vpop.xlane.xlu0 %4335
      %v4337 = vadd.f32 %v3900, %v3902
      %4338 = vadd.xlane.f32.xlu0 %v4337
      %v4339 = vpop.xlane.xlu0 %4338
      %v4340 = vadd.f32 %v3904, %v3906
      %4341 = vadd.xlane.f32.xlu0 %v4340
      %v4342 = vpop.xlane.xlu0 %4341
      %v4343 = vadd.f32 %v3908, %v3910
      %4344 = vadd.xlane.f32.xlu0 %v4343
      %v4345 = vpop.xlane.xlu0 %4344
      %v4346 = vadd.f32 %v3912, %v3914
      %4347 = vadd.xlane.f32.xlu0 %v4346
      %v4348 = vpop.xlane.xlu0 %4347
      %v4349 = vadd.f32 %v3916, %v3918
      %4350 = vadd.xlane.f32.xlu0 %v4349
      %v4351 = vpop.xlane.xlu0 %4350
      %v4352 = vadd.f32 %v3920, %v3922
      %4353 = vadd.xlane.f32.xlu0 %v4352
      %v4354 = vpop.xlane.xlu0 %4353
      %v4355 = vadd.f32 %v3924, %v3926
      %4356 = vadd.xlane.f32.xlu0 %v4355
      %v4357 = vpop.xlane.xlu0 %4356
      %v4358 = vadd.f32 %v3928, %v3930
      %4359 = vadd.xlane.f32.xlu0 %v4358
      %v4360 = vpop.xlane.xlu0 %4359
      %v4361 = vadd.f32 %v3932, %v3934
      %4362 = vadd.xlane.f32.xlu0 %v4361
      %v4363 = vpop.xlane.xlu0 %4362
      %v4364 = vadd.f32 %v3936, %v3938
      %4365 = vadd.xlane.f32.xlu0 %v4364
      %v4366 = vpop.xlane.xlu0 %4365
      %v4367 = vadd.f32 %v3940, %v3942
      %4368 = vadd.xlane.f32.xlu0 %v4367
      %v4369 = vpop.xlane.xlu0 %4368
      %v4370 = vadd.f32 %v3944, %v3946
      %4371 = vadd.xlane.f32.xlu0 %v4370
      %v4372 = vpop.xlane.xlu0 %4371
      %v4373 = vadd.f32 %v3948, %v3950
      %4374 = vadd.xlane.f32.xlu0 %v4373
      %v4375 = vpop.xlane.xlu0 %4374
      %v4376 = vadd.f32 %v3952, %v3954
      %4377 = vadd.xlane.f32.xlu0 %v4376
      %v4378 = vpop.xlane.xlu0 %4377
      %v4379 = vadd.f32 %v3956, %v3958
      %4380 = vadd.xlane.f32.xlu0 %v4379
      %v4381 = vpop.xlane.xlu0 %4380
      %v4382 = vadd.f32 %v3960, %v3962
      %4383 = vadd.xlane.f32.xlu0 %v4382
      %v4384 = vpop.xlane.xlu0 %4383
      %v4385 = vadd.f32 %v3964, %v3966
      %4386 = vadd.xlane.f32.xlu0 %v4385
      %v4387 = vpop.xlane.xlu0 %4386
      %v4388 = vadd.f32 %v3968, %v3970
      %4389 = vadd.xlane.f32.xlu0 %v4388
      %v4390 = vpop.xlane.xlu0 %4389
      %v4391 = vadd.f32 %v3972, %v3974
      %4392 = vadd.xlane.f32.xlu0 %v4391
      %v4393 = vpop.xlane.xlu0 %4392
      %v4394 = vadd.f32 %v3976, %v3978
      %4395 = vadd.xlane.f32.xlu0 %v4394
      %v4396 = vpop.xlane.xlu0 %4395
      %v4397 = vadd.f32 %v3980, %v3982
      %4398 = vadd.xlane.f32.xlu0 %v4397
      %v4399 = vpop.xlane.xlu0 %4398
      %v4400 = vadd.f32 %v3984, %v3986
      %4401 = vadd.xlane.f32.xlu0 %v4400
      %v4402 = vpop.xlane.xlu0 %4401
      %v4403 = vadd.f32 %v3988, %v3990
      %4404 = vadd.xlane.f32.xlu0 %v4403
      %v4405 = vpop.xlane.xlu0 %4404
      %v4406 = vadd.f32 %v3992, %v3994
      %4407 = vadd.xlane.f32.xlu0 %v4406
      %v4408 = vpop.xlane.xlu0 %4407
      %v4409 = vadd.f32 %v3996, %v3998
      %4410 = vadd.xlane.f32.xlu0 %v4409
      %v4411 = vpop.xlane.xlu0 %4410
      %v4412 = vadd.f32 %v4000, %v4002
      %4413 = vadd.xlane.f32.xlu0 %v4412
      %v4414 = vpop.xlane.xlu0 %4413
      %v4415 = vadd.f32 %v4004, %v4006
      %4416 = vadd.xlane.f32.xlu0 %v4415
      %v4417 = vpop.xlane.xlu0 %4416
      %v4418 = vadd.f32 %v4008, %v4010
      %4419 = vadd.xlane.f32.xlu0 %v4418
      %v4420 = vpop.xlane.xlu0 %4419
      %v4421 = vadd.f32 %v4012, %v4014
      %4422 = vadd.xlane.f32.xlu0 %v4421
      %v4423 = vpop.xlane.xlu0 %4422
      %v4424 = vadd.f32 %v4016, %v4018
      %4425 = vadd.xlane.f32.xlu0 %v4424
      %v4426 = vpop.xlane.xlu0 %4425
      %v4427 = vadd.f32 %v4020, %v4022
      %4428 = vadd.xlane.f32.xlu0 %v4427
      %v4429 = vpop.xlane.xlu0 %4428
      %v4430 = vadd.f32 %v4024, %v4026
      %4431 = vadd.xlane.f32.xlu0 %v4430
      %v4432 = vpop.xlane.xlu0 %4431
      %v4433 = vadd.f32 %v4028, %v4030
      %4434 = vadd.xlane.f32.xlu0 %v4433
      %v4435 = vpop.xlane.xlu0 %4434
      %v4436 = vadd.f32 %v4032, %v4034
      %4437 = vadd.xlane.f32.xlu0 %v4436
      %v4438 = vpop.xlane.xlu0 %4437
      %v4439 = vadd.f32 %v4036, %v4038
      %4440 = vadd.xlane.f32.xlu0 %v4439
      %v4441 = vpop.xlane.xlu0 %4440
      %v4442 = vadd.f32 %v4040, %v4042
      %4443 = vadd.xlane.f32.xlu0 %v4442
      %v4444 = vpop.xlane.xlu0 %4443
      %v4445 = vadd.f32 %v4044, %v4046
      %4446 = vadd.xlane.f32.xlu0 %v4445
      %v4447 = vpop.xlane.xlu0 %4446
      %v4448 = vadd.f32 %v4048, %v4050
      %4449 = vadd.xlane.f32.xlu0 %v4448
      %v4450 = vpop.xlane.xlu0 %4449
      %v4451 = vadd.f32 %v4052, %v4054
      %4452 = vadd.xlane.f32.xlu0 %v4451
      %v4453 = vpop.xlane.xlu0 %4452
      %v4454 = vadd.f32 %v4056, %v4058
      %4455 = vadd.xlane.f32.xlu0 %v4454
      %v4456 = vpop.xlane.xlu0 %4455
      %v4457 = vadd.f32 %v4060, %v4062
      %4458 = vadd.xlane.f32.xlu0 %v4457
      %v4459 = vpop.xlane.xlu0 %4458
      %v4460 = vadd.f32 %v4064, %v4066
      %4461 = vadd.xlane.f32.xlu0 %v4460
      %v4462 = vpop.xlane.xlu0 %4461
      %v4463 = vadd.f32 %v4068, %v4070
      %4464 = vadd.xlane.f32.xlu0 %v4463
      %v4465 = vpop.xlane.xlu0 %4464
      %v4466 = vadd.f32 %v4072, %v4074
      %4467 = vadd.xlane.f32.xlu0 %v4466
      %v4468 = vpop.xlane.xlu0 %4467
      %v4469 = vadd.f32 %v4076, %v4078
      %4470 = vadd.xlane.f32.xlu0 %v4469
      %v4471 = vpop.xlane.xlu0 %4470
      %v4472 = vadd.f32 %v4080, %v4082
      %4473 = vadd.xlane.f32.xlu0 %v4472
      %v4474 = vpop.xlane.xlu0 %4473
      %v4475 = vadd.f32 %v4084, %v4086
      %4476 = vadd.xlane.f32.xlu0 %v4475
      %v4477 = vpop.xlane.xlu0 %4476
      %v4478 = vadd.f32 %v4088, %v4090
      %4479 = vadd.xlane.f32.xlu0 %v4478
      %v4480 = vpop.xlane.xlu0 %4479
      %v4481 = vadd.f32 %v4092, %v4094
      %4482 = vadd.xlane.f32.xlu0 %v4481
      %v4483 = vpop.xlane.xlu0 %4482
      %v4484 = vadd.f32 %v4096, %v4098
      %4485 = vadd.xlane.f32.xlu0 %v4484
      %v4486 = vpop.xlane.xlu0 %4485
      %v4487 = vadd.f32 %v4100, %v4102
      %4488 = vadd.xlane.f32.xlu0 %v4487
      %v4489 = vpop.xlane.xlu0 %4488
      %v4490 = vadd.f32 %v4104, %v4106
      %4491 = vadd.xlane.f32.xlu0 %v4490
      %v4492 = vpop.xlane.xlu0 %4491
      %v4493 = vadd.f32 %v4108, %v4110
      %4494 = vadd.xlane.f32.xlu0 %v4493
      %v4495 = vpop.xlane.xlu0 %4494
      %v4496 = vadd.f32 %v4112, %v4114
      %4497 = vadd.xlane.f32.xlu0 %v4496
      %v4498 = vpop.xlane.xlu0 %4497
      %v4499 = vrcp.pop %v4117
      %v4500 = vmul.f32 %v3604, %v4499
      %v4501 = vmul.f32 %v3606, %v4499
      %v4502 = vrcp.pop %v4120
      %v4503 = vmul.f32 %v3608, %v4502
      %v4504 = vmul.f32 %v3610, %v4502
      %v4505 = vrcp.pop %v4123
      %v4506 = vmul.f32 %v3612, %v4505
      %v4507 = vmul.f32 %v3614, %v4505
      %v4508 = vrcp.pop %v4126
      %v4509 = vmul.f32 %v3616, %v4508
      %v4510 = vmul.f32 %v3618, %v4508
      %v4511 = vrcp.pop %v4129
      %v4512 = vmul.f32 %v3620, %v4511
      %v4513 = vmul.f32 %v3622, %v4511
      %v4514 = vrcp.pop %v4132
      %v4515 = vmul.f32 %v3624, %v4514
      %v4516 = vmul.f32 %v3626, %v4514
      %v4517 = vrcp.pop %v4135
      %v4518 = vmul.f32 %v3628, %v4517
      %v4519 = vmul.f32 %v3630, %v4517
      %v4520 = vrcp.pop %v4138
      %v4521 = vmul.f32 %v3632, %v4520
      %v4522 = vmul.f32 %v3634, %v4520
      %v4523 = vrcp.pop %v4141
      %v4524 = vmul.f32 %v3636, %v4523
      %v4525 = vmul.f32 %v3638, %v4523
      %v4526 = vrcp.pop %v4144
      %v4527 = vmul.f32 %v3640, %v4526
      %v4528 = vmul.f32 %v3642, %v4526
      %v4529 = vrcp.pop %v4147
      %v4530 = vmul.f32 %v3644, %v4529
      %v4531 = vmul.f32 %v3646, %v4529
      %v4532 = vrcp.pop %v4150
      %v4533 = vmul.f32 %v3648, %v4532
      %v4534 = vmul.f32 %v3650, %v4532
      %v4535 = vrcp.pop %v4153
      %v4536 = vmul.f32 %v3652, %v4535
      %v4537 = vmul.f32 %v3654, %v4535
      %v4538 = vrcp.pop %v4156
      %v4539 = vmul.f32 %v3656, %v4538
      %v4540 = vmul.f32 %v3658, %v4538
      %v4541 = vrcp.pop %v4159
      %v4542 = vmul.f32 %v3660, %v4541
      %v4543 = vmul.f32 %v3662, %v4541
      %v4544 = vrcp.pop %v4162
      %v4545 = vmul.f32 %v3664, %v4544
      %v4546 = vmul.f32 %v3666, %v4544
      %v4547 = vrcp.pop %v4165
      %v4548 = vmul.f32 %v3668, %v4547
      %v4549 = vmul.f32 %v3670, %v4547
      %v4550 = vrcp.pop %v4168
      %v4551 = vmul.f32 %v3672, %v4550
      %v4552 = vmul.f32 %v3674, %v4550
      %v4553 = vrcp.pop %v4171
      %v4554 = vmul.f32 %v3676, %v4553
      %v4555 = vmul.f32 %v3678, %v4553
      %v4556 = vrcp.pop %v4174
      %v4557 = vmul.f32 %v3680, %v4556
      %v4558 = vmul.f32 %v3682, %v4556
      %v4559 = vrcp.pop %v4177
      %v4560 = vmul.f32 %v3684, %v4559
      %v4561 = vmul.f32 %v3686, %v4559
      %v4562 = vrcp.pop %v4180
      %v4563 = vmul.f32 %v3688, %v4562
      %v4564 = vmul.f32 %v3690, %v4562
      %v4565 = vrcp.pop %v4183
      %v4566 = vmul.f32 %v3692, %v4565
      %v4567 = vmul.f32 %v3694, %v4565
      %v4568 = vrcp.pop %v4186
      %v4569 = vmul.f32 %v3696, %v4568
      %v4570 = vmul.f32 %v3698, %v4568
      %v4571 = vrcp.pop %v4189
      %v4572 = vmul.f32 %v3700, %v4571
      %v4573 = vmul.f32 %v3702, %v4571
      %v4574 = vrcp.pop %v4192
      %v4575 = vmul.f32 %v3704, %v4574
      %v4576 = vmul.f32 %v3706, %v4574
      %v4577 = vrcp.pop %v4195
      %v4578 = vmul.f32 %v3708, %v4577
      %v4579 = vmul.f32 %v3710, %v4577
      %v4580 = vrcp.pop %v4198
      %v4581 = vmul.f32 %v3712, %v4580
      %v4582 = vmul.f32 %v3714, %v4580
      %v4583 = vrcp.pop %v4201
      %v4584 = vmul.f32 %v3716, %v4583
      %v4585 = vmul.f32 %v3718, %v4583
      %v4586 = vrcp.pop %v4204
      %v4587 = vmul.f32 %v3720, %v4586
      %v4588 = vmul.f32 %v3722, %v4586
      %v4589 = vrcp.pop %v4207
      %v4590 = vmul.f32 %v3724, %v4589
      %v4591 = vmul.f32 %v3726, %v4589
      %v4592 = vrcp.pop %v4210
      %v4593 = vmul.f32 %v3728, %v4592
      %v4594 = vmul.f32 %v3730, %v4592
      %v4595 = vrcp.pop %v4213
      %v4596 = vmul.f32 %v3732, %v4595
      %v4597 = vmul.f32 %v3734, %v4595
      %v4598 = vrcp.pop %v4216
      %v4599 = vmul.f32 %v3736, %v4598
      %v4600 = vmul.f32 %v3738, %v4598
      %v4601 = vrcp.pop %v4219
      %v4602 = vmul.f32 %v3740, %v4601
      %v4603 = vmul.f32 %v3742, %v4601
      %v4604 = vrcp.pop %v4222
      %v4605 = vmul.f32 %v3744, %v4604
      %v4606 = vmul.f32 %v3746, %v4604
      %v4607 = vrcp.pop %v4225
      %v4608 = vmul.f32 %v3748, %v4607
      %v4609 = vmul.f32 %v3750, %v4607
      %v4610 = vrcp.pop %v4228
      %v4611 = vmul.f32 %v3752, %v4610
      %v4612 = vmul.f32 %v3754, %v4610
      %v4613 = vrcp.pop %v4231
      %v4614 = vmul.f32 %v3756, %v4613
      %v4615 = vmul.f32 %v3758, %v4613
      %v4616 = vrcp.pop %v4234
      %v4617 = vmul.f32 %v3760, %v4616
      %v4618 = vmul.f32 %v3762, %v4616
      %v4619 = vrcp.pop %v4237
      %v4620 = vmul.f32 %v3764, %v4619
      %v4621 = vmul.f32 %v3766, %v4619
      %v4622 = vrcp.pop %v4240
      %v4623 = vmul.f32 %v3768, %v4622
      %v4624 = vmul.f32 %v3770, %v4622
      %v4625 = vrcp.pop %v4243
      %v4626 = vmul.f32 %v3772, %v4625
      %v4627 = vmul.f32 %v3774, %v4625
      %v4628 = vrcp.pop %v4246
      %v4629 = vmul.f32 %v3776, %v4628
      %v4630 = vmul.f32 %v3778, %v4628
      %v4631 = vrcp.pop %v4249
      %v4632 = vmul.f32 %v3780, %v4631
      %v4633 = vmul.f32 %v3782, %v4631
      %v4634 = vrcp.pop %v4252
      %v4635 = vmul.f32 %v3784, %v4634
      %v4636 = vmul.f32 %v3786, %v4634
      %v4637 = vrcp.pop %v4255
      %v4638 = vmul.f32 %v3788, %v4637
      %v4639 = vmul.f32 %v3790, %v4637
      %v4640 = vrcp.pop %v4258
      %v4641 = vmul.f32 %v3792, %v4640
      %v4642 = vmul.f32 %v3794, %v4640
      %v4643 = vrcp.pop %v4261
      %v4644 = vmul.f32 %v3796, %v4643
      %v4645 = vmul.f32 %v3798, %v4643
      %v4646 = vrcp.pop %v4264
      %v4647 = vmul.f32 %v3800, %v4646
      %v4648 = vmul.f32 %v3802, %v4646
      %v4649 = vrcp.pop %v4267
      %v4650 = vmul.f32 %v3804, %v4649
      %v4651 = vmul.f32 %v3806, %v4649
      %v4652 = vrcp.pop %v4270
      %v4653 = vmul.f32 %v3808, %v4652
      %v4654 = vmul.f32 %v3810, %v4652
      %v4655 = vrcp.pop %v4273
      %v4656 = vmul.f32 %v3812, %v4655
      %v4657 = vmul.f32 %v3814, %v4655
      %v4658 = vrcp.pop %v4276
      %v4659 = vmul.f32 %v3816, %v4658
      %v4660 = vmul.f32 %v3818, %v4658
      %v4661 = vrcp.pop %v4279
      %v4662 = vmul.f32 %v3820, %v4661
      %v4663 = vmul.f32 %v3822, %v4661
      %v4664 = vrcp.pop %v4282
      %v4665 = vmul.f32 %v3824, %v4664
      %v4666 = vmul.f32 %v3826, %v4664
      %v4667 = vrcp.pop %v4285
      %v4668 = vmul.f32 %v3828, %v4667
      %v4669 = vmul.f32 %v3830, %v4667
      %v4670 = vrcp.pop %v4288
      %v4671 = vmul.f32 %v3832, %v4670
      %v4672 = vmul.f32 %v3834, %v4670
      %v4673 = vrcp.pop %v4291
      %v4674 = vmul.f32 %v3836, %v4673
      %v4675 = vmul.f32 %v3838, %v4673
      %v4676 = vrcp.pop %v4294
      %v4677 = vmul.f32 %v3840, %v4676
      %v4678 = vmul.f32 %v3842, %v4676
      %v4679 = vrcp.pop %v4297
      %v4680 = vmul.f32 %v3844, %v4679
      %v4681 = vmul.f32 %v3846, %v4679
      %v4682 = vrcp.pop %v4300
      %v4683 = vmul.f32 %v3848, %v4682
      %v4684 = vmul.f32 %v3850, %v4682
      %v4685 = vrcp.pop %v4303
      %v4686 = vmul.f32 %v3852, %v4685
      %v4687 = vmul.f32 %v3854, %v4685
      %v4688 = vrcp.pop %v4306
      %v4689 = vmul.f32 %v3856, %v4688
      %v4690 = vmul.f32 %v3858, %v4688
      %v4691 = vrcp.pop %v4309
      %v4692 = vmul.f32 %v3860, %v4691
      %v4693 = vmul.f32 %v3862, %v4691
      %v4694 = vrcp.pop %v4312
      %v4695 = vmul.f32 %v3864, %v4694
      %v4696 = vmul.f32 %v3866, %v4694
      %v4697 = vrcp.pop %v4315
      %v4698 = vmul.f32 %v3868, %v4697
      %v4699 = vmul.f32 %v3870, %v4697
      %v4700 = vrcp.pop %v4318
      %v4701 = vmul.f32 %v3872, %v4700
      %v4702 = vmul.f32 %v3874, %v4700
      %v4703 = vrcp.pop %v4321
      %v4704 = vmul.f32 %v3876, %v4703
      %v4705 = vmul.f32 %v3878, %v4703
      %v4706 = vrcp.pop %v4324
      %v4707 = vmul.f32 %v3880, %v4706
      %v4708 = vmul.f32 %v3882, %v4706
      %v4709 = vrcp.pop %v4327
      %v4710 = vmul.f32 %v3884, %v4709
      %v4711 = vmul.f32 %v3886, %v4709
      %v4712 = vrcp.pop %v4330
      %v4713 = vmul.f32 %v3888, %v4712
      %v4714 = vmul.f32 %v3890, %v4712
      %v4715 = vrcp.pop %v4333
      %v4716 = vmul.f32 %v3892, %v4715
      %v4717 = vmul.f32 %v3894, %v4715
      %v4718 = vrcp.pop %v4336
      %v4719 = vmul.f32 %v3896, %v4718
      %v4720 = vmul.f32 %v3898, %v4718
      %v4721 = vrcp.pop %v4339
      %v4722 = vmul.f32 %v3900, %v4721
      %v4723 = vmul.f32 %v3902, %v4721
      %v4724 = vrcp.pop %v4342
      %v4725 = vmul.f32 %v3904, %v4724
      %v4726 = vmul.f32 %v3906, %v4724
      %v4727 = vrcp.pop %v4345
      %v4728 = vmul.f32 %v3908, %v4727
      %v4729 = vmul.f32 %v3910, %v4727
      %v4730 = vrcp.pop %v4348
      %v4731 = vmul.f32 %v3912, %v4730
      %v4732 = vmul.f32 %v3914, %v4730
      %v4733 = vrcp.pop %v4351
      %v4734 = vmul.f32 %v3916, %v4733
      %v4735 = vmul.f32 %v3918, %v4733
      %v4736 = vrcp.pop %v4354
      %v4737 = vmul.f32 %v3920, %v4736
      %v4738 = vmul.f32 %v3922, %v4736
      %v4739 = vrcp.pop %v4357
      %v4740 = vmul.f32 %v3924, %v4739
      %v4741 = vmul.f32 %v3926, %v4739
      %v4742 = vrcp.pop %v4360
      %v4743 = vmul.f32 %v3928, %v4742
      %v4744 = vmul.f32 %v3930, %v4742
      %v4745 = vrcp.pop %v4363
      %v4746 = vmul.f32 %v3932, %v4745
      %v4747 = vmul.f32 %v3934, %v4745
      %v4748 = vrcp.pop %v4366
      %v4749 = vmul.f32 %v3936, %v4748
      %v4750 = vmul.f32 %v3938, %v4748
      %v4751 = vrcp.pop %v4369
      %v4752 = vmul.f32 %v3940, %v4751
      %v4753 = vmul.f32 %v3942, %v4751
      %v4754 = vrcp.pop %v4372
      %v4755 = vmul.f32 %v3944, %v4754
      %v4756 = vmul.f32 %v3946, %v4754
      %v4757 = vrcp.pop %v4375
      %v4758 = vmul.f32 %v3948, %v4757
      %v4759 = vmul.f32 %v3950, %v4757
      %v4760 = vrcp.pop %v4378
      %v4761 = vmul.f32 %v3952, %v4760
      %v4762 = vmul.f32 %v3954, %v4760
      %v4763 = vrcp.pop %v4381
      %v4764 = vmul.f32 %v3956, %v4763
      %v4765 = vmul.f32 %v3958, %v4763
      %v4766 = vrcp.pop %v4384
      %v4767 = vmul.f32 %v3960, %v4766
      %v4768 = vmul.f32 %v3962, %v4766
      %v4769 = vrcp.pop %v4387
      %v4770 = vmul.f32 %v3964, %v4769
      %v4771 = vmul.f32 %v3966, %v4769
      %v4772 = vrcp.pop %v4390
      %v4773 = vmul.f32 %v3968, %v4772
      %v4774 = vmul.f32 %v3970, %v4772
      %v4775 = vrcp.pop %v4393
      %v4776 = vmul.f32 %v3972, %v4775
      %v4777 = vmul.f32 %v3974, %v4775
      %v4778 = vrcp.pop %v4396
      %v4779 = vmul.f32 %v3976, %v4778
      %v4780 = vmul.f32 %v3978, %v4778
      %v4781 = vrcp.pop %v4399
      %v4782 = vmul.f32 %v3980, %v4781
      %v4783 = vmul.f32 %v3982, %v4781
      %v4784 = vrcp.pop %v4402
      %v4785 = vmul.f32 %v3984, %v4784
      %v4786 = vmul.f32 %v3986, %v4784
      %v4787 = vrcp.pop %v4405
      %v4788 = vmul.f32 %v3988, %v4787
      %v4789 = vmul.f32 %v3990, %v4787
      %v4790 = vrcp.pop %v4408
      %v4791 = vmul.f32 %v3992, %v4790
      %v4792 = vmul.f32 %v3994, %v4790
      %v4793 = vrcp.pop %v4411
      %v4794 = vmul.f32 %v3996, %v4793
      %v4795 = vmul.f32 %v3998, %v4793
      %v4796 = vrcp.pop %v4414
      %v4797 = vmul.f32 %v4000, %v4796
      %v4798 = vmul.f32 %v4002, %v4796
      %v4799 = vrcp.pop %v4417
      %v4800 = vmul.f32 %v4004, %v4799
      %v4801 = vmul.f32 %v4006, %v4799
      %v4802 = vrcp.pop %v4420
      %v4803 = vmul.f32 %v4008, %v4802
      %v4804 = vmul.f32 %v4010, %v4802
      %v4805 = vrcp.pop %v4423
      %v4806 = vmul.f32 %v4012, %v4805
      %v4807 = vmul.f32 %v4014, %v4805
      %v4808 = vrcp.pop %v4426
      %v4809 = vmul.f32 %v4016, %v4808
      %v4810 = vmul.f32 %v4018, %v4808
      %v4811 = vrcp.pop %v4429
      %v4812 = vmul.f32 %v4020, %v4811
      %v4813 = vmul.f32 %v4022, %v4811
      %v4814 = vrcp.pop %v4432
      %v4815 = vmul.f32 %v4024, %v4814
      %v4816 = vmul.f32 %v4026, %v4814
      %v4817 = vrcp.pop %v4435
      %v4818 = vmul.f32 %v4028, %v4817
      %v4819 = vmul.f32 %v4030, %v4817
      %v4820 = vrcp.pop %v4438
      %v4821 = vmul.f32 %v4032, %v4820
      %v4822 = vmul.f32 %v4034, %v4820
      %v4823 = vrcp.pop %v4441
      %v4824 = vmul.f32 %v4036, %v4823
      %v4825 = vmul.f32 %v4038, %v4823
      %v4826 = vrcp.pop %v4444
      %v4827 = vmul.f32 %v4040, %v4826
      %v4828 = vmul.f32 %v4042, %v4826
      %v4829 = vrcp.pop %v4447
      %v4830 = vmul.f32 %v4044, %v4829
      %v4831 = vmul.f32 %v4046, %v4829
      %v4832 = vrcp.pop %v4450
      %v4833 = vmul.f32 %v4048, %v4832
      %v4834 = vmul.f32 %v4050, %v4832
      %v4835 = vrcp.pop %v4453
      %v4836 = vmul.f32 %v4052, %v4835
      %v4837 = vmul.f32 %v4054, %v4835
      %v4838 = vrcp.pop %v4456
      %v4839 = vmul.f32 %v4056, %v4838
      %v4840 = vmul.f32 %v4058, %v4838
      %v4841 = vrcp.pop %v4459
      %v4842 = vmul.f32 %v4060, %v4841
      %v4843 = vmul.f32 %v4062, %v4841
      %v4844 = vrcp.pop %v4462
      %v4845 = vmul.f32 %v4064, %v4844
      %v4846 = vmul.f32 %v4066, %v4844
      %v4847 = vrcp.pop %v4465
      %v4848 = vmul.f32 %v4068, %v4847
      %v4849 = vmul.f32 %v4070, %v4847
      %v4850 = vrcp.pop %v4468
      %v4851 = vmul.f32 %v4072, %v4850
      %v4852 = vmul.f32 %v4074, %v4850
      %v4853 = vrcp.pop %v4471
      %v4854 = vmul.f32 %v4076, %v4853
      %v4855 = vmul.f32 %v4078, %v4853
      %v4856 = vrcp.pop %v4474
      %v4857 = vmul.f32 %v4080, %v4856
      %v4858 = vmul.f32 %v4082, %v4856
      %v4859 = vrcp.pop %v4477
      %v4860 = vmul.f32 %v4084, %v4859
      %v4861 = vmul.f32 %v4086, %v4859
      %v4862 = vrcp.pop %v4480
      %v4863 = vmul.f32 %v4088, %v4862
      %v4864 = vmul.f32 %v4090, %v4862
      %v4865 = vrcp.pop %v4483
      %v4866 = vmul.f32 %v4092, %v4865
      %v4867 = vmul.f32 %v4094, %v4865
      %v4868 = vrcp.pop %v4486
      %v4869 = vmul.f32 %v4096, %v4868
      %v4870 = vmul.f32 %v4098, %v4868
      %v4871 = vrcp.pop %v4489
      %v4872 = vmul.f32 %v4100, %v4871
      %v4873 = vmul.f32 %v4102, %v4871
      %v4874 = vrcp.pop %v4492
      %v4875 = vmul.f32 %v4104, %v4874
      %v4876 = vmul.f32 %v4106, %v4874
      %v4877 = vrcp.pop %v4495
      %v4878 = vmul.f32 %v4108, %v4877
      %v4879 = vmul.f32 %v4110, %v4877
      %v4880 = vrcp.pop %v4498
      %v4881 = vmul.f32 %v4112, %v4880
      %v4882 = vmul.f32 %v4114, %v4880
      %4883 = vmatprep.subr.mxu0 %v4546
      %4884 = vmatpush1.xpose.msra.mxu0 %v4545
      %4885 = vmatprep.subr.mxu0 %v4543
      %4886 = vmatpush1.xpose.msra.mxu0 %v4542
      %4887 = vmatprep.subr.mxu0 %v4540
      %4888 = vmatpush1.xpose.msra.mxu0 %v4539
      %4889 = vmatprep.subr.mxu0 %v4537
      %4890 = vmatpush1.xpose.msra.mxu0 %v4536
      %4891 = vmatprep.subr.mxu0 %v4534
      %4892 = vmatpush1.xpose.msra.mxu0 %v4533
      %4893 = vmatprep.subr.mxu0 %v4531
      %4894 = vmatpush1.xpose.msra.mxu0 %v4530
      %4895 = vmatprep.subr.mxu0 %v4528
      %4896 = vmatpush1.xpose.msra.mxu0 %v4527
      %4897 = vmatprep.subr.mxu0 %v4525
      %4898 = vmatpush1.xpose.msra.mxu0 %v4524
      %4899 = vmatprep.subr.mxu0 %v4522
      %4900 = vmatpush1.xpose.msra.mxu0 %v4521
      %4901 = vmatprep.subr.mxu0 %v4519
      %4902 = vmatpush1.xpose.msra.mxu0 %v4518
      %4903 = vmatprep.subr.mxu0 %v4516
      %4904 = vmatpush1.xpose.msra.mxu0 %v4515
      %4905 = vmatprep.subr.mxu0 %v4513
      %4906 = vmatpush1.xpose.msra.mxu0 %v4512
      %4907 = vmatprep.subr.mxu0 %v4510
      %4908 = vmatpush1.xpose.msra.mxu0 %v4509
      %4909 = vmatprep.subr.mxu0 %v4507
      %4910 = vmatpush1.xpose.msra.mxu0 %v4506
      %4911 = vmatprep.subr.mxu0 %v4504
      %4912 = vmatpush1.xpose.msra.mxu0 %v4503
      %4913 = vmatprep.subr.mxu0 %v4501
      %4914 = vmatpush1.xpose.msra.mxu0 %v4500
      %4915 = vmatprep.subr.mxu0 %v4594
      %4916 = vmatpush2.xpose.msra.mxu0 %v4593
      %4917 = vmatprep.subr.mxu0 %v4591
      %4918 = vmatpush2.xpose.msra.mxu0 %v4590
      %4919 = vmatprep.subr.mxu0 %v4588
      %4920 = vmatpush2.xpose.msra.mxu0 %v4587
      %4921 = vmatprep.subr.mxu0 %v4585
      %4922 = vmatpush2.xpose.msra.mxu0 %v4584
      %4923 = vmatprep.subr.mxu0 %v4582
      %4924 = vmatpush2.xpose.msra.mxu0 %v4581
      %4925 = vmatprep.subr.mxu0 %v4579
      %4926 = vmatpush2.xpose.msra.mxu0 %v4578
      %4927 = vmatprep.subr.mxu0 %v4576
      %4928 = vmatpush2.xpose.msra.mxu0 %v4575
      %4929 = vmatprep.subr.mxu0 %v4573
      %4930 = vmatpush2.xpose.msra.mxu0 %v4572
      %4931 = vmatprep.subr.mxu0 %v4570
      %4932 = vmatpush2.xpose.msra.mxu0 %v4569
      %4933 = vmatprep.subr.mxu0 %v4567
      %4934 = vmatpush2.xpose.msra.mxu0 %v4566
      %4935 = vmatprep.subr.mxu0 %v4564
      %4936 = vmatpush2.xpose.msra.mxu0 %v4563
      %4937 = vmatprep.subr.mxu0 %v4561
      %4938 = vmatpush2.xpose.msra.mxu0 %v4560
      %4939 = vmatprep.subr.mxu0 %v4558
      %4940 = vmatpush2.xpose.msra.mxu0 %v4557
      %4941 = vmatprep.subr.mxu0 %v4555
      %4942 = vmatpush2.xpose.msra.mxu0 %v4554
      %4943 = vmatprep.subr.mxu0 %v4552
      %4944 = vmatpush2.xpose.msra.mxu0 %v4551
      %4945 = vmatprep.subr.mxu0 %v4549
      %4946 = vmatpush2.xpose.msra.mxu0 %v4548
      %4947 = vmatprep.mubr.f32.mxu0 %v1018
      %4948 = vmatmul.mubr.f32.gmra.mxu0 %v1016
      %v4949 = vpop.f32.mrf.mxu0
      %v4950 = vadd.f32 0.0, %v4949
      %v4951 = vpop.f32.mrf.mxu0
      %v4952 = vadd.f32 0.0, %v4951
      %4953 = vdwg.mxu0
      %4954 = vmatprep.subr.mxu0 %v4642
      %4955 = vmatpush1.xpose.msra.mxu0 %v4641
      %4956 = vmatprep.subr.mxu0 %v4639
      %4957 = vmatpush1.xpose.msra.mxu0 %v4638
      %4958 = vmatprep.subr.mxu0 %v4636
      %4959 = vmatpush1.xpose.msra.mxu0 %v4635
      %4960 = vmatprep.subr.mxu0 %v4633
      %4961 = vmatpush1.xpose.msra.mxu0 %v4632
      %4962 = vmatprep.subr.mxu0 %v4630
      %4963 = vmatpush1.xpose.msra.mxu0 %v4629
      %4964 = vmatprep.subr.mxu0 %v4627
      %4965 = vmatpush1.xpose.msra.mxu0 %v4626
      %4966 = vmatprep.subr.mxu0 %v4624
      %4967 = vmatpush1.xpose.msra.mxu0 %v4623
      %4968 = vmatprep.subr.mxu0 %v4621
      %4969 = vmatpush1.xpose.msra.mxu0 %v4620
      %4970 = vmatprep.subr.mxu0 %v4618
      %4971 = vmatpush1.xpose.msra.mxu0 %v4617
      %4972 = vmatprep.subr.mxu0 %v4615
      %4973 = vmatpush1.xpose.msra.mxu0 %v4614
      %4974 = vmatprep.subr.mxu0 %v4612
      %4975 = vmatpush1.xpose.msra.mxu0 %v4611
      %4976 = vmatprep.subr.mxu0 %v4609
      %4977 = vmatpush1.xpose.msra.mxu0 %v4608
      %4978 = vmatprep.subr.mxu0 %v4606
      %4979 = vmatpush1.xpose.msra.mxu0 %v4605
      %4980 = vmatprep.subr.mxu0 %v4603
      %4981 = vmatpush1.xpose.msra.mxu0 %v4602
      %4982 = vmatprep.subr.mxu0 %v4600
      %4983 = vmatpush1.xpose.msra.mxu0 %v4599
      %4984 = vmatprep.subr.mxu0 %v4597
      %4985 = vmatpush1.xpose.msra.mxu0 %v4596
      %4986 = vmatprep.subr.mxu0 %v4690
      %4987 = vmatpush2.xpose.msra.mxu0 %v4689
      %4988 = vmatprep.subr.mxu0 %v4687
      %4989 = vmatpush2.xpose.msra.mxu0 %v4686
      %4990 = vmatprep.subr.mxu0 %v4684
      %4991 = vmatpush2.xpose.msra.mxu0 %v4683
      %4992 = vmatprep.subr.mxu0 %v4681
      %4993 = vmatpush2.xpose.msra.mxu0 %v4680
      %4994 = vmatprep.subr.mxu0 %v4678
      %4995 = vmatpush2.xpose.msra.mxu0 %v4677
      %4996 = vmatprep.subr.mxu0 %v4675
      %4997 = vmatpush2.xpose.msra.mxu0 %v4674
      %4998 = vmatprep.subr.mxu0 %v4672
      %4999 = vmatpush2.xpose.msra.mxu0 %v4671
      %5000 = vmatprep.subr.mxu0 %v4669
      %5001 = vmatpush2.xpose.msra.mxu0 %v4668
      %5002 = vmatprep.subr.mxu0 %v4666
      %5003 = vmatpush2.xpose.msra.mxu0 %v4665
      %5004 = vmatprep.subr.mxu0 %v4663
      %5005 = vmatpush2.xpose.msra.mxu0 %v4662
      %5006 = vmatprep.subr.mxu0 %v4660
      %5007 = vmatpush2.xpose.msra.mxu0 %v4659
      %5008 = vmatprep.subr.mxu0 %v4657
      %5009 = vmatpush2.xpose.msra.mxu0 %v4656
      %5010 = vmatprep.subr.mxu0 %v4654
      %5011 = vmatpush2.xpose.msra.mxu0 %v4653
      %5012 = vmatprep.subr.mxu0 %v4651
      %5013 = vmatpush2.xpose.msra.mxu0 %v4650
      %5014 = vmatprep.subr.mxu0 %v4648
      %5015 = vmatpush2.xpose.msra.mxu0 %v4647
      %5016 = vmatprep.subr.mxu0 %v4645
      %5017 = vmatpush2.xpose.msra.mxu0 %v4644
      %5018 = vmatprep.mubr.f32.mxu0 %v1024
      %5019 = vmatmul.mubr.f32.gmra.mxu0 %v1022
      %v5020 = vpop.f32.mrf.mxu0
      %v5021 = vadd.f32 0.0, %v5020
      %v5022 = vpop.f32.mrf.mxu0
      %v5023 = vadd.f32 0.0, %v5022
      %5024 = vdwg.mxu0
      %5025 = vmatprep.subr.mxu0 %v4738
      %5026 = vmatpush1.xpose.msra.mxu0 %v4737
      %5027 = vmatprep.subr.mxu0 %v4735
      %5028 = vmatpush1.xpose.msra.mxu0 %v4734
      %5029 = vmatprep.subr.mxu0 %v4732
      %5030 = vmatpush1.xpose.msra.mxu0 %v4731
      %5031 = vmatprep.subr.mxu0 %v4729
      %5032 = vmatpush1.xpose.msra.mxu0 %v4728
      %5033 = vmatprep.subr.mxu0 %v4726
      %5034 = vmatpush1.xpose.msra.mxu0 %v4725
      %5035 = vmatprep.subr.mxu0 %v4723
      %5036 = vmatpush1.xpose.msra.mxu0 %v4722
      %5037 = vmatprep.subr.mxu0 %v4720
      %5038 = vmatpush1.xpose.msra.mxu0 %v4719
      %5039 = vmatprep.subr.mxu0 %v4717
      %5040 = vmatpush1.xpose.msra.mxu0 %v4716
      %5041 = vmatprep.subr.mxu0 %v4714
      %5042 = vmatpush1.xpose.msra.mxu0 %v4713
      %5043 = vmatprep.subr.mxu0 %v4711
      %5044 = vmatpush1.xpose.msra.mxu0 %v4710
      %5045 = vmatprep.subr.mxu0 %v4708
      %5046 = vmatpush1.xpose.msra.mxu0 %v4707
      %5047 = vmatprep.subr.mxu0 %v4705
      %5048 = vmatpush1.xpose.msra.mxu0 %v4704
      %5049 = vmatprep.subr.mxu0 %v4702
      %5050 = vmatpush1.xpose.msra.mxu0 %v4701
      %5051 = vmatprep.subr.mxu0 %v4699
      %5052 = vmatpush1.xpose.msra.mxu0 %v4698
      %5053 = vmatprep.subr.mxu0 %v4696
      %5054 = vmatpush1.xpose.msra.mxu0 %v4695
      %5055 = vmatprep.subr.mxu0 %v4693
      %5056 = vmatpush1.xpose.msra.mxu0 %v4692
      %5057 = vmatprep.subr.mxu0 %v4786
      %5058 = vmatpush2.xpose.msra.mxu0 %v4785
      %5059 = vmatprep.subr.mxu0 %v4783
      %5060 = vmatpush2.xpose.msra.mxu0 %v4782
      %5061 = vmatprep.subr.mxu0 %v4780
      %5062 = vmatpush2.xpose.msra.mxu0 %v4779
      %5063 = vmatprep.subr.mxu0 %v4777
      %5064 = vmatpush2.xpose.msra.mxu0 %v4776
      %5065 = vmatprep.subr.mxu0 %v4774
      %5066 = vmatpush2.xpose.msra.mxu0 %v4773
      %5067 = vmatprep.subr.mxu0 %v4771
      %5068 = vmatpush2.xpose.msra.mxu0 %v4770
      %5069 = vmatprep.subr.mxu0 %v4768
      %5070 = vmatpush2.xpose.msra.mxu0 %v4767
      %5071 = vmatprep.subr.mxu0 %v4765
      %5072 = vmatpush2.xpose.msra.mxu0 %v4764
      %5073 = vmatprep.subr.mxu0 %v4762
      %5074 = vmatpush2.xpose.msra.mxu0 %v4761
      %5075 = vmatprep.subr.mxu0 %v4759
      %5076 = vmatpush2.xpose.msra.mxu0 %v4758
      %5077 = vmatprep.subr.mxu0 %v4756
      %5078 = vmatpush2.xpose.msra.mxu0 %v4755
      %5079 = vmatprep.subr.mxu0 %v4753
      %5080 = vmatpush2.xpose.msra.mxu0 %v4752
      %5081 = vmatprep.subr.mxu0 %v4750
      %5082 = vmatpush2.xpose.msra.mxu0 %v4749
      %5083 = vmatprep.subr.mxu0 %v4747
      %5084 = vmatpush2.xpose.msra.mxu0 %v4746
      %5085 = vmatprep.subr.mxu0 %v4744
      %5086 = vmatpush2.xpose.msra.mxu0 %v4743
      %5087 = vmatprep.subr.mxu0 %v4741
      %5088 = vmatpush2.xpose.msra.mxu0 %v4740
      %5089 = vmatprep.mubr.f32.mxu0 %v1030
      %5090 = vmatmul.mubr.f32.gmra.mxu0 %v1028
      %v5091 = vpop.f32.mrf.mxu0
      %v5092 = vadd.f32 0.0, %v5091
      %v5093 = vpop.f32.mrf.mxu0
      %v5094 = vadd.f32 0.0, %v5093
      %5095 = vdwg.mxu0
      %5096 = vmatprep.subr.mxu0 %v4834
      %5097 = vmatpush1.xpose.msra.mxu0 %v4833
      %5098 = vmatprep.subr.mxu0 %v4831
      %5099 = vmatpush1.xpose.msra.mxu0 %v4830
      %5100 = vmatprep.subr.mxu0 %v4828
      %5101 = vmatpush1.xpose.msra.mxu0 %v4827
      %5102 = vmatprep.subr.mxu0 %v4825
      %5103 = vmatpush1.xpose.msra.mxu0 %v4824
      %5104 = vmatprep.subr.mxu0 %v4822
      %5105 = vmatpush1.xpose.msra.mxu0 %v4821
      %5106 = vmatprep.subr.mxu0 %v4819
      %5107 = vmatpush1.xpose.msra.mxu0 %v4818
      %5108 = vmatprep.subr.mxu0 %v4816
      %5109 = vmatpush1.xpose.msra.mxu0 %v4815
      %5110 = vmatprep.subr.mxu0 %v4813
      %5111 = vmatpush1.xpose.msra.mxu0 %v4812
      %5112 = vmatprep.subr.mxu0 %v4810
      %5113 = vmatpush1.xpose.msra.mxu0 %v4809
      %5114 = vmatprep.subr.mxu0 %v4807
      %5115 = vmatpush1.xpose.msra.mxu0 %v4806
      %5116 = vmatprep.subr.mxu0 %v4804
      %5117 = vmatpush1.xpose.msra.mxu0 %v4803
      %5118 = vmatprep.subr.mxu0 %v4801
      %5119 = vmatpush1.xpose.msra.mxu0 %v4800
      %5120 = vmatprep.subr.mxu0 %v4798
      %5121 = vmatpush1.xpose.msra.mxu0 %v4797
      %5122 = vmatprep.subr.mxu0 %v4795
      %5123 = vmatpush1.xpose.msra.mxu0 %v4794
      %5124 = vmatprep.subr.mxu0 %v4792
      %5125 = vmatpush1.xpose.msra.mxu0 %v4791
      %5126 = vmatprep.subr.mxu0 %v4789
      %5127 = vmatpush1.xpose.msra.mxu0 %v4788
      %5128 = vmatprep.subr.mxu0 %v4882
      %5129 = vmatpush2.xpose.msra.mxu0 %v4881
      %5130 = vmatprep.subr.mxu0 %v4879
      %5131 = vmatpush2.xpose.msra.mxu0 %v4878
      %5132 = vmatprep.subr.mxu0 %v4876
      %5133 = vmatpush2.xpose.msra.mxu0 %v4875
      %5134 = vmatprep.subr.mxu0 %v4873
      %5135 = vmatpush2.xpose.msra.mxu0 %v4872
      %5136 = vmatprep.subr.mxu0 %v4870
      %5137 = vmatpush2.xpose.msra.mxu0 %v4869
      %5138 = vmatprep.subr.mxu0 %v4867
      %5139 = vmatpush2.xpose.msra.mxu0 %v4866
      %5140 = vmatprep.subr.mxu0 %v4864
      %5141 = vmatpush2.xpose.msra.mxu0 %v4863
      %5142 = vmatprep.subr.mxu0 %v4861
      %5143 = vmatpush2.xpose.msra.mxu0 %v4860
      %5144 = vmatprep.subr.mxu0 %v4858
      %5145 = vmatpush2.xpose.msra.mxu0 %v4857
      %5146 = vmatprep.subr.mxu0 %v4855
      %5147 = vmatpush2.xpose.msra.mxu0 %v4854
      %5148 = vmatprep.subr.mxu0 %v4852
      %5149 = vmatpush2.xpose.msra.mxu0 %v4851
      %5150 = vmatprep.subr.mxu0 %v4849
      %5151 = vmatpush2.xpose.msra.mxu0 %v4848
      %5152 = vmatprep.subr.mxu0 %v4846
      %5153 = vmatpush2.xpose.msra.mxu0 %v4845
      %5154 = vmatprep.subr.mxu0 %v4843
      %5155 = vmatpush2.xpose.msra.mxu0 %v4842
      %5156 = vmatprep.subr.mxu0 %v4840
      %5157 = vmatpush2.xpose.msra.mxu0 %v4839
      %5158 = vmatprep.subr.mxu0 %v4837
      %5159 = vmatpush2.xpose.msra.mxu0 %v4836
      %5160 = vmatprep.mubr.f32.mxu0 %v1036
      %5161 = vmatmul.mubr.f32.gmra.mxu0 %v1034
      %v5162 = vpop.f32.mrf.mxu0
      %v5163 = vadd.f32 0.0, %v5162
      %v5164 = vpop.f32.mrf.mxu0
      %v5165 = vadd.f32 0.0, %v5164
      %5166 = vdwg.mxu0
      %v5167 = vld [vmem:[%s7] sm:$0xff]
      %v5168 = vld [vmem:[%s7 + $0x8] sm:$0xff]
      %v5169 = vld [vmem:[%s7 + $0x10] sm:$0xff]
      %v5170 = vld [vmem:[%s7 + $0x18] sm:$0xff]
      %v5171 = vld [vmem:[%s8] sm:$0xff]
      %v5172 = vld [vmem:[%s8 + $0x8] sm:$0xff]
      %v5173 = vld [vmem:[%s8 + $0x10] sm:$0xff]
      %v5174 = vld [vmem:[%s8 + $0x18] sm:$0xff]
      %5176 = vset.pattern.permute.xlu0 0
      %5177 = vperm.xlu0 %5176, %v5171
      %v5178 = vpop.permute.xlu0 %5177
      %5181 = vset.pattern.permute.xlu0 0
      %5182 = vperm.xlu0 %5181, %v5172
      %v5183 = vpop.permute.xlu0 %5182
      %5186 = vset.pattern.permute.xlu0 0
      %5187 = vperm.xlu0 %5186, %v5173
      %v5188 = vpop.permute.xlu0 %5187
      %5191 = vset.pattern.permute.xlu0 0
      %5192 = vperm.xlu0 %5191, %v5174
      %v5193 = vpop.permute.xlu0 %5192
      %v5196 = vsel %vm864, %v5167, 0
      %v5199 = vsel %vm864, %v5168, 0
      %v5202 = vsel %vm864, %v5169, 0
      %v5205 = vsel %vm864, %v5170, 0
      %5207 = vmatprep.subr.mxu0 0.0
      %5208 = vmatpush1.msra.mxu0 0.0
      %5209 = vmatprep.subr.mxu0 0.0
      %5210 = vmatpush1.msra.mxu0 0.0
      %5211 = vmatprep.subr.mxu0 0.0
      %5212 = vmatpush1.msra.mxu0 0.0
      %5213 = vmatprep.subr.mxu0 0.0
      %5214 = vmatpush1.msra.mxu0 0.0
      %5215 = vmatprep.subr.mxu0 0.0
      %5216 = vmatpush1.msra.mxu0 0.0
      %5217 = vmatprep.subr.mxu0 0.0
      %5218 = vmatpush1.msra.mxu0 0.0
      %5219 = vmatprep.subr.mxu0 0.0
      %5220 = vmatpush1.msra.mxu0 0.0
      %5221 = vmatprep.subr.mxu0 0.0
      %5222 = vmatpush1.msra.mxu0 0.0
      %5223 = vmatprep.subr.mxu0 0.0
      %5224 = vmatpush1.msra.mxu0 0.0
      %5225 = vmatprep.subr.mxu0 0.0
      %5226 = vmatpush1.msra.mxu0 0.0
      %5227 = vmatprep.subr.mxu0 0.0
      %5228 = vmatpush1.msra.mxu0 0.0
      %5229 = vmatprep.subr.mxu0 0.0
      %5230 = vmatpush1.msra.mxu0 0.0
      %5231 = vmatprep.subr.mxu0 %v5165
      %5232 = vmatpush1.msra.mxu0 %v5163
      %5233 = vmatprep.subr.mxu0 %v5094
      %5234 = vmatpush1.msra.mxu0 %v5092
      %5235 = vmatprep.subr.mxu0 %v5023
      %5236 = vmatpush1.msra.mxu0 %v5021
      %5237 = vmatprep.subr.mxu0 %v4952
      %5238 = vmatpush1.msra.mxu0 %v4950
      %5239 = vmatprep.subr.mxu0 0.0
      %5240 = vmatpush2.msra.mxu0 0.0
      %5241 = vmatprep.subr.mxu0 0.0
      %5242 = vmatpush2.msra.mxu0 0.0
      %5243 = vmatprep.subr.mxu0 0.0
      %5244 = vmatpush2.msra.mxu0 0.0
      %5245 = vmatprep.subr.mxu0 0.0
      %5246 = vmatpush2.msra.mxu0 0.0
      %5247 = vmatprep.subr.mxu0 0.0
      %5248 = vmatpush2.msra.mxu0 0.0
      %5249 = vmatprep.subr.mxu0 0.0
      %5250 = vmatpush2.msra.mxu0 0.0
      %5251 = vmatprep.subr.mxu0 0.0
      %5252 = vmatpush2.msra.mxu0 0.0
      %5253 = vmatprep.subr.mxu0 0.0
      %5254 = vmatpush2.msra.mxu0 0.0
      %5255 = vmatprep.subr.mxu0 0.0
      %5256 = vmatpush2.msra.mxu0 0.0
      %5257 = vmatprep.subr.mxu0 0.0
      %5258 = vmatpush2.msra.mxu0 0.0
      %5259 = vmatprep.subr.mxu0 0.0
      %5260 = vmatpush2.msra.mxu0 0.0
      %5261 = vmatprep.subr.mxu0 0.0
      %5262 = vmatpush2.msra.mxu0 0.0
      %5263 = vmatprep.subr.mxu0 0.0
      %5264 = vmatpush2.msra.mxu0 0.0
      %5265 = vmatprep.subr.mxu0 0.0
      %5266 = vmatpush2.msra.mxu0 0.0
      %5267 = vmatprep.subr.mxu0 0.0
      %5268 = vmatpush2.msra.mxu0 0.0
      %5269 = vmatprep.subr.mxu0 0.0
      %5270 = vmatpush2.msra.mxu0 0.0
      %5271 = vmatprep.mubr.f32.mxu0 0.0
      %5272 = vmatmul.mubr.f32.gmra.mxu0 %v5196
      %v5273 = vpop.f32.mrf.mxu0
      %v5274 = vadd.f32 %v5178, %v5273
      %v5275 = vpop.f32.mrf.mxu0
      %v5276 = vadd.f32 %v5178, %v5275
      %5277 = vmatprep.mubr.f32.mxu0 0.0
      %5278 = vmatmul.mubr.f32.gmra.mxu0 %v5199
      %v5279 = vpop.f32.mrf.mxu0
      %v5280 = vadd.f32 %v5183, %v5279
      %v5281 = vpop.f32.mrf.mxu0
      %v5282 = vadd.f32 %v5183, %v5281
      %5283 = vmatprep.mubr.f32.mxu0 0.0
      %5284 = vmatmul.mubr.f32.gmra.mxu0 %v5202
      %v5285 = vpop.f32.mrf.mxu0
      %v5286 = vadd.f32 %v5188, %v5285
      %v5287 = vpop.f32.mrf.mxu0
      %v5288 = vadd.f32 %v5188, %v5287
      %5289 = vmatprep.mubr.f32.mxu0 0.0
      %5290 = vmatmul.mubr.f32.gmra.mxu0 %v5205
      %v5291 = vpop.f32.mrf.mxu0
      %v5292 = vadd.f32 %v5193, %v5291
      %v5293 = vpop.f32.mrf.mxu0
      %v5294 = vadd.f32 %v5193, %v5293
      %5295 = vdwg.mxu0
      %v5296 = vadd.f32 %v639, %v5274
      %v5297 = vadd.f32 %v640, %v5276
      %v5298 = vadd.f32 %v641, %v5280
      %v5299 = vadd.f32 %v642, %v5282
      %v5300 = vadd.f32 %v643, %v5286
      %v5301 = vadd.f32 %v644, %v5288
      %v5302 = vadd.f32 %v645, %v5292
      %v5303 = vadd.f32 %v646, %v5294
      %v5304 = vadd.f32 %v5296, %v5298
      %v5305 = vadd.f32 %v5304, %v5300
      %v5306 = vadd.f32 %v5305, %v5302
      %v5307 = vrot.slane %v5306, 4
      %v5308 = vadd.f32 %v5306, %v5307
      %v5309 = vrot.slane %v5308, 2
      %v5310 = vadd.f32 %v5308, %v5309
      %v5311 = vrot.slane %v5310, 1
      %v5312 = vadd.f32 %v5310, %v5311
      %v5313 = vadd.f32 %v5297, %v5299
      %v5314 = vadd.f32 %v5313, %v5301
      %v5315 = vadd.f32 %v5314, %v5303
      %v5316 = vrot.slane %v5315, 4
      %v5317 = vadd.f32 %v5315, %v5316
      %v5318 = vrot.slane %v5317, 2
      %v5319 = vadd.f32 %v5317, %v5318
      %v5320 = vrot.slane %v5319, 1
      %v5321 = vadd.f32 %v5319, %v5320
      %v5322 = vmul.f32 %v5312, %v665
      %v5323 = vmul.f32 %v5321, %v665
      %v5324 = vsub.f32 %v5296, %v5322
      %v5325 = vsub.f32 %v5297, %v5323
      %v5326 = vsub.f32 %v5298, %v5322
      %v5327 = vsub.f32 %v5299, %v5323
      %v5328 = vsub.f32 %v5300, %v5322
      %v5329 = vsub.f32 %v5301, %v5323
      %v5330 = vsub.f32 %v5302, %v5322
      %v5331 = vsub.f32 %v5303, %v5323
      %v5332 = vmul.f32 %v5324, %v5324
      %v5333 = vmul.f32 %v5325, %v5325
      %v5334 = vmul.f32 %v5326, %v5326
      %v5335 = vmul.f32 %v5327, %v5327
      %v5336 = vmul.f32 %v5328, %v5328
      %v5337 = vmul.f32 %v5329, %v5329
      %v5338 = vmul.f32 %v5330, %v5330
      %v5339 = vmul.f32 %v5331, %v5331
      %v5340 = vadd.f32 %v5332, %v5334
      %v5341 = vadd.f32 %v5340, %v5336
      %v5342 = vadd.f32 %v5341, %v5338
      %v5343 = vrot.slane %v5342, 4
      %v5344 = vadd.f32 %v5342, %v5343
      %v5345 = vrot.slane %v5344, 2
      %v5346 = vadd.f32 %v5344, %v5345
      %v5347 = vrot.slane %v5346, 1
      %v5348 = vadd.f32 %v5346, %v5347
      %v5349 = vadd.f32 %v5333, %v5335
      %v5350 = vadd.f32 %v5349, %v5337
      %v5351 = vadd.f32 %v5350, %v5339
      %v5352 = vrot.slane %v5351, 4
      %v5353 = vadd.f32 %v5351, %v5352
      %v5354 = vrot.slane %v5353, 2
      %v5355 = vadd.f32 %v5353, %v5354
      %v5356 = vrot.slane %v5355, 1
      %v5357 = vadd.f32 %v5355, %v5356
      %v5358 = vmul.f32 %v5348, %v665
      %v5359 = vmul.f32 %v5357, %v665
      %v5360 = vadd.f32 %v5358, 1e-05
      %v5361 = vadd.f32 %v5359, 1e-05
      %v5362 = vrsqrt.pop %v5360
      %v5363 = vrsqrt.pop %v5361
      %v5364 = vmul.f32 %v5324, %v5362
      %v5365 = vmul.f32 %v5325, %v5363
      %v5366 = vmul.f32 %v5326, %v5362
      %v5367 = vmul.f32 %v5327, %v5363
      %v5368 = vmul.f32 %v5328, %v5362
      %v5369 = vmul.f32 %v5329, %v5363
      %v5370 = vmul.f32 %v5330, %v5362
      %v5371 = vmul.f32 %v5331, %v5363
      %v5372 = vld [vmem:[%s9] sm:$0xff]
      %v5373 = vld [vmem:[%s9 + $0x8] sm:$0xff]
      %v5374 = vld [vmem:[%s9 + $0x10] sm:$0xff]
      %v5375 = vld [vmem:[%s9 + $0x18] sm:$0xff]
      %5377 = vset.pattern.permute.xlu0 0
      %5378 = vperm.xlu0 %5377, %v5372
      %v5379 = vpop.permute.xlu0 %5378
      %5382 = vset.pattern.permute.xlu0 0
      %5383 = vperm.xlu0 %5382, %v5373
      %v5384 = vpop.permute.xlu0 %5383
      %5387 = vset.pattern.permute.xlu0 0
      %5388 = vperm.xlu0 %5387, %v5374
      %v5389 = vpop.permute.xlu0 %5388
      %5392 = vset.pattern.permute.xlu0 0
      %5393 = vperm.xlu0 %5392, %v5375
      %v5394 = vpop.permute.xlu0 %5393
      %v5396 = vmul.f32 %v5364, %v5379
      %v5397 = vmul.f32 %v5365, %v5379
      %v5398 = vmul.f32 %v5366, %v5384
      %v5399 = vmul.f32 %v5367, %v5384
      %v5400 = vmul.f32 %v5368, %v5389
      %v5401 = vmul.f32 %v5369, %v5389
      %v5402 = vmul.f32 %v5370, %v5394
      %v5403 = vmul.f32 %v5371, %v5394
      %v5404 = vld [vmem:[%s10] sm:$0xff]
      %v5405 = vld [vmem:[%s10 + $0x8] sm:$0xff]
      %v5406 = vld [vmem:[%s10 + $0x10] sm:$0xff]
      %v5407 = vld [vmem:[%s10 + $0x18] sm:$0xff]
      %5409 = vset.pattern.permute.xlu0 0
      %5410 = vperm.xlu0 %5409, %v5404
      %v5411 = vpop.permute.xlu0 %5410
      %5414 = vset.pattern.permute.xlu0 0
      %5415 = vperm.xlu0 %5414, %v5405
      %v5416 = vpop.permute.xlu0 %5415
      %5419 = vset.pattern.permute.xlu0 0
      %5420 = vperm.xlu0 %5419, %v5406
      %v5421 = vpop.permute.xlu0 %5420
      %5424 = vset.pattern.permute.xlu0 0
      %5425 = vperm.xlu0 %5424, %v5407
      %v5426 = vpop.permute.xlu0 %5425
      %v5428 = vadd.f32 %v5396, %v5411
      %v5429 = vadd.f32 %v5397, %v5411
      %v5430 = vadd.f32 %v5398, %v5416
      %v5431 = vadd.f32 %v5399, %v5416
      %v5432 = vadd.f32 %v5400, %v5421
      %v5433 = vadd.f32 %v5401, %v5421
      %v5434 = vadd.f32 %v5402, %v5426
      %v5435 = vadd.f32 %v5403, %v5426
      %v5436 = vld [vmem:[%s11] sm:$0xff]
      %v5437 = vld [vmem:[%s11 + $0x8] sm:$0xff]
      %v5438 = vld [vmem:[%s11 + $0x10] sm:$0xff]
      %v5439 = vld [vmem:[%s11 + $0x18] sm:$0xff]
      %v5440 = vld [vmem:[%s11 + $0x20] sm:$0xff]
      %v5441 = vld [vmem:[%s11 + $0x28] sm:$0xff]
      %v5442 = vld [vmem:[%s11 + $0x30] sm:$0xff]
      %v5443 = vld [vmem:[%s11 + $0x38] sm:$0xff]
      %v5444 = vld [vmem:[%s11 + $0x40] sm:$0xff]
      %v5445 = vld [vmem:[%s11 + $0x48] sm:$0xff]
      %v5446 = vld [vmem:[%s11 + $0x50] sm:$0xff]
      %v5447 = vld [vmem:[%s11 + $0x58] sm:$0xff]
      %v5448 = vld [vmem:[%s11 + $0x60] sm:$0xff]
      %v5449 = vld [vmem:[%s11 + $0x68] sm:$0xff]
      %v5450 = vld [vmem:[%s11 + $0x70] sm:$0xff]
      %v5451 = vld [vmem:[%s11 + $0x78] sm:$0xff]
      %v5452 = vld [vmem:[%s12] sm:$0xff]
      %v5453 = vld [vmem:[%s12 + $0x8] sm:$0xff]
      %v5454 = vld [vmem:[%s12 + $0x10] sm:$0xff]
      %v5455 = vld [vmem:[%s12 + $0x18] sm:$0xff]
      %v5456 = vld [vmem:[%s12 + $0x20] sm:$0xff]
      %v5457 = vld [vmem:[%s12 + $0x28] sm:$0xff]
      %v5458 = vld [vmem:[%s12 + $0x30] sm:$0xff]
      %v5459 = vld [vmem:[%s12 + $0x38] sm:$0xff]
      %v5460 = vld [vmem:[%s12 + $0x40] sm:$0xff]
      %v5461 = vld [vmem:[%s12 + $0x48] sm:$0xff]
      %v5462 = vld [vmem:[%s12 + $0x50] sm:$0xff]
      %v5463 = vld [vmem:[%s12 + $0x58] sm:$0xff]
      %v5464 = vld [vmem:[%s12 + $0x60] sm:$0xff]
      %v5465 = vld [vmem:[%s12 + $0x68] sm:$0xff]
      %v5466 = vld [vmem:[%s12 + $0x70] sm:$0xff]
      %v5467 = vld [vmem:[%s12 + $0x78] sm:$0xff]
      %5469 = vset.pattern.permute.xlu0 0
      %5470 = vperm.xlu0 %5469, %v5452
      %v5471 = vpop.permute.xlu0 %5470
      %5474 = vset.pattern.permute.xlu0 0
      %5475 = vperm.xlu0 %5474, %v5453
      %v5476 = vpop.permute.xlu0 %5475
      %5479 = vset.pattern.permute.xlu0 0
      %5480 = vperm.xlu0 %5479, %v5454
      %v5481 = vpop.permute.xlu0 %5480
      %5484 = vset.pattern.permute.xlu0 0
      %5485 = vperm.xlu0 %5484, %v5455
      %v5486 = vpop.permute.xlu0 %5485
      %5489 = vset.pattern.permute.xlu0 0
      %5490 = vperm.xlu0 %5489, %v5456
      %v5491 = vpop.permute.xlu0 %5490
      %5494 = vset.pattern.permute.xlu0 0
      %5495 = vperm.xlu0 %5494, %v5457
      %v5496 = vpop.permute.xlu0 %5495
      %5499 = vset.pattern.permute.xlu0 0
      %5500 = vperm.xlu0 %5499, %v5458
      %v5501 = vpop.permute.xlu0 %5500
      %5504 = vset.pattern.permute.xlu0 0
      %5505 = vperm.xlu0 %5504, %v5459
      %v5506 = vpop.permute.xlu0 %5505
      %5509 = vset.pattern.permute.xlu0 0
      %5510 = vperm.xlu0 %5509, %v5460
      %v5511 = vpop.permute.xlu0 %5510
      %5514 = vset.pattern.permute.xlu0 0
      %5515 = vperm.xlu0 %5514, %v5461
      %v5516 = vpop.permute.xlu0 %5515
      %5519 = vset.pattern.permute.xlu0 0
      %5520 = vperm.xlu0 %5519, %v5462
      %v5521 = vpop.permute.xlu0 %5520
      %5524 = vset.pattern.permute.xlu0 0
      %5525 = vperm.xlu0 %5524, %v5463
      %v5526 = vpop.permute.xlu0 %5525
      %5529 = vset.pattern.permute.xlu0 0
      %5530 = vperm.xlu0 %5529, %v5464
      %v5531 = vpop.permute.xlu0 %5530
      %5534 = vset.pattern.permute.xlu0 0
      %5535 = vperm.xlu0 %5534, %v5465
      %v5536 = vpop.permute.xlu0 %5535
      %5539 = vset.pattern.permute.xlu0 0
      %5540 = vperm.xlu0 %5539, %v5466
      %v5541 = vpop.permute.xlu0 %5540
      %5544 = vset.pattern.permute.xlu0 0
      %5545 = vperm.xlu0 %5544, %v5467
      %v5546 = vpop.permute.xlu0 %5545
      %v5549 = vsel %vm864, %v5436, 0
      %v5552 = vsel %vm864, %v5437, 0
      %v5555 = vsel %vm864, %v5438, 0
      %v5558 = vsel %vm864, %v5439, 0
      %v5561 = vsel %vm864, %v5440, 0
      %v5564 = vsel %vm864, %v5441, 0
      %v5567 = vsel %vm864, %v5442, 0
      %v5570 = vsel %vm864, %v5443, 0
      %v5573 = vsel %vm864, %v5444, 0
      %v5576 = vsel %vm864, %v5445, 0
      %v5579 = vsel %vm864, %v5446, 0
      %v5582 = vsel %vm864, %v5447, 0
      %v5585 = vsel %vm864, %v5448, 0
      %v5588 = vsel %vm864, %v5449, 0
      %v5591 = vsel %vm864, %v5450, 0
      %v5594 = vsel %vm864, %v5451, 0
      %5596 = vmatprep.subr.mxu0 0.0
      %5597 = vmatpush1.msra.mxu0 0.0
      %5598 = vmatprep.subr.mxu0 0.0
      %5599 = vmatpush1.msra.mxu0 0.0
      %5600 = vmatprep.subr.mxu0 0.0
      %5601 = vmatpush1.msra.mxu0 0.0
      %5602 = vmatprep.subr.mxu0 0.0
      %5603 = vmatpush1.msra.mxu0 0.0
      %5604 = vmatprep.subr.mxu0 0.0
      %5605 = vmatpush1.msra.mxu0 0.0
      %5606 = vmatprep.subr.mxu0 0.0
      %5607 = vmatpush1.msra.mxu0 0.0
      %5608 = vmatprep.subr.mxu0 0.0
      %5609 = vmatpush1.msra.mxu0 0.0
      %5610 = vmatprep.subr.mxu0 0.0
      %5611 = vmatpush1.msra.mxu0 0.0
      %5612 = vmatprep.subr.mxu0 0.0
      %5613 = vmatpush1.msra.mxu0 0.0
      %5614 = vmatprep.subr.mxu0 0.0
      %5615 = vmatpush1.msra.mxu0 0.0
      %5616 = vmatprep.subr.mxu0 0.0
      %5617 = vmatpush1.msra.mxu0 0.0
      %5618 = vmatprep.subr.mxu0 0.0
      %5619 = vmatpush1.msra.mxu0 0.0
      %5620 = vmatprep.subr.mxu0 %v5435
      %5621 = vmatpush1.msra.mxu0 %v5434
      %5622 = vmatprep.subr.mxu0 %v5433
      %5623 = vmatpush1.msra.mxu0 %v5432
      %5624 = vmatprep.subr.mxu0 %v5431
      %5625 = vmatpush1.msra.mxu0 %v5430
      %5626 = vmatprep.subr.mxu0 %v5429
      %5627 = vmatpush1.msra.mxu0 %v5428
      %5628 = vmatprep.subr.mxu0 0.0
      %5629 = vmatpush2.msra.mxu0 0.0
      %5630 = vmatprep.subr.mxu0 0.0
      %5631 = vmatpush2.msra.mxu0 0.0
      %5632 = vmatprep.subr.mxu0 0.0
      %5633 = vmatpush2.msra.mxu0 0.0
      %5634 = vmatprep.subr.mxu0 0.0
      %5635 = vmatpush2.msra.mxu0 0.0
      %5636 = vmatprep.subr.mxu0 0.0
      %5637 = vmatpush2.msra.mxu0 0.0
      %5638 = vmatprep.subr.mxu0 0.0
      %5639 = vmatpush2.msra.mxu0 0.0
      %5640 = vmatprep.subr.mxu0 0.0
      %5641 = vmatpush2.msra.mxu0 0.0
      %5642 = vmatprep.subr.mxu0 0.0
      %5643 = vmatpush2.msra.mxu0 0.0
      %5644 = vmatprep.subr.mxu0 0.0
      %5645 = vmatpush2.msra.mxu0 0.0
      %5646 = vmatprep.subr.mxu0 0.0
      %5647 = vmatpush2.msra.mxu0 0.0
      %5648 = vmatprep.subr.mxu0 0.0
      %5649 = vmatpush2.msra.mxu0 0.0
      %5650 = vmatprep.subr.mxu0 0.0
      %5651 = vmatpush2.msra.mxu0 0.0
      %5652 = vmatprep.subr.mxu0 0.0
      %5653 = vmatpush2.msra.mxu0 0.0
      %5654 = vmatprep.subr.mxu0 0.0
      %5655 = vmatpush2.msra.mxu0 0.0
      %5656 = vmatprep.subr.mxu0 0.0
      %5657 = vmatpush2.msra.mxu0 0.0
      %5658 = vmatprep.subr.mxu0 0.0
      %5659 = vmatpush2.msra.mxu0 0.0
      %5660 = vmatprep.mubr.f32.mxu0 0.0
      %5661 = vmatmul.mubr.f32.gmra.mxu0 %v5549
      %v5662 = vpop.f32.mrf.mxu0
      %v5663 = vadd.f32 %v5471, %v5662
      %v5664 = vpop.f32.mrf.mxu0
      %v5665 = vadd.f32 %v5471, %v5664
      %5666 = vmatprep.mubr.f32.mxu0 0.0
      %5667 = vmatmul.mubr.f32.gmra.mxu0 %v5552
      %v5668 = vpop.f32.mrf.mxu0
      %v5669 = vadd.f32 %v5476, %v5668
      %v5670 = vpop.f32.mrf.mxu0
      %v5671 = vadd.f32 %v5476, %v5670
      %5672 = vmatprep.mubr.f32.mxu0 0.0
      %5673 = vmatmul.mubr.f32.gmra.mxu0 %v5555
      %v5674 = vpop.f32.mrf.mxu0
      %v5675 = vadd.f32 %v5481, %v5674
      %v5676 = vpop.f32.mrf.mxu0
      %v5677 = vadd.f32 %v5481, %v5676
      %5678 = vmatprep.mubr.f32.mxu0 0.0
      %5679 = vmatmul.mubr.f32.gmra.mxu0 %v5558
      %v5680 = vpop.f32.mrf.mxu0
      %v5681 = vadd.f32 %v5486, %v5680
      %v5682 = vpop.f32.mrf.mxu0
      %v5683 = vadd.f32 %v5486, %v5682
      %5684 = vmatprep.mubr.f32.mxu0 0.0
      %5685 = vmatmul.mubr.f32.gmra.mxu0 %v5561
      %v5686 = vpop.f32.mrf.mxu0
      %v5687 = vadd.f32 %v5491, %v5686
      %v5688 = vpop.f32.mrf.mxu0
      %v5689 = vadd.f32 %v5491, %v5688
      %5690 = vmatprep.mubr.f32.mxu0 0.0
      %5691 = vmatmul.mubr.f32.gmra.mxu0 %v5564
      %v5692 = vpop.f32.mrf.mxu0
      %v5693 = vadd.f32 %v5496, %v5692
      %v5694 = vpop.f32.mrf.mxu0
      %v5695 = vadd.f32 %v5496, %v5694
      %5696 = vmatprep.mubr.f32.mxu0 0.0
      %5697 = vmatmul.mubr.f32.gmra.mxu0 %v5567
      %v5698 = vpop.f32.mrf.mxu0
      %v5699 = vadd.f32 %v5501, %v5698
      %v5700 = vpop.f32.mrf.mxu0
      %v5701 = vadd.f32 %v5501, %v5700
      %5702 = vmatprep.mubr.f32.mxu0 0.0
      %5703 = vmatmul.mubr.f32.gmra.mxu0 %v5570
      %v5704 = vpop.f32.mrf.mxu0
      %v5705 = vadd.f32 %v5506, %v5704
      %v5706 = vpop.f32.mrf.mxu0
      %v5707 = vadd.f32 %v5506, %v5706
      %5708 = vmatprep.mubr.f32.mxu0 0.0
      %5709 = vmatmul.mubr.f32.gmra.mxu0 %v5573
      %v5710 = vpop.f32.mrf.mxu0
      %v5711 = vadd.f32 %v5511, %v5710
      %v5712 = vpop.f32.mrf.mxu0
      %v5713 = vadd.f32 %v5511, %v5712
      %5714 = vmatprep.mubr.f32.mxu0 0.0
      %5715 = vmatmul.mubr.f32.gmra.mxu0 %v5576
      %v5716 = vpop.f32.mrf.mxu0
      %v5717 = vadd.f32 %v5516, %v5716
      %v5718 = vpop.f32.mrf.mxu0
      %v5719 = vadd.f32 %v5516, %v5718
      %5720 = vmatprep.mubr.f32.mxu0 0.0
      %5721 = vmatmul.mubr.f32.gmra.mxu0 %v5579
      %v5722 = vpop.f32.mrf.mxu0
      %v5723 = vadd.f32 %v5521, %v5722
      %v5724 = vpop.f32.mrf.mxu0
      %v5725 = vadd.f32 %v5521, %v5724
      %5726 = vmatprep.mubr.f32.mxu0 0.0
      %5727 = vmatmul.mubr.f32.gmra.mxu0 %v5582
      %v5728 = vpop.f32.mrf.mxu0
      %v5729 = vadd.f32 %v5526, %v5728
      %v5730 = vpop.f32.mrf.mxu0
      %v5731 = vadd.f32 %v5526, %v5730
      %5732 = vmatprep.mubr.f32.mxu0 0.0
      %5733 = vmatmul.mubr.f32.gmra.mxu0 %v5585
      %v5734 = vpop.f32.mrf.mxu0
      %v5735 = vadd.f32 %v5531, %v5734
      %v5736 = vpop.f32.mrf.mxu0
      %v5737 = vadd.f32 %v5531, %v5736
      %5738 = vmatprep.mubr.f32.mxu0 0.0
      %5739 = vmatmul.mubr.f32.gmra.mxu0 %v5588
      %v5740 = vpop.f32.mrf.mxu0
      %v5741 = vadd.f32 %v5536, %v5740
      %v5742 = vpop.f32.mrf.mxu0
      %v5743 = vadd.f32 %v5536, %v5742
      %5744 = vmatprep.mubr.f32.mxu0 0.0
      %5745 = vmatmul.mubr.f32.gmra.mxu0 %v5591
      %v5746 = vpop.f32.mrf.mxu0
      %v5747 = vadd.f32 %v5541, %v5746
      %v5748 = vpop.f32.mrf.mxu0
      %v5749 = vadd.f32 %v5541, %v5748
      %5750 = vmatprep.mubr.f32.mxu0 0.0
      %5751 = vmatmul.mubr.f32.gmra.mxu0 %v5594
      %v5752 = vpop.f32.mrf.mxu0
      %v5753 = vadd.f32 %v5546, %v5752
      %v5754 = vpop.f32.mrf.mxu0
      %v5755 = vadd.f32 %v5546, %v5754
      %5756 = vdwg.mxu0
      %v5757 = vmul.f32 %v5663, %v5663
      %v5758 = vmul.f32 %v5665, %v5665
      %v5759 = vmul.f32 %v5669, %v5669
      %v5760 = vmul.f32 %v5671, %v5671
      %v5761 = vmul.f32 %v5675, %v5675
      %v5762 = vmul.f32 %v5677, %v5677
      %v5763 = vmul.f32 %v5681, %v5681
      %v5764 = vmul.f32 %v5683, %v5683
      %v5765 = vmul.f32 %v5687, %v5687
      %v5766 = vmul.f32 %v5689, %v5689
      %v5767 = vmul.f32 %v5693, %v5693
      %v5768 = vmul.f32 %v5695, %v5695
      %v5769 = vmul.f32 %v5699, %v5699
      %v5770 = vmul.f32 %v5701, %v5701
      %v5771 = vmul.f32 %v5705, %v5705
      %v5772 = vmul.f32 %v5707, %v5707
      %v5773 = vmul.f32 %v5711, %v5711
      %v5774 = vmul.f32 %v5713, %v5713
      %v5775 = vmul.f32 %v5717, %v5717
      %v5776 = vmul.f32 %v5719, %v5719
      %v5777 = vmul.f32 %v5723, %v5723
      %v5778 = vmul.f32 %v5725, %v5725
      %v5779 = vmul.f32 %v5729, %v5729
      %v5780 = vmul.f32 %v5731, %v5731
      %v5781 = vmul.f32 %v5735, %v5735
      %v5782 = vmul.f32 %v5737, %v5737
      %v5783 = vmul.f32 %v5741, %v5741
      %v5784 = vmul.f32 %v5743, %v5743
      %v5785 = vmul.f32 %v5747, %v5747
      %v5786 = vmul.f32 %v5749, %v5749
      %v5787 = vmul.f32 %v5753, %v5753
      %v5788 = vmul.f32 %v5755, %v5755
      %v5789 = vmul.f32 %v5663, %v5757
      %v5790 = vmul.f32 %v5665, %v5758
      %v5791 = vmul.f32 %v5669, %v5759
      %v5792 = vmul.f32 %v5671, %v5760
      %v5793 = vmul.f32 %v5675, %v5761
      %v5794 = vmul.f32 %v5677, %v5762
      %v5795 = vmul.f32 %v5681, %v5763
      %v5796 = vmul.f32 %v5683, %v5764
      %v5797 = vmul.f32 %v5687, %v5765
      %v5798 = vmul.f32 %v5689, %v5766
      %v5799 = vmul.f32 %v5693, %v5767
      %v5800 = vmul.f32 %v5695, %v5768
      %v5801 = vmul.f32 %v5699, %v5769
      %v5802 = vmul.f32 %v5701, %v5770
      %v5803 = vmul.f32 %v5705, %v5771
      %v5804 = vmul.f32 %v5707, %v5772
      %v5805 = vmul.f32 %v5711, %v5773
      %v5806 = vmul.f32 %v5713, %v5774
      %v5807 = vmul.f32 %v5717, %v5775
      %v5808 = vmul.f32 %v5719, %v5776
      %v5809 = vmul.f32 %v5723, %v5777
      %v5810 = vmul.f32 %v5725, %v5778
      %v5811 = vmul.f32 %v5729, %v5779
      %v5812 = vmul.f32 %v5731, %v5780
      %v5813 = vmul.f32 %v5735, %v5781
      %v5814 = vmul.f32 %v5737, %v5782
      %v5815 = vmul.f32 %v5741, %v5783
      %v5816 = vmul.f32 %v5743, %v5784
      %v5817 = vmul.f32 %v5747, %v5785
      %v5818 = vmul.f32 %v5749, %v5786
      %v5819 = vmul.f32 %v5753, %v5787
      %v5820 = vmul.f32 %v5755, %v5788
      %v5821 = vmul.f32 %v5789, 0.044715
      %v5822 = vmul.f32 %v5790, 0.044715
      %v5823 = vmul.f32 %v5791, 0.044715
      %v5824 = vmul.f32 %v5792, 0.044715
      %v5825 = vmul.f32 %v5793, 0.044715
      %v5826 = vmul.f32 %v5794, 0.044715
      %v5827 = vmul.f32 %v5795, 0.044715
      %v5828 = vmul.f32 %v5796, 0.044715
      %v5829 = vmul.f32 %v5797, 0.044715
      %v5830 = vmul.f32 %v5798, 0.044715
      %v5831 = vmul.f32 %v5799, 0.044715
      %v5832 = vmul.f32 %v5800, 0.044715
      %v5833 = vmul.f32 %v5801, 0.044715
      %v5834 = vmul.f32 %v5802, 0.044715
      %v5835 = vmul.f32 %v5803, 0.044715
      %v5836 = vmul.f32 %v5804, 0.044715
      %v5837 = vmul.f32 %v5805, 0.044715
      %v5838 = vmul.f32 %v5806, 0.044715
      %v5839 = vmul.f32 %v5807, 0.044715
      %v5840 = vmul.f32 %v5808, 0.044715
      %v5841 = vmul.f32 %v5809, 0.044715
      %v5842 = vmul.f32 %v5810, 0.044715
      %v5843 = vmul.f32 %v5811, 0.044715
      %v5844 = vmul.f32 %v5812, 0.044715
      %v5845 = vmul.f32 %v5813, 0.044715
      %v5846 = vmul.f32 %v5814, 0.044715
      %v5847 = vmul.f32 %v5815, 0.044715
      %v5848 = vmul.f32 %v5816, 0.044715
      %v5849 = vmul.f32 %v5817, 0.044715
      %v5850 = vmul.f32 %v5818, 0.044715
      %v5851 = vmul.f32 %v5819, 0.044715
      %v5852 = vmul.f32 %v5820, 0.044715
      %v5853 = vadd.f32 %v5663, %v5821
      %v5854 = vadd.f32 %v5665, %v5822
      %v5855 = vadd.f32 %v5669, %v5823
      %v5856 = vadd.f32 %v5671, %v5824
      %v5857 = vadd.f32 %v5675, %v5825
      %v5858 = vadd.f32 %v5677, %v5826
      %v5859 = vadd.f32 %v5681, %v5827
      %v5860 = vadd.f32 %v5683, %v5828
      %v5861 = vadd.f32 %v5687, %v5829
      %v5862 = vadd.f32 %v5689, %v5830
      %v5863 = vadd.f32 %v5693, %v5831
      %v5864 = vadd.f32 %v5695, %v5832
      %v5865 = vadd.f32 %v5699, %v5833
      %v5866 = vadd.f32 %v5701, %v5834
      %v5867 = vadd.f32 %v5705, %v5835
      %v5868 = vadd.f32 %v5707, %v5836
      %v5869 = vadd.f32 %v5711, %v5837
      %v5870 = vadd.f32 %v5713, %v5838
      %v5871 = vadd.f32 %v5717, %v5839
      %v5872 = vadd.f32 %v5719, %v5840
      %v5873 = vadd.f32 %v5723, %v5841
      %v5874 = vadd.f32 %v5725, %v5842
      %v5875 = vadd.f32 %v5729, %v5843
      %v5876 = vadd.f32 %v5731, %v5844
      %v5877 = vadd.f32 %v5735, %v5845
      %v5878 = vadd.f32 %v5737, %v5846
      %v5879 = vadd.f32 %v5741, %v5847
      %v5880 = vadd.f32 %v5743, %v5848
      %v5881 = vadd.f32 %v5747, %v5849
      %v5882 = vadd.f32 %v5749, %v5850
      %v5883 = vadd.f32 %v5753, %v5851
      %v5884 = vadd.f32 %v5755, %v5852
      %v5885 = vmul.f32 %v5853, 0.7978846
      %v5886 = vmul.f32 %v5854, 0.7978846
      %v5887 = vmul.f32 %v5855, 0.7978846
      %v5888 = vmul.f32 %v5856, 0.7978846
      %v5889 = vmul.f32 %v5857, 0.7978846
      %v5890 = vmul.f32 %v5858, 0.7978846
      %v5891 = vmul.f32 %v5859, 0.7978846
      %v5892 = vmul.f32 %v5860, 0.7978846
      %v5893 = vmul.f32 %v5861, 0.7978846
      %v5894 = vmul.f32 %v5862, 0.7978846
      %v5895 = vmul.f32 %v5863, 0.7978846
      %v5896 = vmul.f32 %v5864, 0.7978846
      %v5897 = vmul.f32 %v5865, 0.7978846
      %v5898 = vmul.f32 %v5866, 0.7978846
      %v5899 = vmul.f32 %v5867, 0.7978846
      %v5900 = vmul.f32 %v5868, 0.7978846
      %v5901 = vmul.f32 %v5869, 0.7978846
      %v5902 = vmul.f32 %v5870, 0.7978846
      %v5903 = vmul.f32 %v5871, 0.7978846
      %v5904 = vmul.f32 %v5872, 0.7978846
      %v5905 = vmul.f32 %v5873, 0.7978846
      %v5906 = vmul.f32 %v5874, 0.7978846
      %v5907 = vmul.f32 %v5875, 0.7978846
      %v5908 = vmul.f32 %v5876, 0.7978846
      %v5909 = vmul.f32 %v5877, 0.7978846
      %v5910 = vmul.f32 %v5878, 0.7978846
      %v5911 = vmul.f32 %v5879, 0.7978846
      %v5912 = vmul.f32 %v5880, 0.7978846
      %v5913 = vmul.f32 %v5881, 0.7978846
      %v5914 = vmul.f32 %v5882, 0.7978846
      %v5915 = vmul.f32 %v5883, 0.7978846
      %v5916 = vmul.f32 %v5884, 0.7978846
      %v5917 = vtanh.pop %v5885
      %v5918 = vtanh.pop %v5886
      %v5919 = vtanh.pop %v5887
      %v5920 = vtanh.pop %v5888
      %v5921 = vtanh.pop %v5889
      %v5922 = vtanh.pop %v5890
      %v5923 = vtanh.pop %v5891
      %v5924 = vtanh.pop %v5892
      %v5925 = vtanh.pop %v5893
      %v5926 = vtanh.pop %v5894
      %v5927 = vtanh.pop %v5895
      %v5928 = vtanh.pop %v5896
      %v5929 = vtanh.pop %v5897
      %v5930 = vtanh.pop %v5898
      %v5931 = vtanh.pop %v5899
      %v5932 = vtanh.pop %v5900
      %v5933 = vtanh.pop %v5901
      %v5934 = vtanh.pop %v5902
      %v5935 = vtanh.pop %v5903
      %v5936 = vtanh.pop %v5904
      %v5937 = vtanh.pop %v5905
      %v5938 = vtanh.pop %v5906
      %v5939 = vtanh.pop %v5907
      %v5940 = vtanh.pop %v5908
      %v5941 = vtanh.pop %v5909
      %v5942 = vtanh.pop %v5910
      %v5943 = vtanh.pop %v5911
      %v5944 = vtanh.pop %v5912
      %v5945 = vtanh.pop %v5913
      %v5946 = vtanh.pop %v5914
      %v5947 = vtanh.pop %v5915
      %v5948 = vtanh.pop %v5916
      %v5949 = vadd.f32 %v5917, 1.0
      %v5950 = vadd.f32 %v5918, 1.0
      %v5951 = vadd.f32 %v5919, 1.0
      %v5952 = vadd.f32 %v5920, 1.0
      %v5953 = vadd.f32 %v5921, 1.0
      %v5954 = vadd.f32 %v5922, 1.0
      %v5955 = vadd.f32 %v5923, 1.0
      %v5956 = vadd.f32 %v5924, 1.0
      %v5957 = vadd.f32 %v5925, 1.0
      %v5958 = vadd.f32 %v5926, 1.0
      %v5959 = vadd.f32 %v5927, 1.0
      %v5960 = vadd.f32 %v5928, 1.0
      %v5961 = vadd.f32 %v5929, 1.0
      %v5962 = vadd.f32 %v5930, 1.0
      %v5963 = vadd.f32 %v5931, 1.0
      %v5964 = vadd.f32 %v5932, 1.0
      %v5965 = vadd.f32 %v5933, 1.0
      %v5966 = vadd.f32 %v5934, 1.0
      %v5967 = vadd.f32 %v5935, 1.0
      %v5968 = vadd.f32 %v5936, 1.0
      %v5969 = vadd.f32 %v5937, 1.0
      %v5970 = vadd.f32 %v5938, 1.0
      %v5971 = vadd.f32 %v5939, 1.0
      %v5972 = vadd.f32 %v5940, 1.0
      %v5973 = vadd.f32 %v5941, 1.0
      %v5974 = vadd.f32 %v5942, 1.0
      %v5975 = vadd.f32 %v5943, 1.0
      %v5976 = vadd.f32 %v5944, 1.0
      %v5977 = vadd.f32 %v5945, 1.0
      %v5978 = vadd.f32 %v5946, 1.0
      %v5979 = vadd.f32 %v5947, 1.0
      %v5980 = vadd.f32 %v5948, 1.0
      %v5981 = vmul.f32 %v5949, 0.5
      %v5982 = vmul.f32 %v5950, 0.5
      %v5983 = vmul.f32 %v5951, 0.5
      %v5984 = vmul.f32 %v5952, 0.5
      %v5985 = vmul.f32 %v5953, 0.5
      %v5986 = vmul.f32 %v5954, 0.5
      %v5987 = vmul.f32 %v5955, 0.5
      %v5988 = vmul.f32 %v5956, 0.5
      %v5989 = vmul.f32 %v5957, 0.5
      %v5990 = vmul.f32 %v5958, 0.5
      %v5991 = vmul.f32 %v5959, 0.5
      %v5992 = vmul.f32 %v5960, 0.5
      %v5993 = vmul.f32 %v5961, 0.5
      %v5994 = vmul.f32 %v5962, 0.5
      %v5995 = vmul.f32 %v5963, 0.5
      %v5996 = vmul.f32 %v5964, 0.5
      %v5997 = vmul.f32 %v5965, 0.5
      %v5998 = vmul.f32 %v5966, 0.5
      %v5999 = vmul.f32 %v5967, 0.5
      %v6000 = vmul.f32 %v5968, 0.5
      %v6001 = vmul.f32 %v5969, 0.5
      %v6002 = vmul.f32 %v5970, 0.5
      %v6003 = vmul.f32 %v5971, 0.5
      %v6004 = vmul.f32 %v5972, 0.5
      %v6005 = vmul.f32 %v5973, 0.5
      %v6006 = vmul.f32 %v5974, 0.5
      %v6007 = vmul.f32 %v5975, 0.5
      %v6008 = vmul.f32 %v5976, 0.5
      %v6009 = vmul.f32 %v5977, 0.5
      %v6010 = vmul.f32 %v5978, 0.5
      %v6011 = vmul.f32 %v5979, 0.5
      %v6012 = vmul.f32 %v5980, 0.5
      %v6013 = vmul.f32 %v5663, %v5981
      %v6014 = vmul.f32 %v5665, %v5982
      %v6015 = vmul.f32 %v5669, %v5983
      %v6016 = vmul.f32 %v5671, %v5984
      %v6017 = vmul.f32 %v5675, %v5985
      %v6018 = vmul.f32 %v5677, %v5986
      %v6019 = vmul.f32 %v5681, %v5987
      %v6020 = vmul.f32 %v5683, %v5988
      %v6021 = vmul.f32 %v5687, %v5989
      %v6022 = vmul.f32 %v5689, %v5990
      %v6023 = vmul.f32 %v5693, %v5991
      %v6024 = vmul.f32 %v5695, %v5992
      %v6025 = vmul.f32 %v5699, %v5993
      %v6026 = vmul.f32 %v5701, %v5994
      %v6027 = vmul.f32 %v5705, %v5995
      %v6028 = vmul.f32 %v5707, %v5996
      %v6029 = vmul.f32 %v5711, %v5997
      %v6030 = vmul.f32 %v5713, %v5998
      %v6031 = vmul.f32 %v5717, %v5999
      %v6032 = vmul.f32 %v5719, %v6000
      %v6033 = vmul.f32 %v5723, %v6001
      %v6034 = vmul.f32 %v5725, %v6002
      %v6035 = vmul.f32 %v5729, %v6003
      %v6036 = vmul.f32 %v5731, %v6004
      %v6037 = vmul.f32 %v5735, %v6005
      %v6038 = vmul.f32 %v5737, %v6006
      %v6039 = vmul.f32 %v5741, %v6007
      %v6040 = vmul.f32 %v5743, %v6008
      %v6041 = vmul.f32 %v5747, %v6009
      %v6042 = vmul.f32 %v5749, %v6010
      %v6043 = vmul.f32 %v5753, %v6011
      %v6044 = vmul.f32 %v5755, %v6012
      %v6045 = vld [vmem:[%s13] sm:$0xff]
      %v6046 = vld [vmem:[%s13 + $0x8] sm:$0xff]
      %v6047 = vld [vmem:[%s13 + $0x10] sm:$0xff]
      %v6048 = vld [vmem:[%s13 + $0x18] sm:$0xff]
      %v6049 = vld [vmem:[%s14] sm:$0xff]
      %v6050 = vld [vmem:[%s14 + $0x8] sm:$0xff]
      %v6051 = vld [vmem:[%s14 + $0x10] sm:$0xff]
      %v6052 = vld [vmem:[%s14 + $0x18] sm:$0xff]
      %6054 = vset.pattern.permute.xlu0 0
      %6055 = vperm.xlu0 %6054, %v6049
      %v6056 = vpop.permute.xlu0 %6055
      %6059 = vset.pattern.permute.xlu0 0
      %6060 = vperm.xlu0 %6059, %v6050
      %v6061 = vpop.permute.xlu0 %6060
      %6064 = vset.pattern.permute.xlu0 0
      %6065 = vperm.xlu0 %6064, %v6051
      %v6066 = vpop.permute.xlu0 %6065
      %6069 = vset.pattern.permute.xlu0 0
      %6070 = vperm.xlu0 %6069, %v6052
      %v6071 = vpop.permute.xlu0 %6070
      %6073 = vmatprep.subr.mxu0 %v6044
      %6074 = vmatpush1.msra.mxu0 %v6043
      %6075 = vmatprep.subr.mxu0 %v6042
      %6076 = vmatpush1.msra.mxu0 %v6041
      %6077 = vmatprep.subr.mxu0 %v6040
      %6078 = vmatpush1.msra.mxu0 %v6039
      %6079 = vmatprep.subr.mxu0 %v6038
      %6080 = vmatpush1.msra.mxu0 %v6037
      %6081 = vmatprep.subr.mxu0 %v6036
      %6082 = vmatpush1.msra.mxu0 %v6035
      %6083 = vmatprep.subr.mxu0 %v6034
      %6084 = vmatpush1.msra.mxu0 %v6033
      %6085 = vmatprep.subr.mxu0 %v6032
      %6086 = vmatpush1.msra.mxu0 %v6031
      %6087 = vmatprep.subr.mxu0 %v6030
      %6088 = vmatpush1.msra.mxu0 %v6029
      %6089 = vmatprep.subr.mxu0 %v6028
      %6090 = vmatpush1.msra.mxu0 %v6027
      %6091 = vmatprep.subr.mxu0 %v6026
      %6092 = vmatpush1.msra.mxu0 %v6025
      %6093 = vmatprep.subr.mxu0 %v6024
      %6094 = vmatpush1.msra.mxu0 %v6023
      %6095 = vmatprep.subr.mxu0 %v6022
      %6096 = vmatpush1.msra.mxu0 %v6021
      %6097 = vmatprep.subr.mxu0 %v6020
      %6098 = vmatpush1.msra.mxu0 %v6019
      %6099 = vmatprep.subr.mxu0 %v6018
      %6100 = vmatpush1.msra.mxu0 %v6017
      %6101 = vmatprep.subr.mxu0 %v6016
      %6102 = vmatpush1.msra.mxu0 %v6015
      %6103 = vmatprep.subr.mxu0 %v6014
      %6104 = vmatpush1.msra.mxu0 %v6013
      %6105 = vmatprep.subr.mxu0 0.0
      %6106 = vmatpush2.msra.mxu0 0.0
      %6107 = vmatprep.subr.mxu0 0.0
      %6108 = vmatpush2.msra.mxu0 0.0
      %6109 = vmatprep.subr.mxu0 0.0
      %6110 = vmatpush2.msra.mxu0 0.0
      %6111 = vmatprep.subr.mxu0 0.0
      %6112 = vmatpush2.msra.mxu0 0.0
      %6113 = vmatprep.subr.mxu0 0.0
      %6114 = vmatpush2.msra.mxu0 0.0
      %6115 = vmatprep.subr.mxu0 0.0
      %6116 = vmatpush2.msra.mxu0 0.0
      %6117 = vmatprep.subr.mxu0 0.0
      %6118 = vmatpush2.msra.mxu0 0.0
      %6119 = vmatprep.subr.mxu0 0.0
      %6120 = vmatpush2.msra.mxu0 0.0
      %6121 = vmatprep.subr.mxu0 0.0
      %6122 = vmatpush2.msra.mxu0 0.0
      %6123 = vmatprep.subr.mxu0 0.0
      %6124 = vmatpush2.msra.mxu0 0.0
      %6125 = vmatprep.subr.mxu0 0.0
      %6126 = vmatpush2.msra.mxu0 0.0
      %6127 = vmatprep.subr.mxu0 0.0
      %6128 = vmatpush2.msra.mxu0 0.0
      %6129 = vmatprep.subr.mxu0 0.0
      %6130 = vmatpush2.msra.mxu0 0.0
      %6131 = vmatprep.subr.mxu0 0.0
      %6132 = vmatpush2.msra.mxu0 0.0
      %6133 = vmatprep.subr.mxu0 0.0
      %6134 = vmatpush2.msra.mxu0 0.0
      %6135 = vmatprep.subr.mxu0 0.0
      %6136 = vmatpush2.msra.mxu0 0.0
      %6137 = vmatprep.mubr.f32.mxu0 0.0
      %6138 = vmatmul.mubr.f32.gmra.mxu0 %v6045
      %v6139 = vpop.f32.mrf.mxu0
      %v6140 = vadd.f32 %v6056, %v6139
      %v6141 = vpop.f32.mrf.mxu0
      %v6142 = vadd.f32 %v6056, %v6141
      %6143 = vmatprep.mubr.f32.mxu0 0.0
      %6144 = vmatmul.mubr.f32.gmra.mxu0 %v6046
      %v6145 = vpop.f32.mrf.mxu0
      %v6146 = vadd.f32 %v6061, %v6145
      %v6147 = vpop.f32.mrf.mxu0
      %v6148 = vadd.f32 %v6061, %v6147
      %6149 = vmatprep.mubr.f32.mxu0 0.0
      %6150 = vmatmul.mubr.f32.gmra.mxu0 %v6047
      %v6151 = vpop.f32.mrf.mxu0
      %v6152 = vadd.f32 %v6066, %v6151
      %v6153 = vpop.f32.mrf.mxu0
      %v6154 = vadd.f32 %v6066, %v6153
      %6155 = vmatprep.mubr.f32.mxu0 0.0
      %6156 = vmatmul.mubr.f32.gmra.mxu0 %v6048
      %v6157 = vpop.f32.mrf.mxu0
      %v6158 = vadd.f32 %v6071, %v6157
      %v6159 = vpop.f32.mrf.mxu0
      %v6160 = vadd.f32 %v6071, %v6159
      %6161 = vdwg.mxu0
      %v6162 = vadd.f32 %v5296, %v6140
      %v6163 = vadd.f32 %v5297, %v6142
      %v6164 = vadd.f32 %v5298, %v6146
      %v6165 = vadd.f32 %v5299, %v6148
      %v6166 = vadd.f32 %v5300, %v6152
      %v6167 = vadd.f32 %v5301, %v6154
      %v6168 = vadd.f32 %v5302, %v6158
      %v6169 = vadd.f32 %v5303, %v6160
      %v6170 = vadd.f32 %v6162, %v6164
      %v6171 = vadd.f32 %v6170, %v6166
      %v6172 = vadd.f32 %v6171, %v6168
      %v6173 = vrot.slane %v6172, 4
      %v6174 = vadd.f32 %v6172, %v6173
      %v6175 = vrot.slane %v6174, 2
      %v6176 = vadd.f32 %v6174, %v6175
      %v6177 = vrot.slane %v6176, 1
      %v6178 = vadd.f32 %v6176, %v6177
      %v6179 = vadd.f32 %v6163, %v6165
      %v6180 = vadd.f32 %v6179, %v6167
      %v6181 = vadd.f32 %v6180, %v6169
      %v6182 = vrot.slane %v6181, 4
      %v6183 = vadd.f32 %v6181, %v6182
      %v6184 = vrot.slane %v6183, 2
      %v6185 = vadd.f32 %v6183, %v6184
      %v6186 = vrot.slane %v6185, 1
      %v6187 = vadd.f32 %v6185, %v6186
      %v6188 = vmul.f32 %v6178, %v665
      %v6189 = vmul.f32 %v6187, %v665
      %v6190 = vsub.f32 %v6162, %v6188
      %v6191 = vsub.f32 %v6163, %v6189
      %v6192 = vsub.f32 %v6164, %v6188
      %v6193 = vsub.f32 %v6165, %v6189
      %v6194 = vsub.f32 %v6166, %v6188
      %v6195 = vsub.f32 %v6167, %v6189
      %v6196 = vsub.f32 %v6168, %v6188
      %v6197 = vsub.f32 %v6169, %v6189
      %v6198 = vmul.f32 %v6190, %v6190
      %v6199 = vmul.f32 %v6191, %v6191
      %v6200 = vmul.f32 %v6192, %v6192
      %v6201 = vmul.f32 %v6193, %v6193
      %v6202 = vmul.f32 %v6194, %v6194
      %v6203 = vmul.f32 %v6195, %v6195
      %v6204 = vmul.f32 %v6196, %v6196
      %v6205 = vmul.f32 %v6197, %v6197
      %v6206 = vadd.f32 %v6198, %v6200
      %v6207 = vadd.f32 %v6206, %v6202
      %v6208 = vadd.f32 %v6207, %v6204
      %v6209 = vrot.slane %v6208, 4
      %v6210 = vadd.f32 %v6208, %v6209
      %v6211 = vrot.slane %v6210, 2
      %v6212 = vadd.f32 %v6210, %v6211
      %v6213 = vrot.slane %v6212, 1
      %v6214 = vadd.f32 %v6212, %v6213
      %v6215 = vadd.f32 %v6199, %v6201
      %v6216 = vadd.f32 %v6215, %v6203
      %v6217 = vadd.f32 %v6216, %v6205
      %v6218 = vrot.slane %v6217, 4
      %v6219 = vadd.f32 %v6217, %v6218
      %v6220 = vrot.slane %v6219, 2
      %v6221 = vadd.f32 %v6219, %v6220
      %v6222 = vrot.slane %v6221, 1
      %v6223 = vadd.f32 %v6221, %v6222
      %v6224 = vmul.f32 %v6214, %v665
      %v6225 = vmul.f32 %v6223, %v665
      %v6226 = vadd.f32 %v6224, 1e-05
      %v6227 = vadd.f32 %v6225, 1e-05
      %v6228 = vrsqrt.pop %v6226
      %v6229 = vrsqrt.pop %v6227
      %v6230 = vmul.f32 %v6190, %v6228
      %v6231 = vmul.f32 %v6191, %v6229
      %v6232 = vmul.f32 %v6192, %v6228
      %v6233 = vmul.f32 %v6193, %v6229
      %v6234 = vmul.f32 %v6194, %v6228
      %v6235 = vmul.f32 %v6195, %v6229
      %v6236 = vmul.f32 %v6196, %v6228
      %v6237 = vmul.f32 %v6197, %v6229
      %v6238 = vld [vmem:[%s15] sm:$0xff]
      %v6239 = vld [vmem:[%s15 + $0x8] sm:$0xff]
      %v6240 = vld [vmem:[%s15 + $0x10] sm:$0xff]
      %v6241 = vld [vmem:[%s15 + $0x18] sm:$0xff]
      %6243 = vset.pattern.permute.xlu0 0
      %6244 = vperm.xlu0 %6243, %v6238
      %v6245 = vpop.permute.xlu0 %6244
      %6248 = vset.pattern.permute.xlu0 0
      %6249 = vperm.xlu0 %6248, %v6239
      %v6250 = vpop.permute.xlu0 %6249
      %6253 = vset.pattern.permute.xlu0 0
      %6254 = vperm.xlu0 %6253, %v6240
      %v6255 = vpop.permute.xlu0 %6254
      %6258 = vset.pattern.permute.xlu0 0
      %6259 = vperm.xlu0 %6258, %v6241
      %v6260 = vpop.permute.xlu0 %6259
      %v6262 = vmul.f32 %v6230, %v6245
      %v6263 = vmul.f32 %v6231, %v6245
      %v6264 = vmul.f32 %v6232, %v6250
      %v6265 = vmul.f32 %v6233, %v6250
      %v6266 = vmul.f32 %v6234, %v6255
      %v6267 = vmul.f32 %v6235, %v6255
      %v6268 = vmul.f32 %v6236, %v6260
      %v6269 = vmul.f32 %v6237, %v6260
      %v6270 = vld [vmem:[%s16] sm:$0xff]
      %v6271 = vld [vmem:[%s16 + $0x8] sm:$0xff]
      %v6272 = vld [vmem:[%s16 + $0x10] sm:$0xff]
      %v6273 = vld [vmem:[%s16 + $0x18] sm:$0xff]
      %6275 = vset.pattern.permute.xlu0 0
      %6276 = vperm.xlu0 %6275, %v6270
      %v6277 = vpop.permute.xlu0 %6276
      %6280 = vset.pattern.permute.xlu0 0
      %6281 = vperm.xlu0 %6280, %v6271
      %v6282 = vpop.permute.xlu0 %6281
      %6285 = vset.pattern.permute.xlu0 0
      %6286 = vperm.xlu0 %6285, %v6272
      %v6287 = vpop.permute.xlu0 %6286
      %6290 = vset.pattern.permute.xlu0 0
      %6291 = vperm.xlu0 %6290, %v6273
      %v6292 = vpop.permute.xlu0 %6291
      %v6294 = vadd.f32 %v6262, %v6277
      %v6295 = vadd.f32 %v6263, %v6277
      %v6296 = vadd.f32 %v6264, %v6282
      %v6297 = vadd.f32 %v6265, %v6282
      %v6298 = vadd.f32 %v6266, %v6287
      %v6299 = vadd.f32 %v6267, %v6287
      %v6300 = vadd.f32 %v6268, %v6292
      %v6301 = vadd.f32 %v6269, %v6292
      %v6302 = vld [vmem:[%s17] sm:$0xff]
      %v6303 = vld [vmem:[%s17 + $0x8] sm:$0xff]
      %v6304 = vld [vmem:[%s17 + $0x10] sm:$0xff]
      %v6305 = vld [vmem:[%s17 + $0x18] sm:$0xff]
      %v6306 = vld [vmem:[%s18] sm:$0xff]
      %v6307 = vld [vmem:[%s18 + $0x8] sm:$0xff]
      %v6308 = vld [vmem:[%s18 + $0x10] sm:$0xff]
      %v6309 = vld [vmem:[%s18 + $0x18] sm:$0xff]
      %6311 = vset.pattern.permute.xlu0 0
      %6312 = vperm.xlu0 %6311, %v6306
      %v6313 = vpop.permute.xlu0 %6312
      %6316 = vset.pattern.permute.xlu0 0
      %6317 = vperm.xlu0 %6316, %v6307
      %v6318 = vpop.permute.xlu0 %6317
      %6321 = vset.pattern.permute.xlu0 0
      %6322 = vperm.xlu0 %6321, %v6308
      %v6323 = vpop.permute.xlu0 %6322
      %6326 = vset.pattern.permute.xlu0 0
      %6327 = vperm.xlu0 %6326, %v6309
      %v6328 = vpop.permute.xlu0 %6327
      %v6331 = vsel %vm864, %v6302, 0
      %v6334 = vsel %vm864, %v6303, 0
      %v6337 = vsel %vm864, %v6304, 0
      %v6340 = vsel %vm864, %v6305, 0
      %6342 = vmatprep.subr.mxu0 0.0
      %6343 = vmatpush1.msra.mxu0 0.0
      %6344 = vmatprep.subr.mxu0 0.0
      %6345 = vmatpush1.msra.mxu0 0.0
      %6346 = vmatprep.subr.mxu0 0.0
      %6347 = vmatpush1.msra.mxu0 0.0
      %6348 = vmatprep.subr.mxu0 0.0
      %6349 = vmatpush1.msra.mxu0 0.0
      %6350 = vmatprep.subr.mxu0 0.0
      %6351 = vmatpush1.msra.mxu0 0.0
      %6352 = vmatprep.subr.mxu0 0.0
      %6353 = vmatpush1.msra.mxu0 0.0
      %6354 = vmatprep.subr.mxu0 0.0
      %6355 = vmatpush1.msra.mxu0 0.0
      %6356 = vmatprep.subr.mxu0 0.0
      %6357 = vmatpush1.msra.mxu0 0.0
      %6358 = vmatprep.subr.mxu0 0.0
      %6359 = vmatpush1.msra.mxu0 0.0
      %6360 = vmatprep.subr.mxu0 0.0
      %6361 = vmatpush1.msra.mxu0 0.0
      %6362 = vmatprep.subr.mxu0 0.0
      %6363 = vmatpush1.msra.mxu0 0.0
      %6364 = vmatprep.subr.mxu0 0.0
      %6365 = vmatpush1.msra.mxu0 0.0
      %6366 = vmatprep.subr.mxu0 %v6301
      %6367 = vmatpush1.msra.mxu0 %v6300
      %6368 = vmatprep.subr.mxu0 %v6299
      %6369 = vmatpush1.msra.mxu0 %v6298
      %6370 = vmatprep.subr.mxu0 %v6297
      %6371 = vmatpush1.msra.mxu0 %v6296
      %6372 = vmatprep.subr.mxu0 %v6295
      %6373 = vmatpush1.msra.mxu0 %v6294
      %6374 = vmatprep.subr.mxu0 0.0
      %6375 = vmatpush2.msra.mxu0 0.0
      %6376 = vmatprep.subr.mxu0 0.0
      %6377 = vmatpush2.msra.mxu0 0.0
      %6378 = vmatprep.subr.mxu0 0.0
      %6379 = vmatpush2.msra.mxu0 0.0
      %6380 = vmatprep.subr.mxu0 0.0
      %6381 = vmatpush2.msra.mxu0 0.0
      %6382 = vmatprep.subr.mxu0 0.0
      %6383 = vmatpush2.msra.mxu0 0.0
      %6384 = vmatprep.subr.mxu0 0.0
      %6385 = vmatpush2.msra.mxu0 0.0
      %6386 = vmatprep.subr.mxu0 0.0
      %6387 = vmatpush2.msra.mxu0 0.0
      %6388 = vmatprep.subr.mxu0 0.0
      %6389 = vmatpush2.msra.mxu0 0.0
      %6390 = vmatprep.subr.mxu0 0.0
      %6391 = vmatpush2.msra.mxu0 0.0
      %6392 = vmatprep.subr.mxu0 0.0
      %6393 = vmatpush2.msra.mxu0 0.0
      %6394 = vmatprep.subr.mxu0 0.0
      %6395 = vmatpush2.msra.mxu0 0.0
      %6396 = vmatprep.subr.mxu0 0.0
      %6397 = vmatpush2.msra.mxu0 0.0
      %6398 = vmatprep.subr.mxu0 0.0
      %6399 = vmatpush2.msra.mxu0 0.0
      %6400 = vmatprep.subr.mxu0 0.0
      %6401 = vmatpush2.msra.mxu0 0.0
      %6402 = vmatprep.subr.mxu0 0.0
      %6403 = vmatpush2.msra.mxu0 0.0
      %6404 = vmatprep.subr.mxu0 0.0
      %6405 = vmatpush2.msra.mxu0 0.0
      %6406 = vmatprep.mubr.f32.mxu0 0.0
      %6407 = vmatmul.mubr.f32.gmra.mxu0 %v6331
      %v6408 = vpop.f32.mrf.mxu0
      %v6409 = vadd.f32 %v6313, %v6408
      %v6410 = vpop.f32.mrf.mxu0
      %v6411 = vadd.f32 %v6313, %v6410
      %6412 = vmatprep.mubr.f32.mxu0 0.0
      %6413 = vmatmul.mubr.f32.gmra.mxu0 %v6334
      %v6414 = vpop.f32.mrf.mxu0
      %v6415 = vadd.f32 %v6318, %v6414
      %v6416 = vpop.f32.mrf.mxu0
      %v6417 = vadd.f32 %v6318, %v6416
      %6418 = vmatprep.mubr.f32.mxu0 0.0
      %6419 = vmatmul.mubr.f32.gmra.mxu0 %v6337
      %v6420 = vpop.f32.mrf.mxu0
      %v6421 = vadd.f32 %v6323, %v6420
      %v6422 = vpop.f32.mrf.mxu0
      %v6423 = vadd.f32 %v6323, %v6422
      %6424 = vmatprep.mubr.f32.mxu0 0.0
      %6425 = vmatmul.mubr.f32.gmra.mxu0 %v6340
      %v6426 = vpop.f32.mrf.mxu0
      %v6427 = vadd.f32 %v6328, %v6426
      %v6428 = vpop.f32.mrf.mxu0
      %v6429 = vadd.f32 %v6328, %v6428
      %6430 = vdwg.mxu0
      %v6431 = vld [vmem:[%s617] sm:$0xff]
      %v6432 = vld [vmem:[%s617 + $0x8] sm:$0xff]
      %v6433 = vld [vmem:[%s617 + $0x10] sm:$0xff]
      %v6434 = vld [vmem:[%s617 + $0x18] sm:$0xff]
      %v6435 = vld [vmem:[%s617 + $0x20] sm:$0xff]
      %v6436 = vld [vmem:[%s617 + $0x28] sm:$0xff]
      %v6437 = vld [vmem:[%s617 + $0x30] sm:$0xff]
      %v6438 = vld [vmem:[%s617 + $0x38] sm:$0xff]
      %v6439 = vadd.f32 %v6409, %v6431
      %v6440 = vadd.f32 %v6411, %v6432
      %v6441 = vadd.f32 %v6415, %v6433
      %v6442 = vadd.f32 %v6417, %v6434
      %v6443 = vadd.f32 %v6421, %v6435
      %v6444 = vadd.f32 %v6423, %v6436
      %v6445 = vadd.f32 %v6427, %v6437
      %v6446 = vadd.f32 %v6429, %v6438
      %6447 = vst [vmem:[%s622] sm:$0xff] %v6439
      %6448 = vst [vmem:[%s622 + $0x8] sm:$0xff] %v6440
      %6449 = vst [vmem:[%s622 + $0x10] sm:$0xff] %v6441
      %6450 = vst [vmem:[%s622 + $0x18] sm:$0xff] %v6442
      %6451 = vst [vmem:[%s622 + $0x20] sm:$0xff] %v6443
      %6452 = vst [vmem:[%s622 + $0x28] sm:$0xff] %v6444
      %6453 = vst [vmem:[%s622 + $0x30] sm:$0xff] %v6445
      %6454 = vst [vmem:[%s622 + $0x38] sm:$0xff] %v6446
      %p6455 = scmp.lt.s32.totalorder %s30, 1
      %s6456 = scalar_select %p6455, %s30, 1
      %s6457 = smul.addr %s6456, 8
      %s6458 = smul.addr %s6457, 8
      %s6459 = scalar_lea.vmem %s19, %s6458
      // Predicated region
      $region97: #{low_catvit_forward.1} parent=95 // pred_check
        %p6460 = pneg %p457
      $region98: #{low_catvit_forward.1} parent=95 // pred_check_branch
        %6462 = sbr.rel (%p6460) target = $region100
      $region99: #{low_catvit_forward.1} parent=95 // pred_region
        _
      $region100: #{low_catvit_forward.1} parent=95 // pred_fallthru
        _
    $region96: #{low_catvit_forward.1} parent=5 // pred_fallthru
      _
    %p6463 = scmp.le.s32.totalorder 2, %s25
    // Predicated region
    $region101: #{low_catvit_forward.1} parent=5 // pred_check
      %p6464 = pneg %p6463
    $region102: #{low_catvit_forward.1} parent=5 // pred_check_branch
      %6466 = sbr.rel (%p6464) target = $region104
    $region103: #{low_catvit_forward.1} parent=5 // pred_region
      %s6467 = ssub.s32 %s25, 2
      // Predicated region
      $region105: #{low_catvit_forward.1} parent=103 // pred_check
        %p6468 = pneg %p463
      $region106: #{low_catvit_forward.1} parent=103 // pred_check_branch
        %6470 = sbr.rel (%p6468) target = $region108
      $region107: #{low_catvit_forward.1} parent=103 // pred_region
        %p6471 = scmp.lt.s32.totalorder %s31, 1
        %s6472 = scalar_select %p6471, %s31, 1
        %s6473 = smul.addr %s6472, 8
        %s6474 = smul.addr %s6473, 8
        %s6475 = scalar_lea.vmem %s19, %s6474
      $region108: #{low_catvit_forward.1} parent=103 // pred_fallthru
        _
    $region104: #{low_catvit_forward.1} parent=5 // pred_fallthru
      _
  $region6: #{low_catvit_forward.1} parent=0 // loop_footer
    %s29 = sadd.s32 1, %s25
  $region7: #{low_catvit_forward.1} parent=0 // loop_footer_branch
    %24 = sbr.rel target = $region3
  $region8: #{low_catvit_forward.1} parent=0 // loop_exit
    _

</llo_original>
